<compile_context>
chip_gen: v5e
topology: v5e:2x2
jax: 0.10.0
libtpu: 0.0.40
codegen_flags: <defaults>
</compile_context>

<pallas_src>
import math
import functools

import jax
import jax.numpy as jnp
from jax.experimental import pallas as pl
from jax.experimental.pallas import tpu as pltpu  # noqa: F401

# ----------------------------- configuration -------------------------------
B = 2          # batch
C_IN = 4       # in_channels (latent channels)
L = 16         # latent sequence length
D = 32         # hidden_size
NUM_HEADS = 4  # num_heads
DEPTH = 2      # depth
MLP_RATIO = 4.0
MLP_HID = int(D * MLP_RATIO)
T_SIN_DIM = 256  # sinusoidal timestep embedding dim
DH = D // NUM_HEADS


# ----------------------------- kernel-side helpers --------------------------
def _layernorm_noaffine(v, eps):
    mu = jnp.mean(v, axis=-1, keepdims=True)
    var = jnp.mean((v - mu) ** 2, axis=-1, keepdims=True)
    return (v - mu) * jax.lax.rsqrt(var + eps)


def _gelu_tanh(x):
    # tanh-approx GELU: one EUP tanh instead of the erf polynomial VALU chain.
    # (~1e-3 abs deviation from torch's exact erf GELU.)
    c0 = math.sqrt(2.0 / math.pi)
    return 0.5 * x * (1.0 + jnp.tanh(c0 * (x + 0.044715 * x * x * x)))


def _silu(x):
    return x * jax.nn.sigmoid(x)


# ----------------------------- fused forward kernel -------------------------
def _fused_dit_kernel(
    x_ref,            # [B*L, C_IN]   latents, already NLC-flattened
    tsin_ref,         # [B, 256]      sinusoidal timestep embedding
    gemb_ref,         # [B, D]        global conditioning embeds
    bcast_ref,        # [B*L, B]      0/1 batch->row expansion matrix
    lin_w_ref, lin_b_ref,        # latent_in            [C_IN, D], [1, D]
    tw1_ref, tb1_ref,            # time_embed Linear 1  [256, D],  [1, D]
    tw2_ref, tb2_ref,            # time_embed Linear 2  [D, D],    [1, D]
    gw_ref, gb_ref,              # global_cond_proj     [D, D],    [1, D]
    wmod_ref, bmod_ref,          # adaLN   [DEPTH, D, 6D], [DEPTH, 1, 6D]
    wqkv_ref, bqkv_ref,          # attn in_proj  [DEPTH, D, 3D], [DEPTH, 1, 3D]
    wo_ref, bo_ref,              # attn out_proj [DEPTH, D, D],  [DEPTH, 1, D]
    w1_ref, b1_ref,              # mlp fc1 [DEPTH, D, MLP_HID], [DEPTH, 1, MLP_HID]
    w2_ref, b2_ref,              # mlp fc2 [DEPTH, MLP_HID, D], [DEPTH, 1, D]
    gln_ref, bln_ref,            # norm_out gamma/beta  [1, D], [1, D]
    wout_ref, bout_ref,          # linear_out (torch layout) [C_IN, D], [C_IN, 1]
    o_ref,                       # [B, C_IN, L]   output, NCL layout
    *, num_heads, depth, batch, seqlen, has_global,
):
    f32 = jnp.float32
    D_ = lin_w_ref.shape[1]
    dh = D_ // num_heads
    B_, L_ = batch, seqlen
    M = B_ * L_

    def mm(a2, w, b):
        return jnp.dot(a2, w, preferred_element_type=f32) + b

    # ---- latent_in: [M, C_IN] @ [C_IN, D] ----
    x2 = mm(x_ref[...], lin_w_ref[...], lin_b_ref[...])             # [M, D]

    # ---- timestep embedding MLP (+ optional global conditioning) ----
    h = _silu(mm(tsin_ref[...], tw1_ref[...], tb1_ref[...]))        # [B, D]
    c = mm(h, tw2_ref[...], tb2_ref[...])                           # [B, D]
    if has_global:
        c = c + mm(gemb_ref[...], gw_ref[...], gb_ref[...])

    # SiLU(c) hoisted once; broadcast per-batch -> per-row with a tiny matmul
    # so everything downstream stays 2-D and lane/sublane aligned.
    c_rows = jnp.dot(bcast_ref[...], _silu(c),
                     preferred_element_type=f32)                    # [M, D]

    scale = 1.0 / math.sqrt(dh)

    for layer in range(depth):
        # ---- adaLN modulation at row resolution: [M, 6D] ----
        mod = mm(c_rows, wmod_ref[layer], bmod_ref[layer])
        shift_msa = mod[:, 0 * D_:1 * D_]
        scale_msa = mod[:, 1 * D_:2 * D_]
        gate_msa = mod[:, 2 * D_:3 * D_]
        shift_mlp = mod[:, 3 * D_:4 * D_]
        scale_mlp = mod[:, 4 * D_:5 * D_]
        gate_mlp = mod[:, 5 * D_:6 * D_]

        # ---- attention branch ----
        nx = _layernorm_noaffine(x2, 1e-6)
        nx = nx * (1.0 + scale_msa) + shift_msa
        qkv3 = mm(nx, wqkv_ref[layer], bqkv_ref[layer]).reshape(B_, L_, 3 * D_)
        wo = wo_ref[layer]                                          # [D, D]

        attn = jnp.zeros((M, D_), f32)
        for hh in range(num_heads):
            q = qkv3[..., 0 * D_ + hh * dh: 0 * D_ + (hh + 1) * dh]  # [B, L, dh]
            k = qkv3[..., 1 * D_ + hh * dh: 1 * D_ + (hh + 1) * dh]
            v = qkv3[..., 2 * D_ + hh * dh: 2 * D_ + (hh + 1) * dh]
            s = jnp.einsum('bld,bmd->blm', q, k,
                           preferred_element_type=f32) * scale       # [B, L, L]
            s = s - jnp.max(s, axis=-1, keepdims=True)
            p = jnp.exp(s)
            p = p * pl.reciprocal(jnp.sum(p, axis=-1, keepdims=True), approx=True)
            oh = jnp.einsum('blm,bmd->bld', p, v,
                            preferred_element_type=f32)               # [B, L, dh]
            # accumulate head directly through its W_o row-slice (no concat)
            attn = attn + jnp.dot(oh.reshape(M, dh),
                                  wo[hh * dh:(hh + 1) * dh, :],
                                  preferred_element_type=f32)
        x2 = x2 + gate_msa * (attn + bo_ref[layer])

        # ---- MLP branch ----
        nx = _layernorm_noaffine(x2, 1e-6)
        nx = nx * (1.0 + scale_mlp) + shift_mlp
        h1 = _gelu_tanh(mm(nx, w1_ref[layer], b1_ref[layer]))        # [M, MLP_HID]
        h2 = mm(h1, w2_ref[layer], b2_ref[layer])                    # [M, D]
        x2 = x2 + gate_mlp * h2

    # ---- norm_out (affine, torch default eps=1e-5) + linear_out, NCL write ----
    mu = jnp.mean(x2, axis=-1, keepdims=True)
    var = jnp.mean((x2 - mu) ** 2, axis=-1, keepdims=True)
    nx = (x2 - mu) * jax.lax.rsqrt(var + 1e-5)
    nx = nx * gln_ref[...] + bln_ref[...]
    nx3 = nx.reshape(B_, L_, D_)
    wout = wout_ref[...]          # [C_out, D] (torch [out, in] layout)
    bout = bout_ref[...]          # [C_out, 1]
    for b in range(B_):
        # o[b, c, l] = sum_d wout[c, d] * nx3[b, l, d] + bout[c]
        o_ref[b] = jax.lax.dot_general(
            wout, nx3[b], (((1,), (1,)), ((), ())),
            preferred_element_type=f32) + bout


# ----------------------------- parameters -----------------------------------
def init_params(key):
    keys = iter(jax.random.split(key, 32))

    def w(shape, scale=0.05):
        return jax.random.normal(next(keys), shape, jnp.float32) * scale

    params = {
        "latent_in_w": w((C_IN, D)), "latent_in_b": w((1, D)),
        "time_w1": w((T_SIN_DIM, D)), "time_b1": w((1, D)),
        "time_w2": w((D, D)), "time_b2": w((1, D)),
        "gcond_w": w((D, D)), "gcond_b": w((1, D)),
        # per-block weights stacked along a leading depth axis
        "wmod": w((DEPTH, D, 6 * D)), "bmod": w((DEPTH, 1, 6 * D)),
        "wqkv": w((DEPTH, D, 3 * D)), "bqkv": w((DEPTH, 1, 3 * D)),
        "wo": w((DEPTH, D, D)), "bo": w((DEPTH, 1, D)),
        "wmlp1": w((DEPTH, D, MLP_HID)), "bmlp1": w((DEPTH, 1, MLP_HID)),
        "wmlp2": w((DEPTH, MLP_HID, D)), "bmlp2": w((DEPTH, 1, D)),
        "norm_out_g": 1.0 + w((1, D)), "norm_out_b": w((1, D)),
        "linear_out_w": w((C_IN, D)),      # torch [out, in] layout
        "linear_out_b": w((C_IN, 1)),
    }
    return params


# ----------------------------- glue (plain JAX) ------------------------------
def timestep_embedding(t, dim=T_SIN_DIM, max_period=10000):
    half = dim // 2
    freqs = jnp.exp(-math.log(max_period) * jnp.arange(half, dtype=jnp.float32) / half)
    args = t.astype(jnp.float32)[:, None] * freqs[None]
    return jnp.concatenate([jnp.cos(args), jnp.sin(args)], axis=-1)   # dim even


def structure_dit_forward(params, hidden_states, timestep, global_embeds=None,
                          structure_sequences=None):
    """hidden_states: [B, C, L] (NCL, like torch); returns [B, C, L]."""
    # TODO(synk): structure_sequences conditioning needs the external
    # structure_encoder nn.Module (Python list-of-tuples input); only the
    # structure_sequences=None path is implemented here.
    assert structure_sequences is None
    B_, C_, L_ = hidden_states.shape

    # NCL -> NLC -> flatten rows (tiny glue, left to XLA)
    x_flat = jnp.transpose(hidden_states, (0, 2, 1)).reshape(B_ * L_, C_)
    t_sin = timestep_embedding(timestep, T_SIN_DIM)                   # [B, 256]

    has_global = global_embeds is not None
    g = global_embeds if has_global else jnp.zeros((B_, D), jnp.float32)

    # 0/1 matrix expanding per-batch conditioning to per-row (constant-folded).
    bcast = jnp.repeat(jnp.eye(B_, dtype=jnp.float32), L_, axis=0)    # [B*L, B]

    kernel = functools.partial(
        _fused_dit_kernel, num_heads=NUM_HEADS, depth=DEPTH,
        batch=B_, seqlen=L_, has_global=has_global)

    # Single fused pallas_call: no grid -> one invocation, all operands whole
    # in VMEM (< 1 MiB total), output written directly in NCL layout.
    return pl.pallas_call(
        kernel,
        out_shape=jax.ShapeDtypeStruct((B_, C_, L_), jnp.float32),
    )(x_flat, t_sin, g, bcast,
      params["latent_in_w"], params["latent_in_b"],
      params["time_w1"], params["time_b1"],
      params["time_w2"], params["time_b2"],
      params["gcond_w"], params["gcond_b"],
      params["wmod"], params["bmod"],
      params["wqkv"], params["bqkv"],
      params["wo"], params["bo"],
      params["wmlp1"], params["bmlp1"],
      params["wmlp2"], params["bmlp2"],
      params["norm_out_g"], params["norm_out_b"],
      params["linear_out_w"], params["linear_out_b"])


# ----------------------------- main ------------------------------------------
if __name__ == "__main__":
    key = jax.random.PRNGKey(0)
    k_x, k_t, k_g, k_p = jax.random.split(key, 4)

    hidden_states = jax.random.normal(k_x, (B, C_IN, L), jnp.float32)   # [B, C, L]
    timestep = jax.random.uniform(k_t, (B,), jnp.float32, 0.0, 1000.0)  # [B]
    global_embeds = jax.random.normal(k_g, (B, D), jnp.float32)         # [B, hidden]

    params = init_params(k_p)

    out = structure_dit_forward(params, hidden_states, timestep, global_embeds)
    out = jax.block_until_ready(out)

    assert out.shape == (B, C_IN, L), out.shape
    assert bool(jnp.all(jnp.isfinite(out)))
    print("KERNEL_OK")
</pallas_src>

<mosaic_0001>
module attributes {stable_mosaic.version = 11 : i64} {
  func.func @_fused_dit_kernel(%arg0: memref<32x4xf32, #tpu.memory_space<vmem>>, %arg1: memref<2x256xf32, #tpu.memory_space<vmem>>, %arg2: memref<2x32xf32, #tpu.memory_space<vmem>>, %arg3: memref<32x2xf32, #tpu.memory_space<vmem>>, %arg4: memref<4x32xf32, #tpu.memory_space<vmem>>, %arg5: memref<1x32xf32, #tpu.memory_space<vmem>>, %arg6: memref<256x32xf32, #tpu.memory_space<vmem>>, %arg7: memref<1x32xf32, #tpu.memory_space<vmem>>, %arg8: memref<32x32xf32, #tpu.memory_space<vmem>>, %arg9: memref<1x32xf32, #tpu.memory_space<vmem>>, %arg10: memref<32x32xf32, #tpu.memory_space<vmem>>, %arg11: memref<1x32xf32, #tpu.memory_space<vmem>>, %arg12: memref<2x32x192xf32, #tpu.memory_space<vmem>>, %arg13: memref<2x1x192xf32, #tpu.memory_space<vmem>>, %arg14: memref<2x32x96xf32, #tpu.memory_space<vmem>>, %arg15: memref<2x1x96xf32, #tpu.memory_space<vmem>>, %arg16: memref<2x32x32xf32, #tpu.memory_space<vmem>>, %arg17: memref<2x1x32xf32, #tpu.memory_space<vmem>>, %arg18: memref<2x32x128xf32, #tpu.memory_space<vmem>>, %arg19: memref<2x1x128xf32, #tpu.memory_space<vmem>>, %arg20: memref<2x128x32xf32, #tpu.memory_space<vmem>>, %arg21: memref<2x1x32xf32, #tpu.memory_space<vmem>>, %arg22: memref<1x32xf32, #tpu.memory_space<vmem>>, %arg23: memref<1x32xf32, #tpu.memory_space<vmem>>, %arg24: memref<4x32xf32, #tpu.memory_space<vmem>>, %arg25: memref<4x1xf32, #tpu.memory_space<vmem>>, %arg26: memref<2x4x16xf32, #tpu.memory_space<vmem>>) attributes {dimension_semantics = [], scalar_prefetch = 0 : i64, scratch_operands = 0 : i64, tpu.core_type = #tpu.core_type<tc>} {
    %c0 = arith.constant 0 : index
    %c0_0 = arith.constant 0 : index
    %0 = vector.load %arg0[%c0, %c0_0] : memref<32x4xf32, #tpu.memory_space<vmem>>, vector<32x4xf32>
    %c0_1 = arith.constant 0 : index
    %c0_2 = arith.constant 0 : index
    %1 = vector.load %arg4[%c0_1, %c0_2] : memref<4x32xf32, #tpu.memory_space<vmem>>, vector<4x32xf32>
    %c0_3 = arith.constant 0 : index
    %c0_4 = arith.constant 0 : index
    %2 = vector.load %arg5[%c0_3, %c0_4] : memref<1x32xf32, #tpu.memory_space<vmem>>, vector<1x32xf32>
    %cst = arith.constant dense<0.000000e+00> : vector<32x32xf32>
    %3 = tpu.matmul %0, %1, %cst {dimension_numbers = #tpu.dot_dimension_numbers<[1], [0], [0], [1], [0, 0, 1, 1], [], []>} : vector<32x4xf32>, vector<4x32xf32>, vector<32x32xf32> -> vector<32x32xf32>
    %4 = vector.broadcast %2 : vector<1x32xf32> to vector<32x32xf32>
    %5 = arith.addf %3, %4 : vector<32x32xf32>
    %c0_5 = arith.constant 0 : index
    %c0_6 = arith.constant 0 : index
    %6 = vector.load %arg1[%c0_5, %c0_6] : memref<2x256xf32, #tpu.memory_space<vmem>>, vector<2x256xf32>
    %c0_7 = arith.constant 0 : index
    %c0_8 = arith.constant 0 : index
    %7 = vector.load %arg6[%c0_7, %c0_8] : memref<256x32xf32, #tpu.memory_space<vmem>>, vector<256x32xf32>
    %c0_9 = arith.constant 0 : index
    %c0_10 = arith.constant 0 : index
    %8 = vector.load %arg7[%c0_9, %c0_10] : memref<1x32xf32, #tpu.memory_space<vmem>>, vector<1x32xf32>
    %cst_11 = arith.constant dense<0.000000e+00> : vector<2x32xf32>
    %9 = tpu.matmul %6, %7, %cst_11 {dimension_numbers = #tpu.dot_dimension_numbers<[1], [0], [0], [1], [0, 0, 1, 1], [], []>} : vector<2x256xf32>, vector<256x32xf32>, vector<2x32xf32> -> vector<2x32xf32>
    %10 = vector.broadcast %8 : vector<1x32xf32> to vector<2x32xf32>
    %11 = arith.addf %9, %10 : vector<2x32xf32>
    %12 = arith.negf %11 : vector<2x32xf32>
    %13 = math.exp %12 : vector<2x32xf32>
    %cst_12 = arith.constant 1.000000e+00 : f32
    %14 = vector.broadcast %cst_12 : f32 to vector<2x32xf32>
    %15 = arith.addf %14, %13 : vector<2x32xf32>
    %16 = arith.divf %14, %15 : vector<2x32xf32>
    %17 = arith.mulf %11, %16 : vector<2x32xf32>
    %c0_13 = arith.constant 0 : index
    %c0_14 = arith.constant 0 : index
    %18 = vector.load %arg8[%c0_13, %c0_14] : memref<32x32xf32, #tpu.memory_space<vmem>>, vector<32x32xf32>
    %c0_15 = arith.constant 0 : index
    %c0_16 = arith.constant 0 : index
    %19 = vector.load %arg9[%c0_15, %c0_16] : memref<1x32xf32, #tpu.memory_space<vmem>>, vector<1x32xf32>
    %cst_17 = arith.constant dense<0.000000e+00> : vector<2x32xf32>
    %20 = tpu.matmul %17, %18, %cst_17 {dimension_numbers = #tpu.dot_dimension_numbers<[1], [0], [0], [1], [0, 0, 1, 1], [], []>} : vector<2x32xf32>, vector<32x32xf32>, vector<2x32xf32> -> vector<2x32xf32>
    %21 = vector.broadcast %19 : vector<1x32xf32> to vector<2x32xf32>
    %22 = arith.addf %20, %21 : vector<2x32xf32>
    %c0_18 = arith.constant 0 : index
    %c0_19 = arith.constant 0 : index
    %23 = vector.load %arg2[%c0_18, %c0_19] : memref<2x32xf32, #tpu.memory_space<vmem>>, vector<2x32xf32>
    %c0_20 = arith.constant 0 : index
    %c0_21 = arith.constant 0 : index
    %24 = vector.load %arg10[%c0_20, %c0_21] : memref<32x32xf32, #tpu.memory_space<vmem>>, vector<32x32xf32>
    %c0_22 = arith.constant 0 : index
    %c0_23 = arith.constant 0 : index
    %25 = vector.load %arg11[%c0_22, %c0_23] : memref<1x32xf32, #tpu.memory_space<vmem>>, vector<1x32xf32>
    %cst_24 = arith.constant dense<0.000000e+00> : vector<2x32xf32>
    %26 = tpu.matmul %23, %24, %cst_24 {dimension_numbers = #tpu.dot_dimension_numbers<[1], [0], [0], [1], [0, 0, 1, 1], [], []>} : vector<2x32xf32>, vector<32x32xf32>, vector<2x32xf32> -> vector<2x32xf32>
    %27 = vector.broadcast %25 : vector<1x32xf32> to vector<2x32xf32>
    %28 = arith.addf %26, %27 : vector<2x32xf32>
    %29 = arith.addf %22, %28 : vector<2x32xf32>
    %c0_25 = arith.constant 0 : index
    %c0_26 = arith.constant 0 : index
    %30 = vector.load %arg3[%c0_25, %c0_26] : memref<32x2xf32, #tpu.memory_space<vmem>>, vector<32x2xf32>
    %31 = arith.negf %29 : vector<2x32xf32>
    %32 = math.exp %31 : vector<2x32xf32>
    %cst_27 = arith.constant 1.000000e+00 : f32
    %33 = vector.broadcast %cst_27 : f32 to vector<2x32xf32>
    %34 = arith.addf %33, %32 : vector<2x32xf32>
    %35 = arith.divf %33, %34 : vector<2x32xf32>
    %36 = arith.mulf %29, %35 : vector<2x32xf32>
    %cst_28 = arith.constant dense<0.000000e+00> : vector<32x32xf32>
    %37 = tpu.matmul %30, %36, %cst_28 {dimension_numbers = #tpu.dot_dimension_numbers<[1], [0], [0], [1], [0, 0, 1, 1], [], []>} : vector<32x2xf32>, vector<2x32xf32>, vector<32x32xf32> -> vector<32x32xf32>
    %c0_29 = arith.constant 0 : index
    %c0_30 = arith.constant 0 : index
    %c0_31 = arith.constant 0 : index
    %38 = vector.load %arg12[%c0_29, %c0_30, %c0_31] : memref<2x32x192xf32, #tpu.memory_space<vmem>>, vector<1x32x192xf32>
    %39 = vector.shape_cast %38 : vector<1x32x192xf32> to vector<32x192xf32>
    %c0_32 = arith.constant 0 : index
    %c0_33 = arith.constant 0 : index
    %c0_34 = arith.constant 0 : index
    %40 = vector.load %arg13[%c0_32, %c0_33, %c0_34] : memref<2x1x192xf32, #tpu.memory_space<vmem>>, vector<1x1x192xf32>
    %41 = vector.shape_cast %40 : vector<1x1x192xf32> to vector<1x192xf32>
    %cst_35 = arith.constant dense<0.000000e+00> : vector<32x192xf32>
    %42 = tpu.matmul %37, %39, %cst_35 {dimension_numbers = #tpu.dot_dimension_numbers<[1], [0], [0], [1], [0, 0, 1, 1], [], []>} : vector<32x32xf32>, vector<32x192xf32>, vector<32x192xf32> -> vector<32x192xf32>
    %43 = vector.broadcast %41 : vector<1x192xf32> to vector<32x192xf32>
    %44 = arith.addf %42, %43 : vector<32x192xf32>
    %45 = vector.extract_strided_slice %44 {offsets = [0, 0], sizes = [32, 32], strides = [1, 1]} : vector<32x192xf32> to vector<32x32xf32>
    %46 = vector.extract_strided_slice %44 {offsets = [0, 32], sizes = [32, 32], strides = [1, 1]} : vector<32x192xf32> to vector<32x32xf32>
    %47 = vector.extract_strided_slice %44 {offsets = [0, 64], sizes = [32, 32], strides = [1, 1]} : vector<32x192xf32> to vector<32x32xf32>
    %48 = vector.extract_strided_slice %44 {offsets = [0, 96], sizes = [32, 32], strides = [1, 1]} : vector<32x192xf32> to vector<32x32xf32>
    %49 = vector.extract_strided_slice %44 {offsets = [0, 128], sizes = [32, 32], strides = [1, 1]} : vector<32x192xf32> to vector<32x32xf32>
    %50 = vector.extract_strided_slice %44 {offsets = [0, 160], sizes = [32, 32], strides = [1, 1]} : vector<32x192xf32> to vector<32x32xf32>
    %cst_36 = arith.constant dense<0.000000e+00> : vector<32xf32>
    %51 = vector.multi_reduction <add>, %5, %cst_36 [1] : vector<32x32xf32> to vector<32xf32>
    %52 = vector.shape_cast %51 : vector<32xf32> to vector<32x1xf32>
    %cst_37 = arith.constant 3.200000e+01 : f32
    %53 = vector.broadcast %cst_37 : f32 to vector<32x1xf32>
    %54 = arith.divf %52, %53 : vector<32x1xf32>
    %55 = vector.broadcast %54 : vector<32x1xf32> to vector<32x32xf32>
    %56 = arith.subf %5, %55 : vector<32x32xf32>
    %57 = arith.mulf %56, %56 : vector<32x32xf32>
    %cst_38 = arith.constant dense<0.000000e+00> : vector<32xf32>
    %58 = vector.multi_reduction <add>, %57, %cst_38 [1] : vector<32x32xf32> to vector<32xf32>
    %59 = vector.shape_cast %58 : vector<32xf32> to vector<32x1xf32>
    %cst_39 = arith.constant 3.200000e+01 : f32
    %60 = vector.broadcast %cst_39 : f32 to vector<32x1xf32>
    %61 = arith.divf %59, %60 : vector<32x1xf32>
    %62 = vector.broadcast %54 : vector<32x1xf32> to vector<32x32xf32>
    %63 = arith.subf %5, %62 : vector<32x32xf32>
    %cst_40 = arith.constant 9.99999997E-7 : f32
    %64 = vector.broadcast %cst_40 : f32 to vector<32x1xf32>
    %65 = arith.addf %61, %64 : vector<32x1xf32>
    %66 = math.rsqrt %65 : vector<32x1xf32>
    %67 = vector.broadcast %66 : vector<32x1xf32> to vector<32x32xf32>
    %68 = arith.mulf %63, %67 : vector<32x32xf32>
    %cst_41 = arith.constant 1.000000e+00 : f32
    %69 = vector.broadcast %cst_41 : f32 to vector<32x32xf32>
    %70 = arith.addf %69, %46 : vector<32x32xf32>
    %71 = arith.mulf %68, %70 : vector<32x32xf32>
    %72 = arith.addf %71, %45 : vector<32x32xf32>
    %c0_42 = arith.constant 0 : index
    %c0_43 = arith.constant 0 : index
    %c0_44 = arith.constant 0 : index
    %73 = vector.load %arg14[%c0_42, %c0_43, %c0_44] : memref<2x32x96xf32, #tpu.memory_space<vmem>>, vector<1x32x96xf32>
    %74 = vector.shape_cast %73 : vector<1x32x96xf32> to vector<32x96xf32>
    %c0_45 = arith.constant 0 : index
    %c0_46 = arith.constant 0 : index
    %c0_47 = arith.constant 0 : index
    %75 = vector.load %arg15[%c0_45, %c0_46, %c0_47] : memref<2x1x96xf32, #tpu.memory_space<vmem>>, vector<1x1x96xf32>
    %76 = vector.shape_cast %75 : vector<1x1x96xf32> to vector<1x96xf32>
    %cst_48 = arith.constant dense<0.000000e+00> : vector<32x96xf32>
    %77 = tpu.matmul %72, %74, %cst_48 {dimension_numbers = #tpu.dot_dimension_numbers<[1], [0], [0], [1], [0, 0, 1, 1], [], []>} : vector<32x32xf32>, vector<32x96xf32>, vector<32x96xf32> -> vector<32x96xf32>
    %78 = vector.broadcast %76 : vector<1x96xf32> to vector<32x96xf32>
    %79 = arith.addf %77, %78 : vector<32x96xf32>
    %80 = vector.shape_cast %79 : vector<32x96xf32> to vector<2x16x96xf32>
    %c0_49 = arith.constant 0 : index
    %c0_50 = arith.constant 0 : index
    %c0_51 = arith.constant 0 : index
    %81 = vector.load %arg16[%c0_49, %c0_50, %c0_51] : memref<2x32x32xf32, #tpu.memory_space<vmem>>, vector<1x32x32xf32>
    %82 = vector.shape_cast %81 : vector<1x32x32xf32> to vector<32x32xf32>
    %cst_52 = arith.constant 0.000000e+00 : f32
    %83 = vector.broadcast %cst_52 : f32 to vector<32x32xf32>
    %84 = vector.extract_strided_slice %80 {offsets = [0, 0, 0], sizes = [2, 16, 8], strides = [1, 1, 1]} : vector<2x16x96xf32> to vector<2x16x8xf32>
    %85 = vector.extract_strided_slice %80 {offsets = [0, 0, 32], sizes = [2, 16, 8], strides = [1, 1, 1]} : vector<2x16x96xf32> to vector<2x16x8xf32>
    %86 = vector.extract_strided_slice %80 {offsets = [0, 0, 64], sizes = [2, 16, 8], strides = [1, 1, 1]} : vector<2x16x96xf32> to vector<2x16x8xf32>
    "tpu.trace_start"() <{level = 10 : i32, message = "bld,bmd->blm"}> : () -> ()
    %cst_53 = arith.constant dense<0.000000e+00> : vector<2x16x16xf32>
    %87 = tpu.matmul %84, %85, %cst_53 {dimension_numbers = #tpu.dot_dimension_numbers<[2], [2], [1], [1], [0, 0, 0, 1, 1, 1], [0], [0]>} : vector<2x16x8xf32>, vector<2x16x8xf32>, vector<2x16x16xf32> -> vector<2x16x16xf32>
    "tpu.trace_stop"() : () -> ()
    %cst_54 = arith.constant 0.353553385 : f32
    %88 = vector.broadcast %cst_54 : f32 to vector<2x16x16xf32>
    %89 = arith.mulf %87, %88 : vector<2x16x16xf32>
    %cst_55 = arith.constant dense<0xFF800000> : vector<2x16xf32>
    %90 = vector.multi_reduction <maximumf>, %89, %cst_55 [2] : vector<2x16x16xf32> to vector<2x16xf32>
    %91 = vector.shape_cast %90 : vector<2x16xf32> to vector<2x16x1xf32>
    %92 = vector.broadcast %91 : vector<2x16x1xf32> to vector<2x16x16xf32>
    %93 = arith.subf %89, %92 : vector<2x16x16xf32>
    %94 = math.exp %93 : vector<2x16x16xf32>
    %cst_56 = arith.constant dense<0.000000e+00> : vector<2x16xf32>
    %95 = vector.multi_reduction <add>, %94, %cst_56 [2] : vector<2x16x16xf32> to vector<2x16xf32>
    %96 = vector.shape_cast %95 : vector<2x16xf32> to vector<2x16x1xf32>
    %97 = tpu.reciprocal %96 {approx = true} : vector<2x16x1xf32> -> vector<2x16x1xf32>
    %98 = vector.broadcast %97 : vector<2x16x1xf32> to vector<2x16x16xf32>
    %99 = arith.mulf %94, %98 : vector<2x16x16xf32>
    "tpu.trace_start"() <{level = 10 : i32, message = "blm,bmd->bld"}> : () -> ()
    %cst_57 = arith.constant dense<0.000000e+00> : vector<2x16x8xf32>
    %100 = tpu.matmul %99, %86, %cst_57 {dimension_numbers = #tpu.dot_dimension_numbers<[2], [1], [1], [2], [0, 0, 0, 1, 1, 2], [0], [0]>} : vector<2x16x16xf32>, vector<2x16x8xf32>, vector<2x16x8xf32> -> vector<2x16x8xf32>
    "tpu.trace_stop"() : () -> ()
    %101 = vector.shape_cast %100 : vector<2x16x8xf32> to vector<32x8xf32>
    %102 = vector.extract_strided_slice %82 {offsets = [0, 0], sizes = [8, 32], strides = [1, 1]} : vector<32x32xf32> to vector<8x32xf32>
    %cst_58 = arith.constant dense<0.000000e+00> : vector<32x32xf32>
    %103 = tpu.matmul %101, %102, %cst_58 {dimension_numbers = #tpu.dot_dimension_numbers<[1], [0], [0], [1], [0, 0, 1, 1], [], []>} : vector<32x8xf32>, vector<8x32xf32>, vector<32x32xf32> -> vector<32x32xf32>
    %104 = arith.addf %83, %103 : vector<32x32xf32>
    %105 = vector.extract_strided_slice %80 {offsets = [0, 0, 8], sizes = [2, 16, 8], strides = [1, 1, 1]} : vector<2x16x96xf32> to vector<2x16x8xf32>
    %106 = vector.extract_strided_slice %80 {offsets = [0, 0, 40], sizes = [2, 16, 8], strides = [1, 1, 1]} : vector<2x16x96xf32> to vector<2x16x8xf32>
    %107 = vector.extract_strided_slice %80 {offsets = [0, 0, 72], sizes = [2, 16, 8], strides = [1, 1, 1]} : vector<2x16x96xf32> to vector<2x16x8xf32>
    "tpu.trace_start"() <{level = 10 : i32, message = "bld,bmd->blm"}> : () -> ()
    %cst_59 = arith.constant dense<0.000000e+00> : vector<2x16x16xf32>
    %108 = tpu.matmul %105, %106, %cst_59 {dimension_numbers = #tpu.dot_dimension_numbers<[2], [2], [1], [1], [0, 0, 0, 1, 1, 1], [0], [0]>} : vector<2x16x8xf32>, vector<2x16x8xf32>, vector<2x16x16xf32> -> vector<2x16x16xf32>
    "tpu.trace_stop"() : () -> ()
    %cst_60 = arith.constant 0.353553385 : f32
    %109 = vector.broadcast %cst_60 : f32 to vector<2x16x16xf32>
    %110 = arith.mulf %108, %109 : vector<2x16x16xf32>
    %cst_61 = arith.constant dense<0xFF800000> : vector<2x16xf32>
    %111 = vector.multi_reduction <maximumf>, %110, %cst_61 [2] : vector<2x16x16xf32> to vector<2x16xf32>
    %112 = vector.shape_cast %111 : vector<2x16xf32> to vector<2x16x1xf32>
    %113 = vector.broadcast %112 : vector<2x16x1xf32> to vector<2x16x16xf32>
    %114 = arith.subf %110, %113 : vector<2x16x16xf32>
    %115 = math.exp %114 : vector<2x16x16xf32>
    %cst_62 = arith.constant dense<0.000000e+00> : vector<2x16xf32>
    %116 = vector.multi_reduction <add>, %115, %cst_62 [2] : vector<2x16x16xf32> to vector<2x16xf32>
    %117 = vector.shape_cast %116 : vector<2x16xf32> to vector<2x16x1xf32>
    %118 = tpu.reciprocal %117 {approx = true} : vector<2x16x1xf32> -> vector<2x16x1xf32>
    %119 = vector.broadcast %118 : vector<2x16x1xf32> to vector<2x16x16xf32>
    %120 = arith.mulf %115, %119 : vector<2x16x16xf32>
    "tpu.trace_start"() <{level = 10 : i32, message = "blm,bmd->bld"}> : () -> ()
    %cst_63 = arith.constant dense<0.000000e+00> : vector<2x16x8xf32>
    %121 = tpu.matmul %120, %107, %cst_63 {dimension_numbers = #tpu.dot_dimension_numbers<[2], [1], [1], [2], [0, 0, 0, 1, 1, 2], [0], [0]>} : vector<2x16x16xf32>, vector<2x16x8xf32>, vector<2x16x8xf32> -> vector<2x16x8xf32>
    "tpu.trace_stop"() : () -> ()
    %122 = vector.shape_cast %121 : vector<2x16x8xf32> to vector<32x8xf32>
    %123 = vector.extract_strided_slice %82 {offsets = [8, 0], sizes = [8, 32], strides = [1, 1]} : vector<32x32xf32> to vector<8x32xf32>
    %cst_64 = arith.constant dense<0.000000e+00> : vector<32x32xf32>
    %124 = tpu.matmul %122, %123, %cst_64 {dimension_numbers = #tpu.dot_dimension_numbers<[1], [0], [0], [1], [0, 0, 1, 1], [], []>} : vector<32x8xf32>, vector<8x32xf32>, vector<32x32xf32> -> vector<32x32xf32>
    %125 = arith.addf %104, %124 : vector<32x32xf32>
    %126 = vector.extract_strided_slice %80 {offsets = [0, 0, 16], sizes = [2, 16, 8], strides = [1, 1, 1]} : vector<2x16x96xf32> to vector<2x16x8xf32>
    %127 = vector.extract_strided_slice %80 {offsets = [0, 0, 48], sizes = [2, 16, 8], strides = [1, 1, 1]} : vector<2x16x96xf32> to vector<2x16x8xf32>
    %128 = vector.extract_strided_slice %80 {offsets = [0, 0, 80], sizes = [2, 16, 8], strides = [1, 1, 1]} : vector<2x16x96xf32> to vector<2x16x8xf32>
    "tpu.trace_start"() <{level = 10 : i32, message = "bld,bmd->blm"}> : () -> ()
    %cst_65 = arith.constant dense<0.000000e+00> : vector<2x16x16xf32>
    %129 = tpu.matmul %126, %127, %cst_65 {dimension_numbers = #tpu.dot_dimension_numbers<[2], [2], [1], [1], [0, 0, 0, 1, 1, 1], [0], [0]>} : vector<2x16x8xf32>, vector<2x16x8xf32>, vector<2x16x16xf32> -> vector<2x16x16xf32>
    "tpu.trace_stop"() : () -> ()
    %cst_66 = arith.constant 0.353553385 : f32
    %130 = vector.broadcast %cst_66 : f32 to vector<2x16x16xf32>
    %131 = arith.mulf %129, %130 : vector<2x16x16xf32>
    %cst_67 = arith.constant dense<0xFF800000> : vector<2x16xf32>
    %132 = vector.multi_reduction <maximumf>, %131, %cst_67 [2] : vector<2x16x16xf32> to vector<2x16xf32>
    %133 = vector.shape_cast %132 : vector<2x16xf32> to vector<2x16x1xf32>
    %134 = vector.broadcast %133 : vector<2x16x1xf32> to vector<2x16x16xf32>
    %135 = arith.subf %131, %134 : vector<2x16x16xf32>
    %136 = math.exp %135 : vector<2x16x16xf32>
    %cst_68 = arith.constant dense<0.000000e+00> : vector<2x16xf32>
    %137 = vector.multi_reduction <add>, %136, %cst_68 [2] : vector<2x16x16xf32> to vector<2x16xf32>
    %138 = vector.shape_cast %137 : vector<2x16xf32> to vector<2x16x1xf32>
    %139 = tpu.reciprocal %138 {approx = true} : vector<2x16x1xf32> -> vector<2x16x1xf32>
    %140 = vector.broadcast %139 : vector<2x16x1xf32> to vector<2x16x16xf32>
    %141 = arith.mulf %136, %140 : vector<2x16x16xf32>
    "tpu.trace_start"() <{level = 10 : i32, message = "blm,bmd->bld"}> : () -> ()
    %cst_69 = arith.constant dense<0.000000e+00> : vector<2x16x8xf32>
    %142 = tpu.matmul %141, %128, %cst_69 {dimension_numbers = #tpu.dot_dimension_numbers<[2], [1], [1], [2], [0, 0, 0, 1, 1, 2], [0], [0]>} : vector<2x16x16xf32>, vector<2x16x8xf32>, vector<2x16x8xf32> -> vector<2x16x8xf32>
    "tpu.trace_stop"() : () -> ()
    %143 = vector.shape_cast %142 : vector<2x16x8xf32> to vector<32x8xf32>
    %144 = vector.extract_strided_slice %82 {offsets = [16, 0], sizes = [8, 32], strides = [1, 1]} : vector<32x32xf32> to vector<8x32xf32>
    %cst_70 = arith.constant dense<0.000000e+00> : vector<32x32xf32>
    %145 = tpu.matmul %143, %144, %cst_70 {dimension_numbers = #tpu.dot_dimension_numbers<[1], [0], [0], [1], [0, 0, 1, 1], [], []>} : vector<32x8xf32>, vector<8x32xf32>, vector<32x32xf32> -> vector<32x32xf32>
    %146 = arith.addf %125, %145 : vector<32x32xf32>
    %147 = vector.extract_strided_slice %80 {offsets = [0, 0, 24], sizes = [2, 16, 8], strides = [1, 1, 1]} : vector<2x16x96xf32> to vector<2x16x8xf32>
    %148 = vector.extract_strided_slice %80 {offsets = [0, 0, 56], sizes = [2, 16, 8], strides = [1, 1, 1]} : vector<2x16x96xf32> to vector<2x16x8xf32>
    %149 = vector.extract_strided_slice %80 {offsets = [0, 0, 88], sizes = [2, 16, 8], strides = [1, 1, 1]} : vector<2x16x96xf32> to vector<2x16x8xf32>
    "tpu.trace_start"() <{level = 10 : i32, message = "bld,bmd->blm"}> : () -> ()
    %cst_71 = arith.constant dense<0.000000e+00> : vector<2x16x16xf32>
    %150 = tpu.matmul %147, %148, %cst_71 {dimension_numbers = #tpu.dot_dimension_numbers<[2], [2], [1], [1], [0, 0, 0, 1, 1, 1], [0], [0]>} : vector<2x16x8xf32>, vector<2x16x8xf32>, vector<2x16x16xf32> -> vector<2x16x16xf32>
    "tpu.trace_stop"() : () -> ()
    %cst_72 = arith.constant 0.353553385 : f32
    %151 = vector.broadcast %cst_72 : f32 to vector<2x16x16xf32>
    %152 = arith.mulf %150, %151 : vector<2x16x16xf32>
    %cst_73 = arith.constant dense<0xFF800000> : vector<2x16xf32>
    %153 = vector.multi_reduction <maximumf>, %152, %cst_73 [2] : vector<2x16x16xf32> to vector<2x16xf32>
    %154 = vector.shape_cast %153 : vector<2x16xf32> to vector<2x16x1xf32>
    %155 = vector.broadcast %154 : vector<2x16x1xf32> to vector<2x16x16xf32>
    %156 = arith.subf %152, %155 : vector<2x16x16xf32>
    %157 = math.exp %156 : vector<2x16x16xf32>
    %cst_74 = arith.constant dense<0.000000e+00> : vector<2x16xf32>
    %158 = vector.multi_reduction <add>, %157, %cst_74 [2] : vector<2x16x16xf32> to vector<2x16xf32>
    %159 = vector.shape_cast %158 : vector<2x16xf32> to vector<2x16x1xf32>
    %160 = tpu.reciprocal %159 {approx = true} : vector<2x16x1xf32> -> vector<2x16x1xf32>
    %161 = vector.broadcast %160 : vector<2x16x1xf32> to vector<2x16x16xf32>
    %162 = arith.mulf %157, %161 : vector<2x16x16xf32>
    "tpu.trace_start"() <{level = 10 : i32, message = "blm,bmd->bld"}> : () -> ()
    %cst_75 = arith.constant dense<0.000000e+00> : vector<2x16x8xf32>
    %163 = tpu.matmul %162, %149, %cst_75 {dimension_numbers = #tpu.dot_dimension_numbers<[2], [1], [1], [2], [0, 0, 0, 1, 1, 2], [0], [0]>} : vector<2x16x16xf32>, vector<2x16x8xf32>, vector<2x16x8xf32> -> vector<2x16x8xf32>
    "tpu.trace_stop"() : () -> ()
    %164 = vector.shape_cast %163 : vector<2x16x8xf32> to vector<32x8xf32>
    %165 = vector.extract_strided_slice %82 {offsets = [24, 0], sizes = [8, 32], strides = [1, 1]} : vector<32x32xf32> to vector<8x32xf32>
    %cst_76 = arith.constant dense<0.000000e+00> : vector<32x32xf32>
    %166 = tpu.matmul %164, %165, %cst_76 {dimension_numbers = #tpu.dot_dimension_numbers<[1], [0], [0], [1], [0, 0, 1, 1], [], []>} : vector<32x8xf32>, vector<8x32xf32>, vector<32x32xf32> -> vector<32x32xf32>
    %167 = arith.addf %146, %166 : vector<32x32xf32>
    %c0_77 = arith.constant 0 : index
    %c0_78 = arith.constant 0 : index
    %c0_79 = arith.constant 0 : index
    %168 = vector.load %arg17[%c0_77, %c0_78, %c0_79] : memref<2x1x32xf32, #tpu.memory_space<vmem>>, vector<1x1x32xf32>
    %169 = vector.shape_cast %168 : vector<1x1x32xf32> to vector<1x32xf32>
    %170 = vector.broadcast %169 : vector<1x32xf32> to vector<32x32xf32>
    %171 = arith.addf %167, %170 : vector<32x32xf32>
    %172 = arith.mulf %47, %171 : vector<32x32xf32>
    %173 = arith.addf %5, %172 : vector<32x32xf32>
    %cst_80 = arith.constant dense<0.000000e+00> : vector<32xf32>
    %174 = vector.multi_reduction <add>, %173, %cst_80 [1] : vector<32x32xf32> to vector<32xf32>
    %175 = vector.shape_cast %174 : vector<32xf32> to vector<32x1xf32>
    %cst_81 = arith.constant 3.200000e+01 : f32
    %176 = vector.broadcast %cst_81 : f32 to vector<32x1xf32>
    %177 = arith.divf %175, %176 : vector<32x1xf32>
    %178 = vector.broadcast %177 : vector<32x1xf32> to vector<32x32xf32>
    %179 = arith.subf %173, %178 : vector<32x32xf32>
    %180 = arith.mulf %179, %179 : vector<32x32xf32>
    %cst_82 = arith.constant dense<0.000000e+00> : vector<32xf32>
    %181 = vector.multi_reduction <add>, %180, %cst_82 [1] : vector<32x32xf32> to vector<32xf32>
    %182 = vector.shape_cast %181 : vector<32xf32> to vector<32x1xf32>
    %cst_83 = arith.constant 3.200000e+01 : f32
    %183 = vector.broadcast %cst_83 : f32 to vector<32x1xf32>
    %184 = arith.divf %182, %183 : vector<32x1xf32>
    %185 = vector.broadcast %177 : vector<32x1xf32> to vector<32x32xf32>
    %186 = arith.subf %173, %185 : vector<32x32xf32>
    %cst_84 = arith.constant 9.99999997E-7 : f32
    %187 = vector.broadcast %cst_84 : f32 to vector<32x1xf32>
    %188 = arith.addf %184, %187 : vector<32x1xf32>
    %189 = math.rsqrt %188 : vector<32x1xf32>
    %190 = vector.broadcast %189 : vector<32x1xf32> to vector<32x32xf32>
    %191 = arith.mulf %186, %190 : vector<32x32xf32>
    %cst_85 = arith.constant 1.000000e+00 : f32
    %192 = vector.broadcast %cst_85 : f32 to vector<32x32xf32>
    %193 = arith.addf %192, %49 : vector<32x32xf32>
    %194 = arith.mulf %191, %193 : vector<32x32xf32>
    %195 = arith.addf %194, %48 : vector<32x32xf32>
    %c0_86 = arith.constant 0 : index
    %c0_87 = arith.constant 0 : index
    %c0_88 = arith.constant 0 : index
    %196 = vector.load %arg18[%c0_86, %c0_87, %c0_88] : memref<2x32x128xf32, #tpu.memory_space<vmem>>, vector<1x32x128xf32>
    %197 = vector.shape_cast %196 : vector<1x32x128xf32> to vector<32x128xf32>
    %c0_89 = arith.constant 0 : index
    %c0_90 = arith.constant 0 : index
    %c0_91 = arith.constant 0 : index
    %198 = vector.load %arg19[%c0_89, %c0_90, %c0_91] : memref<2x1x128xf32, #tpu.memory_space<vmem>>, vector<1x1x128xf32>
    %199 = vector.shape_cast %198 : vector<1x1x128xf32> to vector<1x128xf32>
    %cst_92 = arith.constant dense<0.000000e+00> : vector<32x128xf32>
    %200 = tpu.matmul %195, %197, %cst_92 {dimension_numbers = #tpu.dot_dimension_numbers<[1], [0], [0], [1], [0, 0, 1, 1], [], []>} : vector<32x32xf32>, vector<32x128xf32>, vector<32x128xf32> -> vector<32x128xf32>
    %201 = vector.broadcast %199 : vector<1x128xf32> to vector<32x128xf32>
    %202 = arith.addf %200, %201 : vector<32x128xf32>
    %cst_93 = arith.constant 5.000000e-01 : f32
    %203 = vector.broadcast %cst_93 : f32 to vector<32x128xf32>
    %204 = arith.mulf %203, %202 : vector<32x128xf32>
    %cst_94 = arith.constant 4.471500e-02 : f32
    %205 = vector.broadcast %cst_94 : f32 to vector<32x128xf32>
    %206 = arith.mulf %205, %202 : vector<32x128xf32>
    %207 = arith.mulf %206, %202 : vector<32x128xf32>
    %208 = arith.mulf %207, %202 : vector<32x128xf32>
    %209 = arith.addf %202, %208 : vector<32x128xf32>
    %cst_95 = arith.constant 0.797884583 : f32
    %210 = vector.broadcast %cst_95 : f32 to vector<32x128xf32>
    %211 = arith.mulf %210, %209 : vector<32x128xf32>
    %212 = math.tanh %211 : vector<32x128xf32>
    %cst_96 = arith.constant 1.000000e+00 : f32
    %213 = vector.broadcast %cst_96 : f32 to vector<32x128xf32>
    %214 = arith.addf %213, %212 : vector<32x128xf32>
    %215 = arith.mulf %204, %214 : vector<32x128xf32>
    %c0_97 = arith.constant 0 : index
    %c0_98 = arith.constant 0 : index
    %c0_99 = arith.constant 0 : index
    %216 = vector.load %arg20[%c0_97, %c0_98, %c0_99] : memref<2x128x32xf32, #tpu.memory_space<vmem>>, vector<1x128x32xf32>
    %217 = vector.shape_cast %216 : vector<1x128x32xf32> to vector<128x32xf32>
    %c0_100 = arith.constant 0 : index
    %c0_101 = arith.constant 0 : index
    %c0_102 = arith.constant 0 : index
    %218 = vector.load %arg21[%c0_100, %c0_101, %c0_102] : memref<2x1x32xf32, #tpu.memory_space<vmem>>, vector<1x1x32xf32>
    %219 = vector.shape_cast %218 : vector<1x1x32xf32> to vector<1x32xf32>
    %cst_103 = arith.constant dense<0.000000e+00> : vector<32x32xf32>
    %220 = tpu.matmul %215, %217, %cst_103 {dimension_numbers = #tpu.dot_dimension_numbers<[1], [0], [0], [1], [0, 0, 1, 1], [], []>} : vector<32x128xf32>, vector<128x32xf32>, vector<32x32xf32> -> vector<32x32xf32>
    %221 = vector.broadcast %219 : vector<1x32xf32> to vector<32x32xf32>
    %222 = arith.addf %220, %221 : vector<32x32xf32>
    %223 = arith.mulf %50, %222 : vector<32x32xf32>
    %224 = arith.addf %173, %223 : vector<32x32xf32>
    %c1 = arith.constant 1 : index
    %c0_104 = arith.constant 0 : index
    %c0_105 = arith.constant 0 : index
    %225 = vector.load %arg12[%c1, %c0_104, %c0_105] : memref<2x32x192xf32, #tpu.memory_space<vmem>>, vector<1x32x192xf32>
    %226 = vector.shape_cast %225 : vector<1x32x192xf32> to vector<32x192xf32>
    %c1_106 = arith.constant 1 : index
    %c0_107 = arith.constant 0 : index
    %c0_108 = arith.constant 0 : index
    %227 = vector.load %arg13[%c1_106, %c0_107, %c0_108] : memref<2x1x192xf32, #tpu.memory_space<vmem>>, vector<1x1x192xf32>
    %228 = vector.shape_cast %227 : vector<1x1x192xf32> to vector<1x192xf32>
    %cst_109 = arith.constant dense<0.000000e+00> : vector<32x192xf32>
    %229 = tpu.matmul %37, %226, %cst_109 {dimension_numbers = #tpu.dot_dimension_numbers<[1], [0], [0], [1], [0, 0, 1, 1], [], []>} : vector<32x32xf32>, vector<32x192xf32>, vector<32x192xf32> -> vector<32x192xf32>
    %230 = vector.broadcast %228 : vector<1x192xf32> to vector<32x192xf32>
    %231 = arith.addf %229, %230 : vector<32x192xf32>
    %232 = vector.extract_strided_slice %231 {offsets = [0, 0], sizes = [32, 32], strides = [1, 1]} : vector<32x192xf32> to vector<32x32xf32>
    %233 = vector.extract_strided_slice %231 {offsets = [0, 32], sizes = [32, 32], strides = [1, 1]} : vector<32x192xf32> to vector<32x32xf32>
    %234 = vector.extract_strided_slice %231 {offsets = [0, 64], sizes = [32, 32], strides = [1, 1]} : vector<32x192xf32> to vector<32x32xf32>
    %235 = vector.extract_strided_slice %231 {offsets = [0, 96], sizes = [32, 32], strides = [1, 1]} : vector<32x192xf32> to vector<32x32xf32>
    %236 = vector.extract_strided_slice %231 {offsets = [0, 128], sizes = [32, 32], strides = [1, 1]} : vector<32x192xf32> to vector<32x32xf32>
    %237 = vector.extract_strided_slice %231 {offsets = [0, 160], sizes = [32, 32], strides = [1, 1]} : vector<32x192xf32> to vector<32x32xf32>
    %cst_110 = arith.constant dense<0.000000e+00> : vector<32xf32>
    %238 = vector.multi_reduction <add>, %224, %cst_110 [1] : vector<32x32xf32> to vector<32xf32>
    %239 = vector.shape_cast %238 : vector<32xf32> to vector<32x1xf32>
    %cst_111 = arith.constant 3.200000e+01 : f32
    %240 = vector.broadcast %cst_111 : f32 to vector<32x1xf32>
    %241 = arith.divf %239, %240 : vector<32x1xf32>
    %242 = vector.broadcast %241 : vector<32x1xf32> to vector<32x32xf32>
    %243 = arith.subf %224, %242 : vector<32x32xf32>
    %244 = arith.mulf %243, %243 : vector<32x32xf32>
    %cst_112 = arith.constant dense<0.000000e+00> : vector<32xf32>
    %245 = vector.multi_reduction <add>, %244, %cst_112 [1] : vector<32x32xf32> to vector<32xf32>
    %246 = vector.shape_cast %245 : vector<32xf32> to vector<32x1xf32>
    %cst_113 = arith.constant 3.200000e+01 : f32
    %247 = vector.broadcast %cst_113 : f32 to vector<32x1xf32>
    %248 = arith.divf %246, %247 : vector<32x1xf32>
    %249 = vector.broadcast %241 : vector<32x1xf32> to vector<32x32xf32>
    %250 = arith.subf %224, %249 : vector<32x32xf32>
    %cst_114 = arith.constant 9.99999997E-7 : f32
    %251 = vector.broadcast %cst_114 : f32 to vector<32x1xf32>
    %252 = arith.addf %248, %251 : vector<32x1xf32>
    %253 = math.rsqrt %252 : vector<32x1xf32>
    %254 = vector.broadcast %253 : vector<32x1xf32> to vector<32x32xf32>
    %255 = arith.mulf %250, %254 : vector<32x32xf32>
    %cst_115 = arith.constant 1.000000e+00 : f32
    %256 = vector.broadcast %cst_115 : f32 to vector<32x32xf32>
    %257 = arith.addf %256, %233 : vector<32x32xf32>
    %258 = arith.mulf %255, %257 : vector<32x32xf32>
    %259 = arith.addf %258, %232 : vector<32x32xf32>
    %c1_116 = arith.constant 1 : index
    %c0_117 = arith.constant 0 : index
    %c0_118 = arith.constant 0 : index
    %260 = vector.load %arg14[%c1_116, %c0_117, %c0_118] : memref<2x32x96xf32, #tpu.memory_space<vmem>>, vector<1x32x96xf32>
    %261 = vector.shape_cast %260 : vector<1x32x96xf32> to vector<32x96xf32>
    %c1_119 = arith.constant 1 : index
    %c0_120 = arith.constant 0 : index
    %c0_121 = arith.constant 0 : index
    %262 = vector.load %arg15[%c1_119, %c0_120, %c0_121] : memref<2x1x96xf32, #tpu.memory_space<vmem>>, vector<1x1x96xf32>
    %263 = vector.shape_cast %262 : vector<1x1x96xf32> to vector<1x96xf32>
    %cst_122 = arith.constant dense<0.000000e+00> : vector<32x96xf32>
    %264 = tpu.matmul %259, %261, %cst_122 {dimension_numbers = #tpu.dot_dimension_numbers<[1], [0], [0], [1], [0, 0, 1, 1], [], []>} : vector<32x32xf32>, vector<32x96xf32>, vector<32x96xf32> -> vector<32x96xf32>
    %265 = vector.broadcast %263 : vector<1x96xf32> to vector<32x96xf32>
    %266 = arith.addf %264, %265 : vector<32x96xf32>
    %267 = vector.shape_cast %266 : vector<32x96xf32> to vector<2x16x96xf32>
    %c1_123 = arith.constant 1 : index
    %c0_124 = arith.constant 0 : index
    %c0_125 = arith.constant 0 : index
    %268 = vector.load %arg16[%c1_123, %c0_124, %c0_125] : memref<2x32x32xf32, #tpu.memory_space<vmem>>, vector<1x32x32xf32>
    %269 = vector.shape_cast %268 : vector<1x32x32xf32> to vector<32x32xf32>
    %cst_126 = arith.constant 0.000000e+00 : f32
    %270 = vector.broadcast %cst_126 : f32 to vector<32x32xf32>
    %271 = vector.extract_strided_slice %267 {offsets = [0, 0, 0], sizes = [2, 16, 8], strides = [1, 1, 1]} : vector<2x16x96xf32> to vector<2x16x8xf32>
    %272 = vector.extract_strided_slice %267 {offsets = [0, 0, 32], sizes = [2, 16, 8], strides = [1, 1, 1]} : vector<2x16x96xf32> to vector<2x16x8xf32>
    %273 = vector.extract_strided_slice %267 {offsets = [0, 0, 64], sizes = [2, 16, 8], strides = [1, 1, 1]} : vector<2x16x96xf32> to vector<2x16x8xf32>
    "tpu.trace_start"() <{level = 10 : i32, message = "bld,bmd->blm"}> : () -> ()
    %cst_127 = arith.constant dense<0.000000e+00> : vector<2x16x16xf32>
    %274 = tpu.matmul %271, %272, %cst_127 {dimension_numbers = #tpu.dot_dimension_numbers<[2], [2], [1], [1], [0, 0, 0, 1, 1, 1], [0], [0]>} : vector<2x16x8xf32>, vector<2x16x8xf32>, vector<2x16x16xf32> -> vector<2x16x16xf32>
    "tpu.trace_stop"() : () -> ()
    %cst_128 = arith.constant 0.353553385 : f32
    %275 = vector.broadcast %cst_128 : f32 to vector<2x16x16xf32>
    %276 = arith.mulf %274, %275 : vector<2x16x16xf32>
    %cst_129 = arith.constant dense<0xFF800000> : vector<2x16xf32>
    %277 = vector.multi_reduction <maximumf>, %276, %cst_129 [2] : vector<2x16x16xf32> to vector<2x16xf32>
    %278 = vector.shape_cast %277 : vector<2x16xf32> to vector<2x16x1xf32>
    %279 = vector.broadcast %278 : vector<2x16x1xf32> to vector<2x16x16xf32>
    %280 = arith.subf %276, %279 : vector<2x16x16xf32>
    %281 = math.exp %280 : vector<2x16x16xf32>
    %cst_130 = arith.constant dense<0.000000e+00> : vector<2x16xf32>
    %282 = vector.multi_reduction <add>, %281, %cst_130 [2] : vector<2x16x16xf32> to vector<2x16xf32>
    %283 = vector.shape_cast %282 : vector<2x16xf32> to vector<2x16x1xf32>
    %284 = tpu.reciprocal %283 {approx = true} : vector<2x16x1xf32> -> vector<2x16x1xf32>
    %285 = vector.broadcast %284 : vector<2x16x1xf32> to vector<2x16x16xf32>
    %286 = arith.mulf %281, %285 : vector<2x16x16xf32>
    "tpu.trace_start"() <{level = 10 : i32, message = "blm,bmd->bld"}> : () -> ()
    %cst_131 = arith.constant dense<0.000000e+00> : vector<2x16x8xf32>
    %287 = tpu.matmul %286, %273, %cst_131 {dimension_numbers = #tpu.dot_dimension_numbers<[2], [1], [1], [2], [0, 0, 0, 1, 1, 2], [0], [0]>} : vector<2x16x16xf32>, vector<2x16x8xf32>, vector<2x16x8xf32> -> vector<2x16x8xf32>
    "tpu.trace_stop"() : () -> ()
    %288 = vector.shape_cast %287 : vector<2x16x8xf32> to vector<32x8xf32>
    %289 = vector.extract_strided_slice %269 {offsets = [0, 0], sizes = [8, 32], strides = [1, 1]} : vector<32x32xf32> to vector<8x32xf32>
    %cst_132 = arith.constant dense<0.000000e+00> : vector<32x32xf32>
    %290 = tpu.matmul %288, %289, %cst_132 {dimension_numbers = #tpu.dot_dimension_numbers<[1], [0], [0], [1], [0, 0, 1, 1], [], []>} : vector<32x8xf32>, vector<8x32xf32>, vector<32x32xf32> -> vector<32x32xf32>
    %291 = arith.addf %270, %290 : vector<32x32xf32>
    %292 = vector.extract_strided_slice %267 {offsets = [0, 0, 8], sizes = [2, 16, 8], strides = [1, 1, 1]} : vector<2x16x96xf32> to vector<2x16x8xf32>
    %293 = vector.extract_strided_slice %267 {offsets = [0, 0, 40], sizes = [2, 16, 8], strides = [1, 1, 1]} : vector<2x16x96xf32> to vector<2x16x8xf32>
    %294 = vector.extract_strided_slice %267 {offsets = [0, 0, 72], sizes = [2, 16, 8], strides = [1, 1, 1]} : vector<2x16x96xf32> to vector<2x16x8xf32>
    "tpu.trace_start"() <{level = 10 : i32, message = "bld,bmd->blm"}> : () -> ()
    %cst_133 = arith.constant dense<0.000000e+00> : vector<2x16x16xf32>
    %295 = tpu.matmul %292, %293, %cst_133 {dimension_numbers = #tpu.dot_dimension_numbers<[2], [2], [1], [1], [0, 0, 0, 1, 1, 1], [0], [0]>} : vector<2x16x8xf32>, vector<2x16x8xf32>, vector<2x16x16xf32> -> vector<2x16x16xf32>
    "tpu.trace_stop"() : () -> ()
    %cst_134 = arith.constant 0.353553385 : f32
    %296 = vector.broadcast %cst_134 : f32 to vector<2x16x16xf32>
    %297 = arith.mulf %295, %296 : vector<2x16x16xf32>
    %cst_135 = arith.constant dense<0xFF800000> : vector<2x16xf32>
    %298 = vector.multi_reduction <maximumf>, %297, %cst_135 [2] : vector<2x16x16xf32> to vector<2x16xf32>
    %299 = vector.shape_cast %298 : vector<2x16xf32> to vector<2x16x1xf32>
    %300 = vector.broadcast %299 : vector<2x16x1xf32> to vector<2x16x16xf32>
    %301 = arith.subf %297, %300 : vector<2x16x16xf32>
    %302 = math.exp %301 : vector<2x16x16xf32>
    %cst_136 = arith.constant dense<0.000000e+00> : vector<2x16xf32>
    %303 = vector.multi_reduction <add>, %302, %cst_136 [2] : vector<2x16x16xf32> to vector<2x16xf32>
    %304 = vector.shape_cast %303 : vector<2x16xf32> to vector<2x16x1xf32>
    %305 = tpu.reciprocal %304 {approx = true} : vector<2x16x1xf32> -> vector<2x16x1xf32>
    %306 = vector.broadcast %305 : vector<2x16x1xf32> to vector<2x16x16xf32>
    %307 = arith.mulf %302, %306 : vector<2x16x16xf32>
    "tpu.trace_start"() <{level = 10 : i32, message = "blm,bmd->bld"}> : () -> ()
    %cst_137 = arith.constant dense<0.000000e+00> : vector<2x16x8xf32>
    %308 = tpu.matmul %307, %294, %cst_137 {dimension_numbers = #tpu.dot_dimension_numbers<[2], [1], [1], [2], [0, 0, 0, 1, 1, 2], [0], [0]>} : vector<2x16x16xf32>, vector<2x16x8xf32>, vector<2x16x8xf32> -> vector<2x16x8xf32>
    "tpu.trace_stop"() : () -> ()
    %309 = vector.shape_cast %308 : vector<2x16x8xf32> to vector<32x8xf32>
    %310 = vector.extract_strided_slice %269 {offsets = [8, 0], sizes = [8, 32], strides = [1, 1]} : vector<32x32xf32> to vector<8x32xf32>
    %cst_138 = arith.constant dense<0.000000e+00> : vector<32x32xf32>
    %311 = tpu.matmul %309, %310, %cst_138 {dimension_numbers = #tpu.dot_dimension_numbers<[1], [0], [0], [1], [0, 0, 1, 1], [], []>} : vector<32x8xf32>, vector<8x32xf32>, vector<32x32xf32> -> vector<32x32xf32>
    %312 = arith.addf %291, %311 : vector<32x32xf32>
    %313 = vector.extract_strided_slice %267 {offsets = [0, 0, 16], sizes = [2, 16, 8], strides = [1, 1, 1]} : vector<2x16x96xf32> to vector<2x16x8xf32>
    %314 = vector.extract_strided_slice %267 {offsets = [0, 0, 48], sizes = [2, 16, 8], strides = [1, 1, 1]} : vector<2x16x96xf32> to vector<2x16x8xf32>
    %315 = vector.extract_strided_slice %267 {offsets = [0, 0, 80], sizes = [2, 16, 8], strides = [1, 1, 1]} : vector<2x16x96xf32> to vector<2x16x8xf32>
    "tpu.trace_start"() <{level = 10 : i32, message = "bld,bmd->blm"}> : () -> ()
    %cst_139 = arith.constant dense<0.000000e+00> : vector<2x16x16xf32>
    %316 = tpu.matmul %313, %314, %cst_139 {dimension_numbers = #tpu.dot_dimension_numbers<[2], [2], [1], [1], [0, 0, 0, 1, 1, 1], [0], [0]>} : vector<2x16x8xf32>, vector<2x16x8xf32>, vector<2x16x16xf32> -> vector<2x16x16xf32>
    "tpu.trace_stop"() : () -> ()
    %cst_140 = arith.constant 0.353553385 : f32
    %317 = vector.broadcast %cst_140 : f32 to vector<2x16x16xf32>
    %318 = arith.mulf %316, %317 : vector<2x16x16xf32>
    %cst_141 = arith.constant dense<0xFF800000> : vector<2x16xf32>
    %319 = vector.multi_reduction <maximumf>, %318, %cst_141 [2] : vector<2x16x16xf32> to vector<2x16xf32>
    %320 = vector.shape_cast %319 : vector<2x16xf32> to vector<2x16x1xf32>
    %321 = vector.broadcast %320 : vector<2x16x1xf32> to vector<2x16x16xf32>
    %322 = arith.subf %318, %321 : vector<2x16x16xf32>
    %323 = math.exp %322 : vector<2x16x16xf32>
    %cst_142 = arith.constant dense<0.000000e+00> : vector<2x16xf32>
    %324 = vector.multi_reduction <add>, %323, %cst_142 [2] : vector<2x16x16xf32> to vector<2x16xf32>
    %325 = vector.shape_cast %324 : vector<2x16xf32> to vector<2x16x1xf32>
    %326 = tpu.reciprocal %325 {approx = true} : vector<2x16x1xf32> -> vector<2x16x1xf32>
    %327 = vector.broadcast %326 : vector<2x16x1xf32> to vector<2x16x16xf32>
    %328 = arith.mulf %323, %327 : vector<2x16x16xf32>
    "tpu.trace_start"() <{level = 10 : i32, message = "blm,bmd->bld"}> : () -> ()
    %cst_143 = arith.constant dense<0.000000e+00> : vector<2x16x8xf32>
    %329 = tpu.matmul %328, %315, %cst_143 {dimension_numbers = #tpu.dot_dimension_numbers<[2], [1], [1], [2], [0, 0, 0, 1, 1, 2], [0], [0]>} : vector<2x16x16xf32>, vector<2x16x8xf32>, vector<2x16x8xf32> -> vector<2x16x8xf32>
    "tpu.trace_stop"() : () -> ()
    %330 = vector.shape_cast %329 : vector<2x16x8xf32> to vector<32x8xf32>
    %331 = vector.extract_strided_slice %269 {offsets = [16, 0], sizes = [8, 32], strides = [1, 1]} : vector<32x32xf32> to vector<8x32xf32>
    %cst_144 = arith.constant dense<0.000000e+00> : vector<32x32xf32>
    %332 = tpu.matmul %330, %331, %cst_144 {dimension_numbers = #tpu.dot_dimension_numbers<[1], [0], [0], [1], [0, 0, 1, 1], [], []>} : vector<32x8xf32>, vector<8x32xf32>, vector<32x32xf32> -> vector<32x32xf32>
    %333 = arith.addf %312, %332 : vector<32x32xf32>
    %334 = vector.extract_strided_slice %267 {offsets = [0, 0, 24], sizes = [2, 16, 8], strides = [1, 1, 1]} : vector<2x16x96xf32> to vector<2x16x8xf32>
    %335 = vector.extract_strided_slice %267 {offsets = [0, 0, 56], sizes = [2, 16, 8], strides = [1, 1, 1]} : vector<2x16x96xf32> to vector<2x16x8xf32>
    %336 = vector.extract_strided_slice %267 {offsets = [0, 0, 88], sizes = [2, 16, 8], strides = [1, 1, 1]} : vector<2x16x96xf32> to vector<2x16x8xf32>
    "tpu.trace_start"() <{level = 10 : i32, message = "bld,bmd->blm"}> : () -> ()
    %cst_145 = arith.constant dense<0.000000e+00> : vector<2x16x16xf32>
    %337 = tpu.matmul %334, %335, %cst_145 {dimension_numbers = #tpu.dot_dimension_numbers<[2], [2], [1], [1], [0, 0, 0, 1, 1, 1], [0], [0]>} : vector<2x16x8xf32>, vector<2x16x8xf32>, vector<2x16x16xf32> -> vector<2x16x16xf32>
    "tpu.trace_stop"() : () -> ()
    %cst_146 = arith.constant 0.353553385 : f32
    %338 = vector.broadcast %cst_146 : f32 to vector<2x16x16xf32>
    %339 = arith.mulf %337, %338 : vector<2x16x16xf32>
    %cst_147 = arith.constant dense<0xFF800000> : vector<2x16xf32>
    %340 = vector.multi_reduction <maximumf>, %339, %cst_147 [2] : vector<2x16x16xf32> to vector<2x16xf32>
    %341 = vector.shape_cast %340 : vector<2x16xf32> to vector<2x16x1xf32>
    %342 = vector.broadcast %341 : vector<2x16x1xf32> to vector<2x16x16xf32>
    %343 = arith.subf %339, %342 : vector<2x16x16xf32>
    %344 = math.exp %343 : vector<2x16x16xf32>
    %cst_148 = arith.constant dense<0.000000e+00> : vector<2x16xf32>
    %345 = vector.multi_reduction <add>, %344, %cst_148 [2] : vector<2x16x16xf32> to vector<2x16xf32>
    %346 = vector.shape_cast %345 : vector<2x16xf32> to vector<2x16x1xf32>
    %347 = tpu.reciprocal %346 {approx = true} : vector<2x16x1xf32> -> vector<2x16x1xf32>
    %348 = vector.broadcast %347 : vector<2x16x1xf32> to vector<2x16x16xf32>
    %349 = arith.mulf %344, %348 : vector<2x16x16xf32>
    "tpu.trace_start"() <{level = 10 : i32, message = "blm,bmd->bld"}> : () -> ()
    %cst_149 = arith.constant dense<0.000000e+00> : vector<2x16x8xf32>
    %350 = tpu.matmul %349, %336, %cst_149 {dimension_numbers = #tpu.dot_dimension_numbers<[2], [1], [1], [2], [0, 0, 0, 1, 1, 2], [0], [0]>} : vector<2x16x16xf32>, vector<2x16x8xf32>, vector<2x16x8xf32> -> vector<2x16x8xf32>
    "tpu.trace_stop"() : () -> ()
    %351 = vector.shape_cast %350 : vector<2x16x8xf32> to vector<32x8xf32>
    %352 = vector.extract_strided_slice %269 {offsets = [24, 0], sizes = [8, 32], strides = [1, 1]} : vector<32x32xf32> to vector<8x32xf32>
    %cst_150 = arith.constant dense<0.000000e+00> : vector<32x32xf32>
    %353 = tpu.matmul %351, %352, %cst_150 {dimension_numbers = #tpu.dot_dimension_numbers<[1], [0], [0], [1], [0, 0, 1, 1], [], []>} : vector<32x8xf32>, vector<8x32xf32>, vector<32x32xf32> -> vector<32x32xf32>
    %354 = arith.addf %333, %353 : vector<32x32xf32>
    %c1_151 = arith.constant 1 : index
    %c0_152 = arith.constant 0 : index
    %c0_153 = arith.constant 0 : index
    %355 = vector.load %arg17[%c1_151, %c0_152, %c0_153] : memref<2x1x32xf32, #tpu.memory_space<vmem>>, vector<1x1x32xf32>
    %356 = vector.shape_cast %355 : vector<1x1x32xf32> to vector<1x32xf32>
    %357 = vector.broadcast %356 : vector<1x32xf32> to vector<32x32xf32>
    %358 = arith.addf %354, %357 : vector<32x32xf32>
    %359 = arith.mulf %234, %358 : vector<32x32xf32>
    %360 = arith.addf %224, %359 : vector<32x32xf32>
    %cst_154 = arith.constant dense<0.000000e+00> : vector<32xf32>
    %361 = vector.multi_reduction <add>, %360, %cst_154 [1] : vector<32x32xf32> to vector<32xf32>
    %362 = vector.shape_cast %361 : vector<32xf32> to vector<32x1xf32>
    %cst_155 = arith.constant 3.200000e+01 : f32
    %363 = vector.broadcast %cst_155 : f32 to vector<32x1xf32>
    %364 = arith.divf %362, %363 : vector<32x1xf32>
    %365 = vector.broadcast %364 : vector<32x1xf32> to vector<32x32xf32>
    %366 = arith.subf %360, %365 : vector<32x32xf32>
    %367 = arith.mulf %366, %366 : vector<32x32xf32>
    %cst_156 = arith.constant dense<0.000000e+00> : vector<32xf32>
    %368 = vector.multi_reduction <add>, %367, %cst_156 [1] : vector<32x32xf32> to vector<32xf32>
    %369 = vector.shape_cast %368 : vector<32xf32> to vector<32x1xf32>
    %cst_157 = arith.constant 3.200000e+01 : f32
    %370 = vector.broadcast %cst_157 : f32 to vector<32x1xf32>
    %371 = arith.divf %369, %370 : vector<32x1xf32>
    %372 = vector.broadcast %364 : vector<32x1xf32> to vector<32x32xf32>
    %373 = arith.subf %360, %372 : vector<32x32xf32>
    %cst_158 = arith.constant 9.99999997E-7 : f32
    %374 = vector.broadcast %cst_158 : f32 to vector<32x1xf32>
    %375 = arith.addf %371, %374 : vector<32x1xf32>
    %376 = math.rsqrt %375 : vector<32x1xf32>
    %377 = vector.broadcast %376 : vector<32x1xf32> to vector<32x32xf32>
    %378 = arith.mulf %373, %377 : vector<32x32xf32>
    %cst_159 = arith.constant 1.000000e+00 : f32
    %379 = vector.broadcast %cst_159 : f32 to vector<32x32xf32>
    %380 = arith.addf %379, %236 : vector<32x32xf32>
    %381 = arith.mulf %378, %380 : vector<32x32xf32>
    %382 = arith.addf %381, %235 : vector<32x32xf32>
    %c1_160 = arith.constant 1 : index
    %c0_161 = arith.constant 0 : index
    %c0_162 = arith.constant 0 : index
    %383 = vector.load %arg18[%c1_160, %c0_161, %c0_162] : memref<2x32x128xf32, #tpu.memory_space<vmem>>, vector<1x32x128xf32>
    %384 = vector.shape_cast %383 : vector<1x32x128xf32> to vector<32x128xf32>
    %c1_163 = arith.constant 1 : index
    %c0_164 = arith.constant 0 : index
    %c0_165 = arith.constant 0 : index
    %385 = vector.load %arg19[%c1_163, %c0_164, %c0_165] : memref<2x1x128xf32, #tpu.memory_space<vmem>>, vector<1x1x128xf32>
    %386 = vector.shape_cast %385 : vector<1x1x128xf32> to vector<1x128xf32>
    %cst_166 = arith.constant dense<0.000000e+00> : vector<32x128xf32>
    %387 = tpu.matmul %382, %384, %cst_166 {dimension_numbers = #tpu.dot_dimension_numbers<[1], [0], [0], [1], [0, 0, 1, 1], [], []>} : vector<32x32xf32>, vector<32x128xf32>, vector<32x128xf32> -> vector<32x128xf32>
    %388 = vector.broadcast %386 : vector<1x128xf32> to vector<32x128xf32>
    %389 = arith.addf %387, %388 : vector<32x128xf32>
    %cst_167 = arith.constant 5.000000e-01 : f32
    %390 = vector.broadcast %cst_167 : f32 to vector<32x128xf32>
    %391 = arith.mulf %390, %389 : vector<32x128xf32>
    %cst_168 = arith.constant 4.471500e-02 : f32
    %392 = vector.broadcast %cst_168 : f32 to vector<32x128xf32>
    %393 = arith.mulf %392, %389 : vector<32x128xf32>
    %394 = arith.mulf %393, %389 : vector<32x128xf32>
    %395 = arith.mulf %394, %389 : vector<32x128xf32>
    %396 = arith.addf %389, %395 : vector<32x128xf32>
    %cst_169 = arith.constant 0.797884583 : f32
    %397 = vector.broadcast %cst_169 : f32 to vector<32x128xf32>
    %398 = arith.mulf %397, %396 : vector<32x128xf32>
    %399 = math.tanh %398 : vector<32x128xf32>
    %cst_170 = arith.constant 1.000000e+00 : f32
    %400 = vector.broadcast %cst_170 : f32 to vector<32x128xf32>
    %401 = arith.addf %400, %399 : vector<32x128xf32>
    %402 = arith.mulf %391, %401 : vector<32x128xf32>
    %c1_171 = arith.constant 1 : index
    %c0_172 = arith.constant 0 : index
    %c0_173 = arith.constant 0 : index
    %403 = vector.load %arg20[%c1_171, %c0_172, %c0_173] : memref<2x128x32xf32, #tpu.memory_space<vmem>>, vector<1x128x32xf32>
    %404 = vector.shape_cast %403 : vector<1x128x32xf32> to vector<128x32xf32>
    %c1_174 = arith.constant 1 : index
    %c0_175 = arith.constant 0 : index
    %c0_176 = arith.constant 0 : index
    %405 = vector.load %arg21[%c1_174, %c0_175, %c0_176] : memref<2x1x32xf32, #tpu.memory_space<vmem>>, vector<1x1x32xf32>
    %406 = vector.shape_cast %405 : vector<1x1x32xf32> to vector<1x32xf32>
    %cst_177 = arith.constant dense<0.000000e+00> : vector<32x32xf32>
    %407 = tpu.matmul %402, %404, %cst_177 {dimension_numbers = #tpu.dot_dimension_numbers<[1], [0], [0], [1], [0, 0, 1, 1], [], []>} : vector<32x128xf32>, vector<128x32xf32>, vector<32x32xf32> -> vector<32x32xf32>
    %408 = vector.broadcast %406 : vector<1x32xf32> to vector<32x32xf32>
    %409 = arith.addf %407, %408 : vector<32x32xf32>
    %410 = arith.mulf %237, %409 : vector<32x32xf32>
    %411 = arith.addf %360, %410 : vector<32x32xf32>
    %cst_178 = arith.constant dense<0.000000e+00> : vector<32xf32>
    %412 = vector.multi_reduction <add>, %411, %cst_178 [1] : vector<32x32xf32> to vector<32xf32>
    %413 = vector.shape_cast %412 : vector<32xf32> to vector<32x1xf32>
    %cst_179 = arith.constant 3.200000e+01 : f32
    %414 = vector.broadcast %cst_179 : f32 to vector<32x1xf32>
    %415 = arith.divf %413, %414 : vector<32x1xf32>
    %416 = vector.broadcast %415 : vector<32x1xf32> to vector<32x32xf32>
    %417 = arith.subf %411, %416 : vector<32x32xf32>
    %418 = arith.mulf %417, %417 : vector<32x32xf32>
    %cst_180 = arith.constant dense<0.000000e+00> : vector<32xf32>
    %419 = vector.multi_reduction <add>, %418, %cst_180 [1] : vector<32x32xf32> to vector<32xf32>
    %420 = vector.shape_cast %419 : vector<32xf32> to vector<32x1xf32>
    %cst_181 = arith.constant 3.200000e+01 : f32
    %421 = vector.broadcast %cst_181 : f32 to vector<32x1xf32>
    %422 = arith.divf %420, %421 : vector<32x1xf32>
    %423 = vector.broadcast %415 : vector<32x1xf32> to vector<32x32xf32>
    %424 = arith.subf %411, %423 : vector<32x32xf32>
    %cst_182 = arith.constant 9.99999974E-6 : f32
    %425 = vector.broadcast %cst_182 : f32 to vector<32x1xf32>
    %426 = arith.addf %422, %425 : vector<32x1xf32>
    %427 = math.rsqrt %426 : vector<32x1xf32>
    %428 = vector.broadcast %427 : vector<32x1xf32> to vector<32x32xf32>
    %429 = arith.mulf %424, %428 : vector<32x32xf32>
    %c0_183 = arith.constant 0 : index
    %c0_184 = arith.constant 0 : index
    %430 = vector.load %arg22[%c0_183, %c0_184] : memref<1x32xf32, #tpu.memory_space<vmem>>, vector<1x32xf32>
    %431 = vector.broadcast %430 : vector<1x32xf32> to vector<32x32xf32>
    %432 = arith.mulf %429, %431 : vector<32x32xf32>
    %c0_185 = arith.constant 0 : index
    %c0_186 = arith.constant 0 : index
    %433 = vector.load %arg23[%c0_185, %c0_186] : memref<1x32xf32, #tpu.memory_space<vmem>>, vector<1x32xf32>
    %434 = vector.broadcast %433 : vector<1x32xf32> to vector<32x32xf32>
    %435 = arith.addf %432, %434 : vector<32x32xf32>
    %436 = vector.shape_cast %435 : vector<32x32xf32> to vector<2x16x32xf32>
    %c0_187 = arith.constant 0 : index
    %c0_188 = arith.constant 0 : index
    %437 = vector.load %arg24[%c0_187, %c0_188] : memref<4x32xf32, #tpu.memory_space<vmem>>, vector<4x32xf32>
    %c0_189 = arith.constant 0 : index
    %c0_190 = arith.constant 0 : index
    %438 = vector.load %arg25[%c0_189, %c0_190] : memref<4x1xf32, #tpu.memory_space<vmem>>, vector<4x1xf32>
    %439 = vector.extract_strided_slice %436 {offsets = [0, 0, 0], sizes = [1, 16, 32], strides = [1, 1, 1]} : vector<2x16x32xf32> to vector<1x16x32xf32>
    %440 = vector.shape_cast %439 : vector<1x16x32xf32> to vector<16x32xf32>
    %cst_191 = arith.constant dense<0.000000e+00> : vector<4x16xf32>
    %441 = tpu.matmul %437, %440, %cst_191 {dimension_numbers = #tpu.dot_dimension_numbers<[1], [1], [0], [0], [0, 0, 1, 0], [], []>} : vector<4x32xf32>, vector<16x32xf32>, vector<4x16xf32> -> vector<4x16xf32>
    %442 = vector.broadcast %438 : vector<4x1xf32> to vector<4x16xf32>
    %443 = arith.addf %441, %442 : vector<4x16xf32>
    %c0_192 = arith.constant 0 : index
    %c0_193 = arith.constant 0 : index
    %c0_194 = arith.constant 0 : index
    %444 = vector.load %arg26[%c0_192, %c0_193, %c0_194] : memref<2x4x16xf32, #tpu.memory_space<vmem>>, vector<1x4x16xf32>
    %445 = vector.shape_cast %444 : vector<1x4x16xf32> to vector<4x16xf32>
    %446 = vector.shape_cast %443 : vector<4x16xf32> to vector<1x4x16xf32>
    tpu.vector_store %arg26[%c0_192, %c0_193, %c0_194], %446 {strides = array<i32>} : memref<2x4x16xf32, #tpu.memory_space<vmem>>, vector<1x4x16xf32>,
    %447 = vector.extract_strided_slice %436 {offsets = [1, 0, 0], sizes = [1, 16, 32], strides = [1, 1, 1]} : vector<2x16x32xf32> to vector<1x16x32xf32>
    %448 = vector.shape_cast %447 : vector<1x16x32xf32> to vector<16x32xf32>
    %cst_195 = arith.constant dense<0.000000e+00> : vector<4x16xf32>
    %449 = tpu.matmul %437, %448, %cst_195 {dimension_numbers = #tpu.dot_dimension_numbers<[1], [1], [0], [0], [0, 0, 1, 0], [], []>} : vector<4x32xf32>, vector<16x32xf32>, vector<4x16xf32> -> vector<4x16xf32>
    %450 = vector.broadcast %438 : vector<4x1xf32> to vector<4x16xf32>
    %451 = arith.addf %449, %450 : vector<4x16xf32>
    %c1_196 = arith.constant 1 : index
    %c0_197 = arith.constant 0 : index
    %c0_198 = arith.constant 0 : index
    %452 = vector.load %arg26[%c1_196, %c0_197, %c0_198] : memref<2x4x16xf32, #tpu.memory_space<vmem>>, vector<1x4x16xf32>
    %453 = vector.shape_cast %452 : vector<1x4x16xf32> to vector<4x16xf32>
    %454 = vector.shape_cast %451 : vector<4x16xf32> to vector<1x4x16xf32>
    tpu.vector_store %arg26[%c1_196, %c0_197, %c0_198], %454 {strides = array<i32>} : memref<2x4x16xf32, #tpu.memory_space<vmem>>, vector<1x4x16xf32>,
    return
  }
}

</mosaic_0001>

<llo_original>
// kernel: tpu_custom_call.1
$region0: #{tpu_custom_call.1}
  #allocation0 [shape = 'u32[]', space=smem, size = 0x4, offset = 0x4, fixed_abs, tag = 'smem constant byte address 0x4 - core index']
  #allocation1 [shape = 'u32[72,128]{1,0:T(1,128)}', space=vmem, size = 0x9000, scoped, tag = 'internal scratch']
  %s0 = inlined_call_operand.vmem [shape: f32[32,4], index: 0, kind: input, shape index: {}]
  %s1 = inlined_call_operand.vmem [shape: f32[2,256], index: 1, kind: input, shape index: {}]
  %s2 = inlined_call_operand.vmem [shape: f32[2,32], index: 2, kind: input, shape index: {}]
  %s3 = inlined_call_operand.vmem [shape: f32[32,2], index: 3, kind: input, shape index: {}]
  %s4 = inlined_call_operand.vmem [shape: f32[4,32], index: 4, kind: input, shape index: {}]
  %s5 = inlined_call_operand.vmem [shape: f32[1,32], index: 5, kind: input, shape index: {}]
  %s6 = inlined_call_operand.vmem [shape: f32[256,32], index: 6, kind: input, shape index: {}]
  %s7 = inlined_call_operand.vmem [shape: f32[1,32], index: 7, kind: input, shape index: {}]
  %s8 = inlined_call_operand.vmem [shape: f32[32,32], index: 8, kind: input, shape index: {}]
  %s9 = inlined_call_operand.vmem [shape: f32[1,32], index: 9, kind: input, shape index: {}]
  %s10 = inlined_call_operand.vmem [shape: f32[32,32], index: 10, kind: input, shape index: {}]
  %s11 = inlined_call_operand.vmem [shape: f32[1,32], index: 11, kind: input, shape index: {}]
  %s12 = inlined_call_operand.vmem [shape: f32[2,32,192], index: 12, kind: input, shape index: {}]
  %s13 = inlined_call_operand.vmem [shape: f32[2,1,192], index: 13, kind: input, shape index: {}]
  %s14 = inlined_call_operand.vmem [shape: f32[2,32,96], index: 14, kind: input, shape index: {}]
  %s15 = inlined_call_operand.vmem [shape: f32[2,1,96], index: 15, kind: input, shape index: {}]
  %s16 = inlined_call_operand.vmem [shape: f32[2,32,32], index: 16, kind: input, shape index: {}]
  %s17 = inlined_call_operand.vmem [shape: f32[2,1,32], index: 17, kind: input, shape index: {}]
  %s18 = inlined_call_operand.vmem [shape: f32[2,32,128], index: 18, kind: input, shape index: {}]
  %s19 = inlined_call_operand.vmem [shape: f32[2,1,128], index: 19, kind: input, shape index: {}]
  %s20 = inlined_call_operand.vmem [shape: f32[2,128,32], index: 20, kind: input, shape index: {}]
  %s21 = inlined_call_operand.vmem [shape: f32[2,1,32], index: 21, kind: input, shape index: {}]
  %s22 = inlined_call_operand.vmem [shape: f32[1,32], index: 22, kind: input, shape index: {}]
  %s23 = inlined_call_operand.vmem [shape: f32[1,32], index: 23, kind: input, shape index: {}]
  %s24 = inlined_call_operand.vmem [shape: f32[4,32], index: 24, kind: input, shape index: {}]
  %s25 = inlined_call_operand.vmem [shape: f32[4,1], index: 25, kind: input, shape index: {}]
  %s26 = inlined_call_operand.hbm [shape: f32[2,4,16], index: 26, kind: output, shape index: {}]
  %s27 = sld [smem:[#allocation0]]
  $region114: #{tpu_custom_call.1} parent=0
    _
  %s29 = ssub.s32 1, %s27
  %s30 = scalar_select 0, %s29, %s27
  $region1: #{tpu_custom_call.1} parent=0
    #allocation2 [shape = 'u8[4096]{0}', space=vmem, size = 0x1000, scoped, tag = 'output window, operand 0, single buffered']
    #allocation3 [shape = 's32[1]{0}', space=sflag, size = 0x4, scoped, tag = 'scoped memory for tpu_custom_call.1']
    %31 = vsyncpa [#allocation3], 0
    // Predicated region
    $region2: #{tpu_custom_call.1} parent=1 // pred_check
      _
    $region3: #{tpu_custom_call.1} parent=1 // pred_check_branch
      %33 = sbr.rel (0) target = $region5
    $region4: #{tpu_custom_call.1} parent=1 // pred_region
      _
    $region5: #{tpu_custom_call.1} parent=1 // pred_fallthru
      _
    // Predicated region
    $region6: #{tpu_custom_call.1} parent=1 // pred_check
      _
    $region7: #{tpu_custom_call.1} parent=1 // pred_check_branch
      %35 = sbr.rel (0) target = $region9
    $region8: #{tpu_custom_call.1} parent=1 // pred_region
      _
    $region9: #{tpu_custom_call.1} parent=1 // pred_fallthru
      _
    // Predicated region
    $region10: #{tpu_custom_call.1} parent=1 // pred_check
      _
    $region11: #{tpu_custom_call.1} parent=1 // pred_check_branch
      %37 = sbr.rel (0) target = $region13
    $region12: #{tpu_custom_call.1} parent=1 // pred_region
      _
    $region13: #{tpu_custom_call.1} parent=1 // pred_fallthru
      _
    // Predicated region
    $region14: #{tpu_custom_call.1} parent=1 // pred_check
      _
    $region15: #{tpu_custom_call.1} parent=1 // pred_check_branch
      %39 = sbr.rel (0) target = $region17
    $region16: #{tpu_custom_call.1} parent=1 // pred_region
      _
    $region17: #{tpu_custom_call.1} parent=1 // pred_fallthru
      _
    // Predicated region
    $region18: #{tpu_custom_call.1} parent=1 // pred_check
      _
    $region19: #{tpu_custom_call.1} parent=1 // pred_check_branch
      %41 = sbr.rel (0) target = $region21
    $region20: #{tpu_custom_call.1} parent=1 // pred_region
      _
    $region21: #{tpu_custom_call.1} parent=1 // pred_fallthru
      _
    // Predicated region
    $region22: #{tpu_custom_call.1} parent=1 // pred_check
      _
    $region23: #{tpu_custom_call.1} parent=1 // pred_check_branch
      %43 = sbr.rel (0) target = $region25
    $region24: #{tpu_custom_call.1} parent=1 // pred_region
      _
    $region25: #{tpu_custom_call.1} parent=1 // pred_fallthru
      _
    // Predicated region
    $region26: #{tpu_custom_call.1} parent=1 // pred_check
      _
    $region27: #{tpu_custom_call.1} parent=1 // pred_check_branch
      %45 = sbr.rel (0) target = $region29
    $region28: #{tpu_custom_call.1} parent=1 // pred_region
      _
    $region29: #{tpu_custom_call.1} parent=1 // pred_fallthru
      _
    // Predicated region
    $region30: #{tpu_custom_call.1} parent=1 // pred_check
      _
    $region31: #{tpu_custom_call.1} parent=1 // pred_check_branch
      %47 = sbr.rel (0) target = $region33
    $region32: #{tpu_custom_call.1} parent=1 // pred_region
      _
    $region33: #{tpu_custom_call.1} parent=1 // pred_fallthru
      _
    // Predicated region
    $region34: #{tpu_custom_call.1} parent=1 // pred_check
      _
    $region35: #{tpu_custom_call.1} parent=1 // pred_check_branch
      %49 = sbr.rel (0) target = $region37
    $region36: #{tpu_custom_call.1} parent=1 // pred_region
      _
    $region37: #{tpu_custom_call.1} parent=1 // pred_fallthru
      _
    // Predicated region
    $region38: #{tpu_custom_call.1} parent=1 // pred_check
      _
    $region39: #{tpu_custom_call.1} parent=1 // pred_check_branch
      %51 = sbr.rel (0) target = $region41
    $region40: #{tpu_custom_call.1} parent=1 // pred_region
      _
    $region41: #{tpu_custom_call.1} parent=1 // pred_fallthru
      _
    // Predicated region
    $region42: #{tpu_custom_call.1} parent=1 // pred_check
      _
    $region43: #{tpu_custom_call.1} parent=1 // pred_check_branch
      %53 = sbr.rel (0) target = $region45
    $region44: #{tpu_custom_call.1} parent=1 // pred_region
      _
    $region45: #{tpu_custom_call.1} parent=1 // pred_fallthru
      _
    // Predicated region
    $region46: #{tpu_custom_call.1} parent=1 // pred_check
      _
    $region47: #{tpu_custom_call.1} parent=1 // pred_check_branch
      %55 = sbr.rel (0) target = $region49
    $region48: #{tpu_custom_call.1} parent=1 // pred_region
      _
    $region49: #{tpu_custom_call.1} parent=1 // pred_fallthru
      _
    // Predicated region
    $region50: #{tpu_custom_call.1} parent=1 // pred_check
      _
    $region51: #{tpu_custom_call.1} parent=1 // pred_check_branch
      %57 = sbr.rel (0) target = $region53
    $region52: #{tpu_custom_call.1} parent=1 // pred_region
      _
    $region53: #{tpu_custom_call.1} parent=1 // pred_fallthru
      _
    // Predicated region
    $region54: #{tpu_custom_call.1} parent=1 // pred_check
      _
    $region55: #{tpu_custom_call.1} parent=1 // pred_check_branch
      %59 = sbr.rel (0) target = $region57
    $region56: #{tpu_custom_call.1} parent=1 // pred_region
      _
    $region57: #{tpu_custom_call.1} parent=1 // pred_fallthru
      _
    // Predicated region
    $region58: #{tpu_custom_call.1} parent=1 // pred_check
      _
    $region59: #{tpu_custom_call.1} parent=1 // pred_check_branch
      %61 = sbr.rel (0) target = $region61
    $region60: #{tpu_custom_call.1} parent=1 // pred_region
      _
    $region61: #{tpu_custom_call.1} parent=1 // pred_fallthru
      _
    // Predicated region
    $region62: #{tpu_custom_call.1} parent=1 // pred_check
      _
    $region63: #{tpu_custom_call.1} parent=1 // pred_check_branch
      %63 = sbr.rel (0) target = $region65
    $region64: #{tpu_custom_call.1} parent=1 // pred_region
      _
    $region65: #{tpu_custom_call.1} parent=1 // pred_fallthru
      _
    // Predicated region
    $region66: #{tpu_custom_call.1} parent=1 // pred_check
      _
    $region67: #{tpu_custom_call.1} parent=1 // pred_check_branch
      %65 = sbr.rel (0) target = $region69
    $region68: #{tpu_custom_call.1} parent=1 // pred_region
      _
    $region69: #{tpu_custom_call.1} parent=1 // pred_fallthru
      _
    // Predicated region
    $region70: #{tpu_custom_call.1} parent=1 // pred_check
      _
    $region71: #{tpu_custom_call.1} parent=1 // pred_check_branch
      %67 = sbr.rel (0) target = $region73
    $region72: #{tpu_custom_call.1} parent=1 // pred_region
      _
    $region73: #{tpu_custom_call.1} parent=1 // pred_fallthru
      _
    // Predicated region
    $region74: #{tpu_custom_call.1} parent=1 // pred_check
      _
    $region75: #{tpu_custom_call.1} parent=1 // pred_check_branch
      %69 = sbr.rel (0) target = $region77
    $region76: #{tpu_custom_call.1} parent=1 // pred_region
      _
    $region77: #{tpu_custom_call.1} parent=1 // pred_fallthru
      _
    // Predicated region
    $region78: #{tpu_custom_call.1} parent=1 // pred_check
      _
    $region79: #{tpu_custom_call.1} parent=1 // pred_check_branch
      %71 = sbr.rel (0) target = $region81
    $region80: #{tpu_custom_call.1} parent=1 // pred_region
      _
    $region81: #{tpu_custom_call.1} parent=1 // pred_fallthru
      _
    // Predicated region
    $region82: #{tpu_custom_call.1} parent=1 // pred_check
      _
    $region83: #{tpu_custom_call.1} parent=1 // pred_check_branch
      %73 = sbr.rel (0) target = $region85
    $region84: #{tpu_custom_call.1} parent=1 // pred_region
      _
    $region85: #{tpu_custom_call.1} parent=1 // pred_fallthru
      _
    // Predicated region
    $region86: #{tpu_custom_call.1} parent=1 // pred_check
      _
    $region87: #{tpu_custom_call.1} parent=1 // pred_check_branch
      %75 = sbr.rel (0) target = $region89
    $region88: #{tpu_custom_call.1} parent=1 // pred_region
      _
    $region89: #{tpu_custom_call.1} parent=1 // pred_fallthru
      _
    // Predicated region
    $region90: #{tpu_custom_call.1} parent=1 // pred_check
      _
    $region91: #{tpu_custom_call.1} parent=1 // pred_check_branch
      %77 = sbr.rel (0) target = $region93
    $region92: #{tpu_custom_call.1} parent=1 // pred_region
      _
    $region93: #{tpu_custom_call.1} parent=1 // pred_fallthru
      _
    // Predicated region
    $region94: #{tpu_custom_call.1} parent=1 // pred_check
      _
    $region95: #{tpu_custom_call.1} parent=1 // pred_check_branch
      %79 = sbr.rel (0) target = $region97
    $region96: #{tpu_custom_call.1} parent=1 // pred_region
      _
    $region97: #{tpu_custom_call.1} parent=1 // pred_fallthru
      _
    // Predicated region
    $region98: #{tpu_custom_call.1} parent=1 // pred_check
      _
    $region99: #{tpu_custom_call.1} parent=1 // pred_check_branch
      %81 = sbr.rel (0) target = $region101
    $region100: #{tpu_custom_call.1} parent=1 // pred_region
      _
    $region101: #{tpu_custom_call.1} parent=1 // pred_fallthru
      _
    // Predicated region
    $region102: #{tpu_custom_call.1} parent=1 // pred_check
      _
    $region103: #{tpu_custom_call.1} parent=1 // pred_check_branch
      %83 = sbr.rel (0) target = $region105
    $region104: #{tpu_custom_call.1} parent=1 // pred_region
      _
    $region105: #{tpu_custom_call.1} parent=1 // pred_fallthru
      _
    %v84 = vld [vmem:[%s0] sm:$0xff]
    %v85 = vld [vmem:[%s0 + $0x8] sm:$0xff]
    %v86 = vld [vmem:[%s0 + $0x10] sm:$0xff]
    %v87 = vld [vmem:[%s0 + $0x18] sm:$0xff]
    %v88 = vld [vmem:[%s4] sm:$0xf]
    %v89 = vld [vmem:[%s5] sm:$0x1]
    %v91 = vperm.slane %v89, 0
    %vm93 = vcmask 31744
    %v95 = vsel %vm93, %v84, 0
    %v98 = vsel %vm93, %v85, 0
    %v101 = vsel %vm93, %v86, 0
    %v104 = vsel %vm93, %v87, 0
    %vm106 = vcmask 1043456
    %v108 = vsel %vm106, %v88, 0
    %110 = vmatpush.msra.mxu0 0.0
    %111 = vmatpush.msra.mxu0 0.0
    %112 = vmatpush.msra.mxu0 0.0
    %113 = vmatpush.msra.mxu0 0.0
    %114 = vmatpush.msra.mxu0 0.0
    %115 = vmatpush.msra.mxu0 0.0
    %116 = vmatpush.msra.mxu0 0.0
    %117 = vmatpush.msra.mxu0 0.0
    %118 = vmatpush.msra.mxu0 0.0
    %119 = vmatpush.msra.mxu0 0.0
    %120 = vmatpush.msra.mxu0 0.0
    %121 = vmatpush.msra.mxu0 0.0
    %122 = vmatpush.msra.mxu0 0.0
    %123 = vmatpush.msra.mxu0 0.0
    %124 = vmatpush.msra.mxu0 0.0
    %125 = vmatpush.msra.mxu0 %v108
    %126 = vmatmul.f32.gmra.mxu0 %v95
    %v127 = vpop.f32.mrf.mxu0
    %v128 = vadd.f32 %v91, %v127
    %129 = vmatmul.f32.gmra.mxu0 %v98
    %v130 = vpop.f32.mrf.mxu0
    %v131 = vadd.f32 %v91, %v130
    %132 = vmatmul.f32.gmra.mxu0 %v101
    %v133 = vpop.f32.mrf.mxu0
    %v134 = vadd.f32 %v91, %v133
    %135 = vmatmul.f32.gmra.mxu0 %v104
    %v136 = vpop.f32.mrf.mxu0
    %v137 = vadd.f32 %v91, %v136
    %138 = vdwg.mxu0
    %v139 = vld [vmem:[%s1] sm:$0xf]
    %v140 = vld [vmem:[%s6] sm:$0xff]
    %v141 = vld [vmem:[%s6 + $0x8] sm:$0xff]
    %v142 = vld [vmem:[%s6 + $0x10] sm:$0xff]
    %v143 = vld [vmem:[%s6 + $0x18] sm:$0xff]
    %v144 = vld [vmem:[%s6 + $0x20] sm:$0xff]
    %v145 = vld [vmem:[%s6 + $0x28] sm:$0xff]
    %v146 = vld [vmem:[%s6 + $0x30] sm:$0xff]
    %v147 = vld [vmem:[%s6 + $0x38] sm:$0xff]
    %v148 = vld [vmem:[%s6 + $0x40] sm:$0xff]
    %v149 = vld [vmem:[%s6 + $0x48] sm:$0xff]
    %v150 = vld [vmem:[%s6 + $0x50] sm:$0xff]
    %v151 = vld [vmem:[%s6 + $0x58] sm:$0xff]
    %v152 = vld [vmem:[%s6 + $0x60] sm:$0xff]
    %v153 = vld [vmem:[%s6 + $0x68] sm:$0xff]
    %v154 = vld [vmem:[%s6 + $0x70] sm:$0xff]
    %v155 = vld [vmem:[%s6 + $0x78] sm:$0xff]
    %v156 = vld [vmem:[%s6 + $0x80] sm:$0xff]
    %v157 = vld [vmem:[%s6 + $0x88] sm:$0xff]
    %v158 = vld [vmem:[%s6 + $0x90] sm:$0xff]
    %v159 = vld [vmem:[%s6 + $0x98] sm:$0xff]
    %v160 = vld [vmem:[%s6 + $0xa0] sm:$0xff]
    %v161 = vld [vmem:[%s6 + $0xa8] sm:$0xff]
    %v162 = vld [vmem:[%s6 + $0xb0] sm:$0xff]
    %v163 = vld [vmem:[%s6 + $0xb8] sm:$0xff]
    %v164 = vld [vmem:[%s6 + $0xc0] sm:$0xff]
    %v165 = vld [vmem:[%s6 + $0xc8] sm:$0xff]
    %v166 = vld [vmem:[%s6 + $0xd0] sm:$0xff]
    %v167 = vld [vmem:[%s6 + $0xd8] sm:$0xff]
    %v168 = vld [vmem:[%s6 + $0xe0] sm:$0xff]
    %v169 = vld [vmem:[%s6 + $0xe8] sm:$0xff]
    %v170 = vld [vmem:[%s6 + $0xf0] sm:$0xff]
    %v171 = vld [vmem:[%s6 + $0xf8] sm:$0xff]
    %v172 = vld [vmem:[%s7] sm:$0x1]
    %v174 = vperm.slane %v172, 0
    %177 = vst [vmem:[#allocation1] ss:$4 sm:$0xff] %v139
    %v178 = vld.sshfl [vmem:[#allocation1] sm:$0xff pattern:$0x73625140]
    %v179 = vld.sshfl [vmem:[#allocation1 + $0x8] sm:$0xff pattern:$0x73625140]
    %182 = vmatpush.msra.mxu0 %v155
    %183 = vmatpush.msra.mxu0 %v154
    %184 = vmatpush.msra.mxu0 %v153
    %185 = vmatpush.msra.mxu0 %v152
    %186 = vmatpush.msra.mxu0 %v151
    %187 = vmatpush.msra.mxu0 %v150
    %188 = vmatpush.msra.mxu0 %v149
    %189 = vmatpush.msra.mxu0 %v148
    %190 = vmatpush.msra.mxu0 %v147
    %191 = vmatpush.msra.mxu0 %v146
    %192 = vmatpush.msra.mxu0 %v145
    %193 = vmatpush.msra.mxu0 %v144
    %194 = vmatpush.msra.mxu0 %v143
    %195 = vmatpush.msra.mxu0 %v142
    %196 = vmatpush.msra.mxu0 %v141
    %197 = vmatpush.msra.mxu0 %v140
    %198 = vmatmul.f32.gmra.mxu0 %v178
    %v199 = vpop.f32.mrf.mxu0
    %v200 = vadd.f32 %v174, %v199
    %201 = vdwg.mxu0
    %202 = vmatpush.msra.mxu0 %v171
    %203 = vmatpush.msra.mxu0 %v170
    %204 = vmatpush.msra.mxu0 %v169
    %205 = vmatpush.msra.mxu0 %v168
    %206 = vmatpush.msra.mxu0 %v167
    %207 = vmatpush.msra.mxu0 %v166
    %208 = vmatpush.msra.mxu0 %v165
    %209 = vmatpush.msra.mxu0 %v164
    %210 = vmatpush.msra.mxu0 %v163
    %211 = vmatpush.msra.mxu0 %v162
    %212 = vmatpush.msra.mxu0 %v161
    %213 = vmatpush.msra.mxu0 %v160
    %214 = vmatpush.msra.mxu0 %v159
    %215 = vmatpush.msra.mxu0 %v158
    %216 = vmatpush.msra.mxu0 %v157
    %217 = vmatpush.msra.mxu0 %v156
    %218 = vmatmul.f32.gmra.mxu0 %v179
    %v219 = vpop.f32.mrf.mxu0
    %v220 = vadd.f32 %v200, %v219
    %221 = vdwg.mxu0
    %v222 = vxor.u32 %v220, 2147483648
    %v223 = vmul.f32 %v222, 1.442695
    %v224 = vpow.pop %v223
    %v225 = vadd.f32 %v224, 1.0
    %v226 = vrcp.pop %v225
    %v227 = vmul.f32 %v225, %v226
    %v228 = vsub.f32 1.0, %v227
    %v229 = vmul.f32 %v226, %v228
    %v230 = vadd.f32 %v226, %v229
    %vm231 = vweird.f32 %v225
    %vm232 = vweird.f32 %v226
    %vm233 = vmor %vm231, %vm232
    %v234 = vsel %vm233, %v226, %v230
    %v235 = vand.u32 2147483647, %v225
    %vm236 = vcmp.eq.f32.partialorder %v235, 8.507059e+37
    %v237 = vand.u32 %v225, 2147483648
    %v238 = vor.u32 1.1754944e-38, %v237
    %v239 = vsel %vm236, %v238, %v234
    %v240 = vmul.f32 1.0, %v239
    %v241 = vmul.f32 %v220, %v240
    %v242 = vld [vmem:[%s8] sm:$0xff]
    %v243 = vld [vmem:[%s8 + $0x8] sm:$0xff]
    %v244 = vld [vmem:[%s8 + $0x10] sm:$0xff]
    %v245 = vld [vmem:[%s8 + $0x18] sm:$0xff]
    %v246 = vld [vmem:[%s9] sm:$0x1]
    %v248 = vperm.slane %v246, 0
    %vm250 = vcmask 261120
    %v252 = vsel %vm250, %v241, 0
    %254 = vmatpush.msra.mxu0 0.0
    %255 = vmatpush.msra.mxu0 0.0
    %256 = vmatpush.msra.mxu0 0.0
    %257 = vmatpush.msra.mxu0 0.0
    %258 = vmatpush.msra.mxu0 0.0
    %259 = vmatpush.msra.mxu0 0.0
    %260 = vmatpush.msra.mxu0 0.0
    %261 = vmatpush.msra.mxu0 0.0
    %262 = vmatpush.msra.mxu0 0.0
    %263 = vmatpush.msra.mxu0 0.0
    %264 = vmatpush.msra.mxu0 0.0
    %265 = vmatpush.msra.mxu0 0.0
    %266 = vmatpush.msra.mxu0 %v245
    %267 = vmatpush.msra.mxu0 %v244
    %268 = vmatpush.msra.mxu0 %v243
    %269 = vmatpush.msra.mxu0 %v242
    %270 = vmatmul.f32.gmra.mxu0 %v252
    %v271 = vpop.f32.mrf.mxu0
    %v272 = vadd.f32 %v248, %v271
    %273 = vdwg.mxu0
    %v274 = vld [vmem:[%s2] sm:$0x3]
    %v275 = vld [vmem:[%s10] sm:$0xff]
    %v276 = vld [vmem:[%s10 + $0x8] sm:$0xff]
    %v277 = vld [vmem:[%s10 + $0x10] sm:$0xff]
    %v278 = vld [vmem:[%s10 + $0x18] sm:$0xff]
    %v279 = vld [vmem:[%s11] sm:$0x1]
    %v281 = vperm.slane %v279, 0
    %v284 = vsel %vm250, %v274, 0
    %286 = vmatpush.msra.mxu0 0.0
    %287 = vmatpush.msra.mxu0 0.0
    %288 = vmatpush.msra.mxu0 0.0
    %289 = vmatpush.msra.mxu0 0.0
    %290 = vmatpush.msra.mxu0 0.0
    %291 = vmatpush.msra.mxu0 0.0
    %292 = vmatpush.msra.mxu0 0.0
    %293 = vmatpush.msra.mxu0 0.0
    %294 = vmatpush.msra.mxu0 0.0
    %295 = vmatpush.msra.mxu0 0.0
    %296 = vmatpush.msra.mxu0 0.0
    %297 = vmatpush.msra.mxu0 0.0
    %298 = vmatpush.msra.mxu0 %v278
    %299 = vmatpush.msra.mxu0 %v277
    %300 = vmatpush.msra.mxu0 %v276
    %301 = vmatpush.msra.mxu0 %v275
    %302 = vmatmul.f32.gmra.mxu0 %v284
    %v303 = vpop.f32.mrf.mxu0
    %v304 = vadd.f32 %v281, %v303
    %305 = vdwg.mxu0
    %v306 = vadd.f32 %v272, %v304
    %v307 = vld [vmem:[%s3] sm:$0xff]
    %v308 = vld [vmem:[%s3 + $0x8] sm:$0xff]
    %v309 = vld [vmem:[%s3 + $0x10] sm:$0xff]
    %v310 = vld [vmem:[%s3 + $0x18] sm:$0xff]
    %v311 = vxor.u32 %v306, 2147483648
    %v312 = vmul.f32 %v311, 1.442695
    %v313 = vpow.pop %v312
    %v314 = vadd.f32 %v313, 1.0
    %v315 = vrcp.pop %v314
    %v316 = vmul.f32 %v314, %v315
    %v317 = vsub.f32 1.0, %v316
    %v318 = vmul.f32 %v315, %v317
    %v319 = vadd.f32 %v315, %v318
    %vm320 = vweird.f32 %v314
    %vm321 = vweird.f32 %v315
    %vm322 = vmor %vm320, %vm321
    %v323 = vsel %vm322, %v315, %v319
    %v324 = vand.u32 2147483647, %v314
    %vm325 = vcmp.eq.f32.partialorder %v324, 8.507059e+37
    %v326 = vand.u32 %v314, 2147483648
    %v327 = vor.u32 1.1754944e-38, %v326
    %v328 = vsel %vm325, %v327, %v323
    %v329 = vmul.f32 1.0, %v328
    %v330 = vmul.f32 %v306, %v329
    %vm331 = vcmask 15360
    %v333 = vsel %vm331, %v307, 0
    %v336 = vsel %vm331, %v308, 0
    %v339 = vsel %vm331, %v309, 0
    %v342 = vsel %vm331, %v310, 0
    %vm344 = vcmask 1041408
    %v346 = vsel %vm344, %v330, 0
    %348 = vmatpush.msra.mxu0 0.0
    %349 = vmatpush.msra.mxu0 0.0
    %350 = vmatpush.msra.mxu0 0.0
    %351 = vmatpush.msra.mxu0 0.0
    %352 = vmatpush.msra.mxu0 0.0
    %353 = vmatpush.msra.mxu0 0.0
    %354 = vmatpush.msra.mxu0 0.0
    %355 = vmatpush.msra.mxu0 0.0
    %356 = vmatpush.msra.mxu0 0.0
    %357 = vmatpush.msra.mxu0 0.0
    %358 = vmatpush.msra.mxu0 0.0
    %359 = vmatpush.msra.mxu0 0.0
    %360 = vmatpush.msra.mxu0 0.0
    %361 = vmatpush.msra.mxu0 0.0
    %362 = vmatpush.msra.mxu0 0.0
    %363 = vmatpush.msra.mxu0 %v346
    %364 = vmatmul.f32.gmra.mxu0 %v333
    %v365 = vpop.f32.mrf.mxu0
    %v366 = vadd.f32 0.0, %v365
    %367 = vmatmul.f32.gmra.mxu0 %v336
    %v368 = vpop.f32.mrf.mxu0
    %v369 = vadd.f32 0.0, %v368
    %370 = vmatmul.f32.gmra.mxu0 %v339
    %v371 = vpop.f32.mrf.mxu0
    %v372 = vadd.f32 0.0, %v371
    %373 = vmatmul.f32.gmra.mxu0 %v342
    %v374 = vpop.f32.mrf.mxu0
    %v375 = vadd.f32 0.0, %v374
    %376 = vdwg.mxu0
    %v377 = vld [vmem:[%s12] sm:$0xff]
    %v378 = vld [vmem:[%s12 + $0x8] sm:$0xff]
    %v379 = vld [vmem:[%s12 + $0x10] sm:$0xff]
    %v380 = vld [vmem:[%s12 + $0x18] sm:$0xff]
    %v381 = vld [vmem:[%s12 + $0x20] sm:$0xff]
    %v382 = vld [vmem:[%s12 + $0x28] sm:$0xff]
    %v383 = vld [vmem:[%s12 + $0x30] sm:$0xff]
    %v384 = vld [vmem:[%s12 + $0x38] sm:$0xff]
    %v385 = vld [vmem:[%s13] sm:$0x3]
    %v387 = vperm.slane %v385, 0
    %v388 = vperm.slane %v385, 1
    %v392 = vsel %vm250, %v366, 0
    %v395 = vsel %vm250, %v369, 0
    %v398 = vsel %vm250, %v372, 0
    %v401 = vsel %vm250, %v375, 0
    %403 = vmatpush.msra.mxu0 0.0
    %404 = vmatpush.msra.mxu0 0.0
    %405 = vmatpush.msra.mxu0 0.0
    %406 = vmatpush.msra.mxu0 0.0
    %407 = vmatpush.msra.mxu0 0.0
    %408 = vmatpush.msra.mxu0 0.0
    %409 = vmatpush.msra.mxu0 0.0
    %410 = vmatpush.msra.mxu0 0.0
    %411 = vmatpush.msra.mxu0 0.0
    %412 = vmatpush.msra.mxu0 0.0
    %413 = vmatpush.msra.mxu0 0.0
    %414 = vmatpush.msra.mxu0 0.0
    %415 = vmatpush.msra.mxu0 %v383
    %416 = vmatpush.msra.mxu0 %v381
    %417 = vmatpush.msra.mxu0 %v379
    %418 = vmatpush.msra.mxu0 %v377
    %419 = vmatmul.f32.gmra.mxu0 %v392
    %v420 = vpop.f32.mrf.mxu0
    %v421 = vadd.f32 %v387, %v420
    %422 = vmatmul.f32.gmra.mxu0 %v395
    %v423 = vpop.f32.mrf.mxu0
    %v424 = vadd.f32 %v387, %v423
    %425 = vmatmul.f32.gmra.mxu0 %v398
    %v426 = vpop.f32.mrf.mxu0
    %v427 = vadd.f32 %v387, %v426
    %428 = vmatmul.f32.gmra.mxu0 %v401
    %v429 = vpop.f32.mrf.mxu0
    %v430 = vadd.f32 %v387, %v429
    %431 = vdwg.mxu0
    %432 = vmatpush.msra.mxu0 0.0
    %433 = vmatpush.msra.mxu0 0.0
    %434 = vmatpush.msra.mxu0 0.0
    %435 = vmatpush.msra.mxu0 0.0
    %436 = vmatpush.msra.mxu0 0.0
    %437 = vmatpush.msra.mxu0 0.0
    %438 = vmatpush.msra.mxu0 0.0
    %439 = vmatpush.msra.mxu0 0.0
    %440 = vmatpush.msra.mxu0 0.0
    %441 = vmatpush.msra.mxu0 0.0
    %442 = vmatpush.msra.mxu0 0.0
    %443 = vmatpush.msra.mxu0 0.0
    %444 = vmatpush.msra.mxu0 %v384
    %445 = vmatpush.msra.mxu0 %v382
    %446 = vmatpush.msra.mxu0 %v380
    %447 = vmatpush.msra.mxu0 %v378
    %448 = vmatmul.f32.gmra.mxu0 %v392
    %v449 = vpop.f32.mrf.mxu0
    %v450 = vadd.f32 %v388, %v449
    %451 = vmatmul.f32.gmra.mxu0 %v395
    %v452 = vpop.f32.mrf.mxu0
    %v453 = vadd.f32 %v388, %v452
    %454 = vmatmul.f32.gmra.mxu0 %v398
    %v455 = vpop.f32.mrf.mxu0
    %v456 = vadd.f32 %v388, %v455
    %457 = vmatmul.f32.gmra.mxu0 %v401
    %v458 = vpop.f32.mrf.mxu0
    %v459 = vadd.f32 %v388, %v458
    %460 = vdwg.mxu0
    %v461 = vsel %vm250, %v128, 0.0
    %462 = vadd.xlane.f32.xlu0 %v461
    %v463 = vpop.xlane.xlu0 %462
    %v464 = vsel %vm250, %v131, 0.0
    %465 = vadd.xlane.f32.xlu0 %v464
    %v466 = vpop.xlane.xlu0 %465
    %v467 = vsel %vm250, %v134, 0.0
    %468 = vadd.xlane.f32.xlu0 %v467
    %v469 = vpop.xlane.xlu0 %468
    %v470 = vsel %vm250, %v137, 0.0
    %471 = vadd.xlane.f32.xlu0 %v470
    %v472 = vpop.xlane.xlu0 %471
    %v473 = vrcp.pop 32.0
    %v474 = vmul.f32 32.0, %v473
    %v475 = vsub.f32 1.0, %v474
    %v476 = vmul.f32 %v473, %v475
    %v477 = vadd.f32 %v473, %v476
    %vm478 = vweird.f32 %v473
    %v479 = vsel %vm478, %v473, %v477
    %v480 = vmul.f32 %v463, %v479
    %v481 = vmul.f32 %v466, %v479
    %v482 = vmul.f32 %v469, %v479
    %v483 = vmul.f32 %v472, %v479
    %v484 = vsub.f32 %v128, %v480
    %v485 = vsub.f32 %v131, %v481
    %v486 = vsub.f32 %v134, %v482
    %v487 = vsub.f32 %v137, %v483
    %v488 = vmul.f32 %v484, %v484
    %v489 = vmul.f32 %v485, %v485
    %v490 = vmul.f32 %v486, %v486
    %v491 = vmul.f32 %v487, %v487
    %v492 = vsel %vm250, %v488, 0.0
    %493 = vadd.xlane.f32.xlu0 %v492
    %v494 = vpop.xlane.xlu0 %493
    %v495 = vsel %vm250, %v489, 0.0
    %496 = vadd.xlane.f32.xlu0 %v495
    %v497 = vpop.xlane.xlu0 %496
    %v498 = vsel %vm250, %v490, 0.0
    %499 = vadd.xlane.f32.xlu0 %v498
    %v500 = vpop.xlane.xlu0 %499
    %v501 = vsel %vm250, %v491, 0.0
    %502 = vadd.xlane.f32.xlu0 %v501
    %v503 = vpop.xlane.xlu0 %502
    %v504 = vmul.f32 %v494, %v479
    %v505 = vmul.f32 %v497, %v479
    %v506 = vmul.f32 %v500, %v479
    %v507 = vmul.f32 %v503, %v479
    %v508 = vadd.f32 %v504, 1e-06
    %v509 = vadd.f32 %v505, 1e-06
    %v510 = vadd.f32 %v506, 1e-06
    %v511 = vadd.f32 %v507, 1e-06
    %v512 = vrsqrt.pop %v508
    %v513 = vmul.f32 %v512, %v508
    %v514 = vmul.f32 %v513, %v512
    %v515 = vmul.f32 0.5, %v514
    %v516 = vsub.f32 1.5, %v515
    %v517 = vmul.f32 %v512, %v516
    %vm518 = vweird.f32 %v508
    %vm519 = vweird.f32 %v512
    %vm520 = vmor %vm518, %vm519
    %v521 = vsel %vm520, %v512, %v517
    %v522 = vrsqrt.pop %v509
    %v523 = vmul.f32 %v522, %v509
    %v524 = vmul.f32 %v523, %v522
    %v525 = vmul.f32 0.5, %v524
    %v526 = vsub.f32 1.5, %v525
    %v527 = vmul.f32 %v522, %v526
    %vm528 = vweird.f32 %v509
    %vm529 = vweird.f32 %v522
    %vm530 = vmor %vm528, %vm529
    %v531 = vsel %vm530, %v522, %v527
    %v532 = vrsqrt.pop %v510
    %v533 = vmul.f32 %v532, %v510
    %v534 = vmul.f32 %v533, %v532
    %v535 = vmul.f32 0.5, %v534
    %v536 = vsub.f32 1.5, %v535
    %v537 = vmul.f32 %v532, %v536
    %vm538 = vweird.f32 %v510
    %vm539 = vweird.f32 %v532
    %vm540 = vmor %vm538, %vm539
    %v541 = vsel %vm540, %v532, %v537
    %v542 = vrsqrt.pop %v511
    %v543 = vmul.f32 %v542, %v511
    %v544 = vmul.f32 %v543, %v542
    %v545 = vmul.f32 0.5, %v544
    %v546 = vsub.f32 1.5, %v545
    %v547 = vmul.f32 %v542, %v546
    %vm548 = vweird.f32 %v511
    %vm549 = vweird.f32 %v542
    %vm550 = vmor %vm548, %vm549
    %v551 = vsel %vm550, %v542, %v547
    %v552 = vmul.f32 %v484, %v521
    %v553 = vmul.f32 %v485, %v531
    %v554 = vmul.f32 %v486, %v541
    %v555 = vmul.f32 %v487, %v551
    %v556 = vadd.f32 %v421, 1.0
    %v557 = vadd.f32 %v424, 1.0
    %v558 = vadd.f32 %v427, 1.0
    %v559 = vadd.f32 %v430, 1.0
    %564 = vrot.lane.b32.xlu0 %v556, 96
    %v565 = vpop.permute.xlu0 %564
    %566 = vrot.lane.b32.xlu0 %v557, 96
    %v567 = vpop.permute.xlu0 %566
    %568 = vrot.lane.b32.xlu0 %v558, 96
    %v569 = vpop.permute.xlu0 %568
    %570 = vrot.lane.b32.xlu0 %v559, 96
    %v571 = vpop.permute.xlu0 %570
    %v576 = vmul.f32 %v552, %v565
    %v577 = vmul.f32 %v553, %v567
    %v578 = vmul.f32 %v554, %v569
    %v579 = vmul.f32 %v555, %v571
    %v580 = vadd.f32 %v576, %v421
    %v581 = vadd.f32 %v577, %v424
    %v582 = vadd.f32 %v578, %v427
    %v583 = vadd.f32 %v579, %v430
    %v584 = vld [vmem:[%s14] sm:$0xff]
    %v585 = vld [vmem:[%s14 + $0x8] sm:$0xff]
    %v586 = vld [vmem:[%s14 + $0x10] sm:$0xff]
    %v587 = vld [vmem:[%s14 + $0x18] sm:$0xff]
    %v588 = vld [vmem:[%s15] sm:$0x1]
    %v590 = vperm.slane %v588, 0
    %v593 = vsel %vm250, %v580, 0
    %v596 = vsel %vm250, %v581, 0
    %v599 = vsel %vm250, %v582, 0
    %v602 = vsel %vm250, %v583, 0
    %604 = vmatpush.msra.mxu0 0.0
    %605 = vmatpush.msra.mxu0 0.0
    %606 = vmatpush.msra.mxu0 0.0
    %607 = vmatpush.msra.mxu0 0.0
    %608 = vmatpush.msra.mxu0 0.0
    %609 = vmatpush.msra.mxu0 0.0
    %610 = vmatpush.msra.mxu0 0.0
    %611 = vmatpush.msra.mxu0 0.0
    %612 = vmatpush.msra.mxu0 0.0
    %613 = vmatpush.msra.mxu0 0.0
    %614 = vmatpush.msra.mxu0 0.0
    %615 = vmatpush.msra.mxu0 0.0
    %616 = vmatpush.msra.mxu0 %v587
    %617 = vmatpush.msra.mxu0 %v586
    %618 = vmatpush.msra.mxu0 %v585
    %619 = vmatpush.msra.mxu0 %v584
    %620 = vmatmul.f32.gmra.mxu0 %v593
    %v621 = vpop.f32.mrf.mxu0
    %v622 = vadd.f32 %v590, %v621
    %623 = vmatmul.f32.gmra.mxu0 %v596
    %v624 = vpop.f32.mrf.mxu0
    %v625 = vadd.f32 %v590, %v624
    %626 = vmatmul.f32.gmra.mxu0 %v599
    %v627 = vpop.f32.mrf.mxu0
    %v628 = vadd.f32 %v590, %v627
    %629 = vmatmul.f32.gmra.mxu0 %v602
    %v630 = vpop.f32.mrf.mxu0
    %v631 = vadd.f32 %v590, %v630
    %632 = vdwg.mxu0
    %v633 = vld [vmem:[%s16] sm:$0xff]
    %v634 = vld [vmem:[%s16 + $0x8] sm:$0xff]
    %v635 = vld [vmem:[%s16 + $0x10] sm:$0xff]
    %v636 = vld [vmem:[%s16 + $0x18] sm:$0xff]
    %639 = vrot.lane.b32.xlu0 %v622, 96
    %v640 = vpop.permute.xlu0 %639
    %641 = vrot.lane.b32.xlu0 %v625, 96
    %v642 = vpop.permute.xlu0 %641
    %vm643 = vcmask 64512
    %v644 = vsel %vm643, %v622, 0
    %v646 = vsel %vm643, %v625, 0
    %v648 = vsel %vm643, %v640, 0
    %v650 = vsel %vm643, %v642, 0
    %652 = vmatpush.xpose.msra.mxu0 0.0
    %653 = vmatpush.xpose.msra.mxu0 0.0
    %654 = vmatpush.xpose.msra.mxu0 0.0
    %655 = vmatpush.xpose.msra.mxu0 0.0
    %656 = vmatpush.xpose.msra.mxu0 0.0
    %657 = vmatpush.xpose.msra.mxu0 0.0
    %658 = vmatpush.xpose.msra.mxu0 0.0
    %659 = vmatpush.xpose.msra.mxu0 0.0
    %660 = vmatpush.xpose.msra.mxu0 0.0
    %661 = vmatpush.xpose.msra.mxu0 0.0
    %662 = vmatpush.xpose.msra.mxu0 0.0
    %663 = vmatpush.xpose.msra.mxu0 0.0
    %664 = vmatpush.xpose.msra.mxu0 0.0
    %665 = vmatpush.xpose.msra.mxu0 0.0
    %666 = vmatpush.xpose.msra.mxu0 %v650
    %667 = vmatpush.xpose.msra.mxu0 %v648
    %668 = vmatmul.f32.gmra.mxu0 %v644
    %v669 = vpop.f32.mrf.mxu0
    %v670 = vadd.f32 0.0, %v669
    %671 = vmatmul.f32.gmra.mxu0 %v646
    %v672 = vpop.f32.mrf.mxu0
    %v673 = vadd.f32 0.0, %v672
    %674 = vdwg.mxu0
    %677 = vrot.lane.b32.xlu0 %v628, 96
    %v678 = vpop.permute.xlu0 %677
    %679 = vrot.lane.b32.xlu0 %v631, 96
    %v680 = vpop.permute.xlu0 %679
    %v681 = vsel %vm643, %v628, 0
    %v683 = vsel %vm643, %v631, 0
    %v685 = vsel %vm643, %v678, 0
    %v687 = vsel %vm643, %v680, 0
    %689 = vmatpush.xpose.msra.mxu0 0.0
    %690 = vmatpush.xpose.msra.mxu0 0.0
    %691 = vmatpush.xpose.msra.mxu0 0.0
    %692 = vmatpush.xpose.msra.mxu0 0.0
    %693 = vmatpush.xpose.msra.mxu0 0.0
    %694 = vmatpush.xpose.msra.mxu0 0.0
    %695 = vmatpush.xpose.msra.mxu0 0.0
    %696 = vmatpush.xpose.msra.mxu0 0.0
    %697 = vmatpush.xpose.msra.mxu0 0.0
    %698 = vmatpush.xpose.msra.mxu0 0.0
    %699 = vmatpush.xpose.msra.mxu0 0.0
    %700 = vmatpush.xpose.msra.mxu0 0.0
    %701 = vmatpush.xpose.msra.mxu0 0.0
    %702 = vmatpush.xpose.msra.mxu0 0.0
    %703 = vmatpush.xpose.msra.mxu0 %v687
    %704 = vmatpush.xpose.msra.mxu0 %v685
    %705 = vmatmul.f32.gmra.mxu0 %v681
    %v706 = vpop.f32.mrf.mxu0
    %v707 = vadd.f32 0.0, %v706
    %708 = vmatmul.f32.gmra.mxu0 %v683
    %v709 = vpop.f32.mrf.mxu0
    %v710 = vadd.f32 0.0, %v709
    %711 = vdwg.mxu0
    %v712 = vmul.f32 %v670, 0.35355338
    %v713 = vmul.f32 %v673, 0.35355338
    %v714 = vmul.f32 %v707, 0.35355338
    %v715 = vmul.f32 %v710, 0.35355338
    %vm716 = vcmask 130048
    %v717 = vsel %vm716, %v712, -inf
    %718 = vmax.xlane.f32.xlu0 %v717
    %v719 = vpop.xlane.xlu0 %718
    %v720 = vsel %vm716, %v713, -inf
    %721 = vmax.xlane.f32.xlu0 %v720
    %v722 = vpop.xlane.xlu0 %721
    %v723 = vsel %vm716, %v714, -inf
    %724 = vmax.xlane.f32.xlu0 %v723
    %v725 = vpop.xlane.xlu0 %724
    %v726 = vsel %vm716, %v715, -inf
    %727 = vmax.xlane.f32.xlu0 %v726
    %v728 = vpop.xlane.xlu0 %727
    %v729 = vsub.f32 %v712, %v719
    %v730 = vsub.f32 %v713, %v722
    %v731 = vsub.f32 %v714, %v725
    %v732 = vsub.f32 %v715, %v728
    %v733 = vmul.f32 %v729, 1.442695
    %v734 = vpow.pop %v733
    %v735 = vmul.f32 %v730, 1.442695
    %v736 = vpow.pop %v735
    %v737 = vmul.f32 %v731, 1.442695
    %v738 = vpow.pop %v737
    %v739 = vmul.f32 %v732, 1.442695
    %v740 = vpow.pop %v739
    %v741 = vsel %vm716, %v734, 0.0
    %742 = vadd.xlane.f32.xlu0 %v741
    %v743 = vpop.xlane.xlu0 %742
    %v744 = vsel %vm716, %v736, 0.0
    %745 = vadd.xlane.f32.xlu0 %v744
    %v746 = vpop.xlane.xlu0 %745
    %v747 = vsel %vm716, %v738, 0.0
    %748 = vadd.xlane.f32.xlu0 %v747
    %v749 = vpop.xlane.xlu0 %748
    %v750 = vsel %vm716, %v740, 0.0
    %751 = vadd.xlane.f32.xlu0 %v750
    %v752 = vpop.xlane.xlu0 %751
    %v753 = vrcp.pop %v743
    %v754 = vrcp.pop %v746
    %v755 = vrcp.pop %v749
    %v756 = vrcp.pop %v752
    %v757 = vmul.f32 %v734, %v753
    %v758 = vmul.f32 %v736, %v754
    %v759 = vmul.f32 %v738, %v755
    %v760 = vmul.f32 %v740, %v756
    %761 = vrot.lane.b32.xlu0 %v622, 64
    %v762 = vpop.permute.xlu0 %761
    %763 = vrot.lane.b32.xlu0 %v625, 64
    %v764 = vpop.permute.xlu0 %763
    %v768 = vsel %vm716, %v757, 0
    %v771 = vsel %vm716, %v758, 0
    %773 = vmatpush.msra.mxu0 0.0
    %774 = vmatpush.msra.mxu0 0.0
    %775 = vmatpush.msra.mxu0 0.0
    %776 = vmatpush.msra.mxu0 0.0
    %777 = vmatpush.msra.mxu0 0.0
    %778 = vmatpush.msra.mxu0 0.0
    %779 = vmatpush.msra.mxu0 0.0
    %780 = vmatpush.msra.mxu0 0.0
    %781 = vmatpush.msra.mxu0 0.0
    %782 = vmatpush.msra.mxu0 0.0
    %783 = vmatpush.msra.mxu0 0.0
    %784 = vmatpush.msra.mxu0 0.0
    %785 = vmatpush.msra.mxu0 0.0
    %786 = vmatpush.msra.mxu0 0.0
    %787 = vmatpush.msra.mxu0 %v764
    %788 = vmatpush.msra.mxu0 %v762
    %789 = vmatmul.f32.gmra.mxu0 %v768
    %v790 = vpop.f32.mrf.mxu0
    %v791 = vadd.f32 0.0, %v790
    %792 = vmatmul.f32.gmra.mxu0 %v771
    %v793 = vpop.f32.mrf.mxu0
    %v794 = vadd.f32 0.0, %v793
    %795 = vdwg.mxu0
    %796 = vrot.lane.b32.xlu0 %v628, 64
    %v797 = vpop.permute.xlu0 %796
    %798 = vrot.lane.b32.xlu0 %v631, 64
    %v799 = vpop.permute.xlu0 %798
    %v803 = vsel %vm716, %v759, 0
    %v806 = vsel %vm716, %v760, 0
    %808 = vmatpush.msra.mxu0 0.0
    %809 = vmatpush.msra.mxu0 0.0
    %810 = vmatpush.msra.mxu0 0.0
    %811 = vmatpush.msra.mxu0 0.0
    %812 = vmatpush.msra.mxu0 0.0
    %813 = vmatpush.msra.mxu0 0.0
    %814 = vmatpush.msra.mxu0 0.0
    %815 = vmatpush.msra.mxu0 0.0
    %816 = vmatpush.msra.mxu0 0.0
    %817 = vmatpush.msra.mxu0 0.0
    %818 = vmatpush.msra.mxu0 0.0
    %819 = vmatpush.msra.mxu0 0.0
    %820 = vmatpush.msra.mxu0 0.0
    %821 = vmatpush.msra.mxu0 0.0
    %822 = vmatpush.msra.mxu0 %v799
    %823 = vmatpush.msra.mxu0 %v797
    %824 = vmatmul.f32.gmra.mxu0 %v803
    %v825 = vpop.f32.mrf.mxu0
    %v826 = vadd.f32 0.0, %v825
    %827 = vmatmul.f32.gmra.mxu0 %v806
    %v828 = vpop.f32.mrf.mxu0
    %v829 = vadd.f32 0.0, %v828
    %830 = vdwg.mxu0
    %831 = vrot.lane.b32.xlu0 %v622, 120
    %v832 = vpop.permute.xlu0 %831
    %833 = vrot.lane.b32.xlu0 %v625, 120
    %v834 = vpop.permute.xlu0 %833
    %835 = vrot.lane.b32.xlu0 %v622, 88
    %v836 = vpop.permute.xlu0 %835
    %837 = vrot.lane.b32.xlu0 %v625, 88
    %v838 = vpop.permute.xlu0 %837
    %v839 = vsel %vm643, %v832, 0
    %v841 = vsel %vm643, %v834, 0
    %v843 = vsel %vm643, %v836, 0
    %v845 = vsel %vm643, %v838, 0
    %847 = vmatpush.xpose.msra.mxu0 0.0
    %848 = vmatpush.xpose.msra.mxu0 0.0
    %849 = vmatpush.xpose.msra.mxu0 0.0
    %850 = vmatpush.xpose.msra.mxu0 0.0
    %851 = vmatpush.xpose.msra.mxu0 0.0
    %852 = vmatpush.xpose.msra.mxu0 0.0
    %853 = vmatpush.xpose.msra.mxu0 0.0
    %854 = vmatpush.xpose.msra.mxu0 0.0
    %855 = vmatpush.xpose.msra.mxu0 0.0
    %856 = vmatpush.xpose.msra.mxu0 0.0
    %857 = vmatpush.xpose.msra.mxu0 0.0
    %858 = vmatpush.xpose.msra.mxu0 0.0
    %859 = vmatpush.xpose.msra.mxu0 0.0
    %860 = vmatpush.xpose.msra.mxu0 0.0
    %861 = vmatpush.xpose.msra.mxu0 %v845
    %862 = vmatpush.xpose.msra.mxu0 %v843
    %863 = vmatmul.f32.gmra.mxu0 %v839
    %v864 = vpop.f32.mrf.mxu0
    %v865 = vadd.f32 0.0, %v864
    %866 = vmatmul.f32.gmra.mxu0 %v841
    %v867 = vpop.f32.mrf.mxu0
    %v868 = vadd.f32 0.0, %v867
    %869 = vdwg.mxu0
    %870 = vrot.lane.b32.xlu0 %v628, 120
    %v871 = vpop.permute.xlu0 %870
    %872 = vrot.lane.b32.xlu0 %v631, 120
    %v873 = vpop.permute.xlu0 %872
    %874 = vrot.lane.b32.xlu0 %v628, 88
    %v875 = vpop.permute.xlu0 %874
    %876 = vrot.lane.b32.xlu0 %v631, 88
    %v877 = vpop.permute.xlu0 %876
    %v878 = vsel %vm643, %v871, 0
    %v880 = vsel %vm643, %v873, 0
    %v882 = vsel %vm643, %v875, 0
    %v884 = vsel %vm643, %v877, 0
    %886 = vmatpush.xpose.msra.mxu0 0.0
    %887 = vmatpush.xpose.msra.mxu0 0.0
    %888 = vmatpush.xpose.msra.mxu0 0.0
    %889 = vmatpush.xpose.msra.mxu0 0.0
    %890 = vmatpush.xpose.msra.mxu0 0.0
    %891 = vmatpush.xpose.msra.mxu0 0.0
    %892 = vmatpush.xpose.msra.mxu0 0.0
    %893 = vmatpush.xpose.msra.mxu0 0.0
    %894 = vmatpush.xpose.msra.mxu0 0.0
    %895 = vmatpush.xpose.msra.mxu0 0.0
    %896 = vmatpush.xpose.msra.mxu0 0.0
    %897 = vmatpush.xpose.msra.mxu0 0.0
    %898 = vmatpush.xpose.msra.mxu0 0.0
    %899 = vmatpush.xpose.msra.mxu0 0.0
    %900 = vmatpush.xpose.msra.mxu0 %v884
    %901 = vmatpush.xpose.msra.mxu0 %v882
    %902 = vmatmul.f32.gmra.mxu0 %v878
    %v903 = vpop.f32.mrf.mxu0
    %v904 = vadd.f32 0.0, %v903
    %905 = vmatmul.f32.gmra.mxu0 %v880
    %v906 = vpop.f32.mrf.mxu0
    %v907 = vadd.f32 0.0, %v906
    %908 = vdwg.mxu0
    %v909 = vmul.f32 %v865, 0.35355338
    %v910 = vmul.f32 %v868, 0.35355338
    %v911 = vmul.f32 %v904, 0.35355338
    %v912 = vmul.f32 %v907, 0.35355338
    %v913 = vsel %vm716, %v909, -inf
    %914 = vmax.xlane.f32.xlu0 %v913
    %v915 = vpop.xlane.xlu0 %914
    %v916 = vsel %vm716, %v910, -inf
    %917 = vmax.xlane.f32.xlu0 %v916
    %v918 = vpop.xlane.xlu0 %917
    %v919 = vsel %vm716, %v911, -inf
    %920 = vmax.xlane.f32.xlu0 %v919
    %v921 = vpop.xlane.xlu0 %920
    %v922 = vsel %vm716, %v912, -inf
    %923 = vmax.xlane.f32.xlu0 %v922
    %v924 = vpop.xlane.xlu0 %923
    %v925 = vsub.f32 %v909, %v915
    %v926 = vsub.f32 %v910, %v918
    %v927 = vsub.f32 %v911, %v921
    %v928 = vsub.f32 %v912, %v924
    %v929 = vmul.f32 %v925, 1.442695
    %v930 = vpow.pop %v929
    %v931 = vmul.f32 %v926, 1.442695
    %v932 = vpow.pop %v931
    %v933 = vmul.f32 %v927, 1.442695
    %v934 = vpow.pop %v933
    %v935 = vmul.f32 %v928, 1.442695
    %v936 = vpow.pop %v935
    %v937 = vsel %vm716, %v930, 0.0
    %938 = vadd.xlane.f32.xlu0 %v937
    %v939 = vpop.xlane.xlu0 %938
    %v940 = vsel %vm716, %v932, 0.0
    %941 = vadd.xlane.f32.xlu0 %v940
    %v942 = vpop.xlane.xlu0 %941
    %v943 = vsel %vm716, %v934, 0.0
    %944 = vadd.xlane.f32.xlu0 %v943
    %v945 = vpop.xlane.xlu0 %944
    %v946 = vsel %vm716, %v936, 0.0
    %947 = vadd.xlane.f32.xlu0 %v946
    %v948 = vpop.xlane.xlu0 %947
    %v949 = vrcp.pop %v939
    %v950 = vrcp.pop %v942
    %v951 = vrcp.pop %v945
    %v952 = vrcp.pop %v948
    %v953 = vmul.f32 %v930, %v949
    %v954 = vmul.f32 %v932, %v950
    %v955 = vmul.f32 %v934, %v951
    %v956 = vmul.f32 %v936, %v952
    %957 = vrot.lane.b32.xlu0 %v622, 56
    %v958 = vpop.permute.xlu0 %957
    %959 = vrot.lane.b32.xlu0 %v625, 56
    %v960 = vpop.permute.xlu0 %959
    %v964 = vsel %vm716, %v953, 0
    %v967 = vsel %vm716, %v954, 0
    %969 = vmatpush.msra.mxu0 0.0
    %970 = vmatpush.msra.mxu0 0.0
    %971 = vmatpush.msra.mxu0 0.0
    %972 = vmatpush.msra.mxu0 0.0
    %973 = vmatpush.msra.mxu0 0.0
    %974 = vmatpush.msra.mxu0 0.0
    %975 = vmatpush.msra.mxu0 0.0
    %976 = vmatpush.msra.mxu0 0.0
    %977 = vmatpush.msra.mxu0 0.0
    %978 = vmatpush.msra.mxu0 0.0
    %979 = vmatpush.msra.mxu0 0.0
    %980 = vmatpush.msra.mxu0 0.0
    %981 = vmatpush.msra.mxu0 0.0
    %982 = vmatpush.msra.mxu0 0.0
    %983 = vmatpush.msra.mxu0 %v960
    %984 = vmatpush.msra.mxu0 %v958
    %985 = vmatmul.f32.gmra.mxu0 %v964
    %v986 = vpop.f32.mrf.mxu0
    %v987 = vadd.f32 0.0, %v986
    %988 = vmatmul.f32.gmra.mxu0 %v967
    %v989 = vpop.f32.mrf.mxu0
    %v990 = vadd.f32 0.0, %v989
    %991 = vdwg.mxu0
    %992 = vrot.lane.b32.xlu0 %v628, 56
    %v993 = vpop.permute.xlu0 %992
    %994 = vrot.lane.b32.xlu0 %v631, 56
    %v995 = vpop.permute.xlu0 %994
    %v999 = vsel %vm716, %v955, 0
    %v1002 = vsel %vm716, %v956, 0
    %1004 = vmatpush.msra.mxu0 0.0
    %1005 = vmatpush.msra.mxu0 0.0
    %1006 = vmatpush.msra.mxu0 0.0
    %1007 = vmatpush.msra.mxu0 0.0
    %1008 = vmatpush.msra.mxu0 0.0
    %1009 = vmatpush.msra.mxu0 0.0
    %1010 = vmatpush.msra.mxu0 0.0
    %1011 = vmatpush.msra.mxu0 0.0
    %1012 = vmatpush.msra.mxu0 0.0
    %1013 = vmatpush.msra.mxu0 0.0
    %1014 = vmatpush.msra.mxu0 0.0
    %1015 = vmatpush.msra.mxu0 0.0
    %1016 = vmatpush.msra.mxu0 0.0
    %1017 = vmatpush.msra.mxu0 0.0
    %1018 = vmatpush.msra.mxu0 %v995
    %1019 = vmatpush.msra.mxu0 %v993
    %1020 = vmatmul.f32.gmra.mxu0 %v999
    %v1021 = vpop.f32.mrf.mxu0
    %v1022 = vadd.f32 0.0, %v1021
    %1023 = vmatmul.f32.gmra.mxu0 %v1002
    %v1024 = vpop.f32.mrf.mxu0
    %v1025 = vadd.f32 0.0, %v1024
    %1026 = vdwg.mxu0
    %v1028 = vsel %vm643, %v987, 0
    %v1031 = vsel %vm643, %v990, 0
    %v1034 = vsel %vm643, %v1022, 0
    %v1037 = vsel %vm643, %v1025, 0
    %1039 = vmatpush.msra.mxu0 0.0
    %1040 = vmatpush.msra.mxu0 0.0
    %1041 = vmatpush.msra.mxu0 0.0
    %1042 = vmatpush.msra.mxu0 0.0
    %1043 = vmatpush.msra.mxu0 0.0
    %1044 = vmatpush.msra.mxu0 0.0
    %1045 = vmatpush.msra.mxu0 0.0
    %1046 = vmatpush.msra.mxu0 0.0
    %1047 = vmatpush.msra.mxu0 0.0
    %1048 = vmatpush.msra.mxu0 0.0
    %1049 = vmatpush.msra.mxu0 0.0
    %1050 = vmatpush.msra.mxu0 0.0
    %1051 = vmatpush.msra.mxu0 0.0
    %1052 = vmatpush.msra.mxu0 0.0
    %1053 = vmatpush.msra.mxu0 0.0
    %1054 = vmatpush.msra.mxu0 %v634
    %1055 = vmatmul.f32.gmra.mxu0 %v1028
    %v1056 = vpop.f32.mrf.mxu0
    %v1057 = vadd.f32 0.0, %v1056
    %1058 = vmatmul.f32.gmra.mxu0 %v1031
    %v1059 = vpop.f32.mrf.mxu0
    %v1060 = vadd.f32 0.0, %v1059
    %1061 = vmatmul.f32.gmra.mxu0 %v1034
    %v1062 = vpop.f32.mrf.mxu0
    %v1063 = vadd.f32 0.0, %v1062
    %1064 = vmatmul.f32.gmra.mxu0 %v1037
    %v1065 = vpop.f32.mrf.mxu0
    %v1066 = vadd.f32 0.0, %v1065
    %1067 = vdwg.mxu0
    %v1069 = vsel %vm643, %v791, 0
    %v1072 = vsel %vm643, %v794, 0
    %v1075 = vsel %vm643, %v826, 0
    %v1078 = vsel %vm643, %v829, 0
    %1080 = vmatpush.msra.mxu0 0.0
    %1081 = vmatpush.msra.mxu0 0.0
    %1082 = vmatpush.msra.mxu0 0.0
    %1083 = vmatpush.msra.mxu0 0.0
    %1084 = vmatpush.msra.mxu0 0.0
    %1085 = vmatpush.msra.mxu0 0.0
    %1086 = vmatpush.msra.mxu0 0.0
    %1087 = vmatpush.msra.mxu0 0.0
    %1088 = vmatpush.msra.mxu0 0.0
    %1089 = vmatpush.msra.mxu0 0.0
    %1090 = vmatpush.msra.mxu0 0.0
    %1091 = vmatpush.msra.mxu0 0.0
    %1092 = vmatpush.msra.mxu0 0.0
    %1093 = vmatpush.msra.mxu0 0.0
    %1094 = vmatpush.msra.mxu0 0.0
    %1095 = vmatpush.msra.mxu0 %v633
    %1096 = vmatmul.f32.gmra.mxu0 %v1069
    %v1097 = vpop.f32.mrf.mxu0
    %v1098 = vadd.f32 %v1057, %v1097
    %1099 = vmatmul.f32.gmra.mxu0 %v1072
    %v1100 = vpop.f32.mrf.mxu0
    %v1101 = vadd.f32 %v1060, %v1100
    %1102 = vmatmul.f32.gmra.mxu0 %v1075
    %v1103 = vpop.f32.mrf.mxu0
    %v1104 = vadd.f32 %v1063, %v1103
    %1105 = vmatmul.f32.gmra.mxu0 %v1078
    %v1106 = vpop.f32.mrf.mxu0
    %v1107 = vadd.f32 %v1066, %v1106
    %1108 = vdwg.mxu0
    %1109 = vrot.lane.b32.xlu0 %v622, 112
    %v1110 = vpop.permute.xlu0 %1109
    %1111 = vrot.lane.b32.xlu0 %v625, 112
    %v1112 = vpop.permute.xlu0 %1111
    %1113 = vrot.lane.b32.xlu0 %v622, 80
    %v1114 = vpop.permute.xlu0 %1113
    %1115 = vrot.lane.b32.xlu0 %v625, 80
    %v1116 = vpop.permute.xlu0 %1115
    %v1117 = vsel %vm643, %v1110, 0
    %v1119 = vsel %vm643, %v1112, 0
    %v1121 = vsel %vm643, %v1114, 0
    %v1123 = vsel %vm643, %v1116, 0
    %1125 = vmatpush.xpose.msra.mxu0 0.0
    %1126 = vmatpush.xpose.msra.mxu0 0.0
    %1127 = vmatpush.xpose.msra.mxu0 0.0
    %1128 = vmatpush.xpose.msra.mxu0 0.0
    %1129 = vmatpush.xpose.msra.mxu0 0.0
    %1130 = vmatpush.xpose.msra.mxu0 0.0
    %1131 = vmatpush.xpose.msra.mxu0 0.0
    %1132 = vmatpush.xpose.msra.mxu0 0.0
    %1133 = vmatpush.xpose.msra.mxu0 0.0
    %1134 = vmatpush.xpose.msra.mxu0 0.0
    %1135 = vmatpush.xpose.msra.mxu0 0.0
    %1136 = vmatpush.xpose.msra.mxu0 0.0
    %1137 = vmatpush.xpose.msra.mxu0 0.0
    %1138 = vmatpush.xpose.msra.mxu0 0.0
    %1139 = vmatpush.xpose.msra.mxu0 %v1123
    %1140 = vmatpush.xpose.msra.mxu0 %v1121
    %1141 = vmatmul.f32.gmra.mxu0 %v1117
    %v1142 = vpop.f32.mrf.mxu0
    %v1143 = vadd.f32 0.0, %v1142
    %1144 = vmatmul.f32.gmra.mxu0 %v1119
    %v1145 = vpop.f32.mrf.mxu0
    %v1146 = vadd.f32 0.0, %v1145
    %1147 = vdwg.mxu0
    %1148 = vrot.lane.b32.xlu0 %v628, 112
    %v1149 = vpop.permute.xlu0 %1148
    %1150 = vrot.lane.b32.xlu0 %v631, 112
    %v1151 = vpop.permute.xlu0 %1150
    %1152 = vrot.lane.b32.xlu0 %v628, 80
    %v1153 = vpop.permute.xlu0 %1152
    %1154 = vrot.lane.b32.xlu0 %v631, 80
    %v1155 = vpop.permute.xlu0 %1154
    %v1156 = vsel %vm643, %v1149, 0
    %v1158 = vsel %vm643, %v1151, 0
    %v1160 = vsel %vm643, %v1153, 0
    %v1162 = vsel %vm643, %v1155, 0
    %1164 = vmatpush.xpose.msra.mxu0 0.0
    %1165 = vmatpush.xpose.msra.mxu0 0.0
    %1166 = vmatpush.xpose.msra.mxu0 0.0
    %1167 = vmatpush.xpose.msra.mxu0 0.0
    %1168 = vmatpush.xpose.msra.mxu0 0.0
    %1169 = vmatpush.xpose.msra.mxu0 0.0
    %1170 = vmatpush.xpose.msra.mxu0 0.0
    %1171 = vmatpush.xpose.msra.mxu0 0.0
    %1172 = vmatpush.xpose.msra.mxu0 0.0
    %1173 = vmatpush.xpose.msra.mxu0 0.0
    %1174 = vmatpush.xpose.msra.mxu0 0.0
    %1175 = vmatpush.xpose.msra.mxu0 0.0
    %1176 = vmatpush.xpose.msra.mxu0 0.0
    %1177 = vmatpush.xpose.msra.mxu0 0.0
    %1178 = vmatpush.xpose.msra.mxu0 %v1162
    %1179 = vmatpush.xpose.msra.mxu0 %v1160
    %1180 = vmatmul.f32.gmra.mxu0 %v1156
    %v1181 = vpop.f32.mrf.mxu0
    %v1182 = vadd.f32 0.0, %v1181
    %1183 = vmatmul.f32.gmra.mxu0 %v1158
    %v1184 = vpop.f32.mrf.mxu0
    %v1185 = vadd.f32 0.0, %v1184
    %1186 = vdwg.mxu0
    %v1187 = vmul.f32 %v1143, 0.35355338
    %v1188 = vmul.f32 %v1146, 0.35355338
    %v1189 = vmul.f32 %v1182, 0.35355338
    %v1190 = vmul.f32 %v1185, 0.35355338
    %v1191 = vsel %vm716, %v1187, -inf
    %1192 = vmax.xlane.f32.xlu0 %v1191
    %v1193 = vpop.xlane.xlu0 %1192
    %v1194 = vsel %vm716, %v1188, -inf
    %1195 = vmax.xlane.f32.xlu0 %v1194
    %v1196 = vpop.xlane.xlu0 %1195
    %v1197 = vsel %vm716, %v1189, -inf
    %1198 = vmax.xlane.f32.xlu0 %v1197
    %v1199 = vpop.xlane.xlu0 %1198
    %v1200 = vsel %vm716, %v1190, -inf
    %1201 = vmax.xlane.f32.xlu0 %v1200
    %v1202 = vpop.xlane.xlu0 %1201
    %v1203 = vsub.f32 %v1187, %v1193
    %v1204 = vsub.f32 %v1188, %v1196
    %v1205 = vsub.f32 %v1189, %v1199
    %v1206 = vsub.f32 %v1190, %v1202
    %v1207 = vmul.f32 %v1203, 1.442695
    %v1208 = vpow.pop %v1207
    %v1209 = vmul.f32 %v1204, 1.442695
    %v1210 = vpow.pop %v1209
    %v1211 = vmul.f32 %v1205, 1.442695
    %v1212 = vpow.pop %v1211
    %v1213 = vmul.f32 %v1206, 1.442695
    %v1214 = vpow.pop %v1213
    %v1215 = vsel %vm716, %v1208, 0.0
    %1216 = vadd.xlane.f32.xlu0 %v1215
    %v1217 = vpop.xlane.xlu0 %1216
    %v1218 = vsel %vm716, %v1210, 0.0
    %1219 = vadd.xlane.f32.xlu0 %v1218
    %v1220 = vpop.xlane.xlu0 %1219
    %v1221 = vsel %vm716, %v1212, 0.0
    %1222 = vadd.xlane.f32.xlu0 %v1221
    %v1223 = vpop.xlane.xlu0 %1222
    %v1224 = vsel %vm716, %v1214, 0.0
    %1225 = vadd.xlane.f32.xlu0 %v1224
    %v1226 = vpop.xlane.xlu0 %1225
    %v1227 = vrcp.pop %v1217
    %v1228 = vrcp.pop %v1220
    %v1229 = vrcp.pop %v1223
    %v1230 = vrcp.pop %v1226
    %v1231 = vmul.f32 %v1208, %v1227
    %v1232 = vmul.f32 %v1210, %v1228
    %v1233 = vmul.f32 %v1212, %v1229
    %v1234 = vmul.f32 %v1214, %v1230
    %1235 = vrot.lane.b32.xlu0 %v622, 48
    %v1236 = vpop.permute.xlu0 %1235
    %1237 = vrot.lane.b32.xlu0 %v625, 48
    %v1238 = vpop.permute.xlu0 %1237
    %v1242 = vsel %vm716, %v1231, 0
    %v1245 = vsel %vm716, %v1232, 0
    %1247 = vmatpush.msra.mxu0 0.0
    %1248 = vmatpush.msra.mxu0 0.0
    %1249 = vmatpush.msra.mxu0 0.0
    %1250 = vmatpush.msra.mxu0 0.0
    %1251 = vmatpush.msra.mxu0 0.0
    %1252 = vmatpush.msra.mxu0 0.0
    %1253 = vmatpush.msra.mxu0 0.0
    %1254 = vmatpush.msra.mxu0 0.0
    %1255 = vmatpush.msra.mxu0 0.0
    %1256 = vmatpush.msra.mxu0 0.0
    %1257 = vmatpush.msra.mxu0 0.0
    %1258 = vmatpush.msra.mxu0 0.0
    %1259 = vmatpush.msra.mxu0 0.0
    %1260 = vmatpush.msra.mxu0 0.0
    %1261 = vmatpush.msra.mxu0 %v1238
    %1262 = vmatpush.msra.mxu0 %v1236
    %1263 = vmatmul.f32.gmra.mxu0 %v1242
    %v1264 = vpop.f32.mrf.mxu0
    %v1265 = vadd.f32 0.0, %v1264
    %1266 = vmatmul.f32.gmra.mxu0 %v1245
    %v1267 = vpop.f32.mrf.mxu0
    %v1268 = vadd.f32 0.0, %v1267
    %1269 = vdwg.mxu0
    %1270 = vrot.lane.b32.xlu0 %v628, 48
    %v1271 = vpop.permute.xlu0 %1270
    %1272 = vrot.lane.b32.xlu0 %v631, 48
    %v1273 = vpop.permute.xlu0 %1272
    %v1277 = vsel %vm716, %v1233, 0
    %v1280 = vsel %vm716, %v1234, 0
    %1282 = vmatpush.msra.mxu0 0.0
    %1283 = vmatpush.msra.mxu0 0.0
    %1284 = vmatpush.msra.mxu0 0.0
    %1285 = vmatpush.msra.mxu0 0.0
    %1286 = vmatpush.msra.mxu0 0.0
    %1287 = vmatpush.msra.mxu0 0.0
    %1288 = vmatpush.msra.mxu0 0.0
    %1289 = vmatpush.msra.mxu0 0.0
    %1290 = vmatpush.msra.mxu0 0.0
    %1291 = vmatpush.msra.mxu0 0.0
    %1292 = vmatpush.msra.mxu0 0.0
    %1293 = vmatpush.msra.mxu0 0.0
    %1294 = vmatpush.msra.mxu0 0.0
    %1295 = vmatpush.msra.mxu0 0.0
    %1296 = vmatpush.msra.mxu0 %v1273
    %1297 = vmatpush.msra.mxu0 %v1271
    %1298 = vmatmul.f32.gmra.mxu0 %v1277
    %v1299 = vpop.f32.mrf.mxu0
    %v1300 = vadd.f32 0.0, %v1299
    %1301 = vmatmul.f32.gmra.mxu0 %v1280
    %v1302 = vpop.f32.mrf.mxu0
    %v1303 = vadd.f32 0.0, %v1302
    %1304 = vdwg.mxu0
    %v1306 = vsel %vm643, %v1265, 0
    %v1309 = vsel %vm643, %v1268, 0
    %v1312 = vsel %vm643, %v1300, 0
    %v1315 = vsel %vm643, %v1303, 0
    %1317 = vmatpush.msra.mxu0 0.0
    %1318 = vmatpush.msra.mxu0 0.0
    %1319 = vmatpush.msra.mxu0 0.0
    %1320 = vmatpush.msra.mxu0 0.0
    %1321 = vmatpush.msra.mxu0 0.0
    %1322 = vmatpush.msra.mxu0 0.0
    %1323 = vmatpush.msra.mxu0 0.0
    %1324 = vmatpush.msra.mxu0 0.0
    %1325 = vmatpush.msra.mxu0 0.0
    %1326 = vmatpush.msra.mxu0 0.0
    %1327 = vmatpush.msra.mxu0 0.0
    %1328 = vmatpush.msra.mxu0 0.0
    %1329 = vmatpush.msra.mxu0 0.0
    %1330 = vmatpush.msra.mxu0 0.0
    %1331 = vmatpush.msra.mxu0 0.0
    %1332 = vmatpush.msra.mxu0 %v635
    %1333 = vmatmul.f32.gmra.mxu0 %v1306
    %v1334 = vpop.f32.mrf.mxu0
    %v1335 = vadd.f32 0.0, %v1334
    %1336 = vmatmul.f32.gmra.mxu0 %v1309
    %v1337 = vpop.f32.mrf.mxu0
    %v1338 = vadd.f32 0.0, %v1337
    %1339 = vmatmul.f32.gmra.mxu0 %v1312
    %v1340 = vpop.f32.mrf.mxu0
    %v1341 = vadd.f32 0.0, %v1340
    %1342 = vmatmul.f32.gmra.mxu0 %v1315
    %v1343 = vpop.f32.mrf.mxu0
    %v1344 = vadd.f32 0.0, %v1343
    %1345 = vdwg.mxu0
    %v1346 = vadd.f32 %v1098, %v1335
    %v1347 = vadd.f32 %v1101, %v1338
    %v1348 = vadd.f32 %v1104, %v1341
    %v1349 = vadd.f32 %v1107, %v1344
    %1350 = vrot.lane.b32.xlu0 %v622, 104
    %v1351 = vpop.permute.xlu0 %1350
    %1352 = vrot.lane.b32.xlu0 %v625, 104
    %v1353 = vpop.permute.xlu0 %1352
    %1354 = vrot.lane.b32.xlu0 %v622, 72
    %v1355 = vpop.permute.xlu0 %1354
    %1356 = vrot.lane.b32.xlu0 %v625, 72
    %v1357 = vpop.permute.xlu0 %1356
    %v1358 = vsel %vm643, %v1351, 0
    %v1360 = vsel %vm643, %v1353, 0
    %v1362 = vsel %vm643, %v1355, 0
    %v1364 = vsel %vm643, %v1357, 0
    %1366 = vmatpush.xpose.msra.mxu0 0.0
    %1367 = vmatpush.xpose.msra.mxu0 0.0
    %1368 = vmatpush.xpose.msra.mxu0 0.0
    %1369 = vmatpush.xpose.msra.mxu0 0.0
    %1370 = vmatpush.xpose.msra.mxu0 0.0
    %1371 = vmatpush.xpose.msra.mxu0 0.0
    %1372 = vmatpush.xpose.msra.mxu0 0.0
    %1373 = vmatpush.xpose.msra.mxu0 0.0
    %1374 = vmatpush.xpose.msra.mxu0 0.0
    %1375 = vmatpush.xpose.msra.mxu0 0.0
    %1376 = vmatpush.xpose.msra.mxu0 0.0
    %1377 = vmatpush.xpose.msra.mxu0 0.0
    %1378 = vmatpush.xpose.msra.mxu0 0.0
    %1379 = vmatpush.xpose.msra.mxu0 0.0
    %1380 = vmatpush.xpose.msra.mxu0 %v1364
    %1381 = vmatpush.xpose.msra.mxu0 %v1362
    %1382 = vmatmul.f32.gmra.mxu0 %v1358
    %v1383 = vpop.f32.mrf.mxu0
    %v1384 = vadd.f32 0.0, %v1383
    %1385 = vmatmul.f32.gmra.mxu0 %v1360
    %v1386 = vpop.f32.mrf.mxu0
    %v1387 = vadd.f32 0.0, %v1386
    %1388 = vdwg.mxu0
    %1389 = vrot.lane.b32.xlu0 %v628, 104
    %v1390 = vpop.permute.xlu0 %1389
    %1391 = vrot.lane.b32.xlu0 %v631, 104
    %v1392 = vpop.permute.xlu0 %1391
    %1393 = vrot.lane.b32.xlu0 %v628, 72
    %v1394 = vpop.permute.xlu0 %1393
    %1395 = vrot.lane.b32.xlu0 %v631, 72
    %v1396 = vpop.permute.xlu0 %1395
    %v1397 = vsel %vm643, %v1390, 0
    %v1399 = vsel %vm643, %v1392, 0
    %v1401 = vsel %vm643, %v1394, 0
    %v1403 = vsel %vm643, %v1396, 0
    %1405 = vmatpush.xpose.msra.mxu0 0.0
    %1406 = vmatpush.xpose.msra.mxu0 0.0
    %1407 = vmatpush.xpose.msra.mxu0 0.0
    %1408 = vmatpush.xpose.msra.mxu0 0.0
    %1409 = vmatpush.xpose.msra.mxu0 0.0
    %1410 = vmatpush.xpose.msra.mxu0 0.0
    %1411 = vmatpush.xpose.msra.mxu0 0.0
    %1412 = vmatpush.xpose.msra.mxu0 0.0
    %1413 = vmatpush.xpose.msra.mxu0 0.0
    %1414 = vmatpush.xpose.msra.mxu0 0.0
    %1415 = vmatpush.xpose.msra.mxu0 0.0
    %1416 = vmatpush.xpose.msra.mxu0 0.0
    %1417 = vmatpush.xpose.msra.mxu0 0.0
    %1418 = vmatpush.xpose.msra.mxu0 0.0
    %1419 = vmatpush.xpose.msra.mxu0 %v1403
    %1420 = vmatpush.xpose.msra.mxu0 %v1401
    %1421 = vmatmul.f32.gmra.mxu0 %v1397
    %v1422 = vpop.f32.mrf.mxu0
    %v1423 = vadd.f32 0.0, %v1422
    %1424 = vmatmul.f32.gmra.mxu0 %v1399
    %v1425 = vpop.f32.mrf.mxu0
    %v1426 = vadd.f32 0.0, %v1425
    %1427 = vdwg.mxu0
    %v1428 = vmul.f32 %v1384, 0.35355338
    %v1429 = vmul.f32 %v1387, 0.35355338
    %v1430 = vmul.f32 %v1423, 0.35355338
    %v1431 = vmul.f32 %v1426, 0.35355338
    %v1432 = vsel %vm716, %v1428, -inf
    %1433 = vmax.xlane.f32.xlu0 %v1432
    %v1434 = vpop.xlane.xlu0 %1433
    %v1435 = vsel %vm716, %v1429, -inf
    %1436 = vmax.xlane.f32.xlu0 %v1435
    %v1437 = vpop.xlane.xlu0 %1436
    %v1438 = vsel %vm716, %v1430, -inf
    %1439 = vmax.xlane.f32.xlu0 %v1438
    %v1440 = vpop.xlane.xlu0 %1439
    %v1441 = vsel %vm716, %v1431, -inf
    %1442 = vmax.xlane.f32.xlu0 %v1441
    %v1443 = vpop.xlane.xlu0 %1442
    %v1444 = vsub.f32 %v1428, %v1434
    %v1445 = vsub.f32 %v1429, %v1437
    %v1446 = vsub.f32 %v1430, %v1440
    %v1447 = vsub.f32 %v1431, %v1443
    %v1448 = vmul.f32 %v1444, 1.442695
    %v1449 = vpow.pop %v1448
    %v1450 = vmul.f32 %v1445, 1.442695
    %v1451 = vpow.pop %v1450
    %v1452 = vmul.f32 %v1446, 1.442695
    %v1453 = vpow.pop %v1452
    %v1454 = vmul.f32 %v1447, 1.442695
    %v1455 = vpow.pop %v1454
    %v1456 = vsel %vm716, %v1449, 0.0
    %1457 = vadd.xlane.f32.xlu0 %v1456
    %v1458 = vpop.xlane.xlu0 %1457
    %v1459 = vsel %vm716, %v1451, 0.0
    %1460 = vadd.xlane.f32.xlu0 %v1459
    %v1461 = vpop.xlane.xlu0 %1460
    %v1462 = vsel %vm716, %v1453, 0.0
    %1463 = vadd.xlane.f32.xlu0 %v1462
    %v1464 = vpop.xlane.xlu0 %1463
    %v1465 = vsel %vm716, %v1455, 0.0
    %1466 = vadd.xlane.f32.xlu0 %v1465
    %v1467 = vpop.xlane.xlu0 %1466
    %v1468 = vrcp.pop %v1458
    %v1469 = vrcp.pop %v1461
    %v1470 = vrcp.pop %v1464
    %v1471 = vrcp.pop %v1467
    %v1472 = vmul.f32 %v1449, %v1468
    %v1473 = vmul.f32 %v1451, %v1469
    %v1474 = vmul.f32 %v1453, %v1470
    %v1475 = vmul.f32 %v1455, %v1471
    %1476 = vrot.lane.b32.xlu0 %v622, 40
    %v1477 = vpop.permute.xlu0 %1476
    %1478 = vrot.lane.b32.xlu0 %v625, 40
    %v1479 = vpop.permute.xlu0 %1478
    %v1483 = vsel %vm716, %v1472, 0
    %v1486 = vsel %vm716, %v1473, 0
    %1488 = vmatpush.msra.mxu0 0.0
    %1489 = vmatpush.msra.mxu0 0.0
    %1490 = vmatpush.msra.mxu0 0.0
    %1491 = vmatpush.msra.mxu0 0.0
    %1492 = vmatpush.msra.mxu0 0.0
    %1493 = vmatpush.msra.mxu0 0.0
    %1494 = vmatpush.msra.mxu0 0.0
    %1495 = vmatpush.msra.mxu0 0.0
    %1496 = vmatpush.msra.mxu0 0.0
    %1497 = vmatpush.msra.mxu0 0.0
    %1498 = vmatpush.msra.mxu0 0.0
    %1499 = vmatpush.msra.mxu0 0.0
    %1500 = vmatpush.msra.mxu0 0.0
    %1501 = vmatpush.msra.mxu0 0.0
    %1502 = vmatpush.msra.mxu0 %v1479
    %1503 = vmatpush.msra.mxu0 %v1477
    %1504 = vmatmul.f32.gmra.mxu0 %v1483
    %v1505 = vpop.f32.mrf.mxu0
    %v1506 = vadd.f32 0.0, %v1505
    %1507 = vmatmul.f32.gmra.mxu0 %v1486
    %v1508 = vpop.f32.mrf.mxu0
    %v1509 = vadd.f32 0.0, %v1508
    %1510 = vdwg.mxu0
    %1511 = vrot.lane.b32.xlu0 %v628, 40
    %v1512 = vpop.permute.xlu0 %1511
    %1513 = vrot.lane.b32.xlu0 %v631, 40
    %v1514 = vpop.permute.xlu0 %1513
    %v1518 = vsel %vm716, %v1474, 0
    %v1521 = vsel %vm716, %v1475, 0
    %1523 = vmatpush.msra.mxu0 0.0
    %1524 = vmatpush.msra.mxu0 0.0
    %1525 = vmatpush.msra.mxu0 0.0
    %1526 = vmatpush.msra.mxu0 0.0
    %1527 = vmatpush.msra.mxu0 0.0
    %1528 = vmatpush.msra.mxu0 0.0
    %1529 = vmatpush.msra.mxu0 0.0
    %1530 = vmatpush.msra.mxu0 0.0
    %1531 = vmatpush.msra.mxu0 0.0
    %1532 = vmatpush.msra.mxu0 0.0
    %1533 = vmatpush.msra.mxu0 0.0
    %1534 = vmatpush.msra.mxu0 0.0
    %1535 = vmatpush.msra.mxu0 0.0
    %1536 = vmatpush.msra.mxu0 0.0
    %1537 = vmatpush.msra.mxu0 %v1514
    %1538 = vmatpush.msra.mxu0 %v1512
    %1539 = vmatmul.f32.gmra.mxu0 %v1518
    %v1540 = vpop.f32.mrf.mxu0
    %v1541 = vadd.f32 0.0, %v1540
    %1542 = vmatmul.f32.gmra.mxu0 %v1521
    %v1543 = vpop.f32.mrf.mxu0
    %v1544 = vadd.f32 0.0, %v1543
    %1545 = vdwg.mxu0
    %v1547 = vsel %vm643, %v1506, 0
    %v1550 = vsel %vm643, %v1509, 0
    %v1553 = vsel %vm643, %v1541, 0
    %v1556 = vsel %vm643, %v1544, 0
    %1558 = vmatpush.msra.mxu0 0.0
    %1559 = vmatpush.msra.mxu0 0.0
    %1560 = vmatpush.msra.mxu0 0.0
    %1561 = vmatpush.msra.mxu0 0.0
    %1562 = vmatpush.msra.mxu0 0.0
    %1563 = vmatpush.msra.mxu0 0.0
    %1564 = vmatpush.msra.mxu0 0.0
    %1565 = vmatpush.msra.mxu0 0.0
    %1566 = vmatpush.msra.mxu0 0.0
    %1567 = vmatpush.msra.mxu0 0.0
    %1568 = vmatpush.msra.mxu0 0.0
    %1569 = vmatpush.msra.mxu0 0.0
    %1570 = vmatpush.msra.mxu0 0.0
    %1571 = vmatpush.msra.mxu0 0.0
    %1572 = vmatpush.msra.mxu0 0.0
    %1573 = vmatpush.msra.mxu0 %v636
    %1574 = vmatmul.f32.gmra.mxu0 %v1547
    %v1575 = vpop.f32.mrf.mxu0
    %v1576 = vadd.f32 0.0, %v1575
    %1577 = vmatmul.f32.gmra.mxu0 %v1550
    %v1578 = vpop.f32.mrf.mxu0
    %v1579 = vadd.f32 0.0, %v1578
    %1580 = vmatmul.f32.gmra.mxu0 %v1553
    %v1581 = vpop.f32.mrf.mxu0
    %v1582 = vadd.f32 0.0, %v1581
    %1583 = vmatmul.f32.gmra.mxu0 %v1556
    %v1584 = vpop.f32.mrf.mxu0
    %v1585 = vadd.f32 0.0, %v1584
    %1586 = vdwg.mxu0
    %v1587 = vadd.f32 %v1346, %v1576
    %v1588 = vadd.f32 %v1347, %v1579
    %v1589 = vadd.f32 %v1348, %v1582
    %v1590 = vadd.f32 %v1349, %v1585
    %v1591 = vld [vmem:[%s17] sm:$0x1]
    %v1593 = vperm.slane %v1591, 0
    %v1595 = vadd.f32 %v1587, %v1593
    %v1596 = vadd.f32 %v1588, %v1593
    %v1597 = vadd.f32 %v1589, %v1593
    %v1598 = vadd.f32 %v1590, %v1593
    %1603 = vrot.lane.b32.xlu0 %v1595, 64
    %v1604 = vpop.permute.xlu0 %1603
    %1605 = vrot.lane.b32.xlu0 %v1596, 64
    %v1606 = vpop.permute.xlu0 %1605
    %1607 = vrot.lane.b32.xlu0 %v1597, 64
    %v1608 = vpop.permute.xlu0 %1607
    %1609 = vrot.lane.b32.xlu0 %v1598, 64
    %v1610 = vpop.permute.xlu0 %1609
    %v1615 = vmul.f32 %v421, %v1604
    %v1616 = vmul.f32 %v424, %v1606
    %v1617 = vmul.f32 %v427, %v1608
    %v1618 = vmul.f32 %v430, %v1610
    %1623 = vrot.lane.b32.xlu0 %v1615, 64
    %v1624 = vpop.permute.xlu0 %1623
    %1625 = vrot.lane.b32.xlu0 %v1616, 64
    %v1626 = vpop.permute.xlu0 %1625
    %1627 = vrot.lane.b32.xlu0 %v1617, 64
    %v1628 = vpop.permute.xlu0 %1627
    %1629 = vrot.lane.b32.xlu0 %v1618, 64
    %v1630 = vpop.permute.xlu0 %1629
    %v1635 = vadd.f32 %v128, %v1624
    %v1636 = vadd.f32 %v131, %v1626
    %v1637 = vadd.f32 %v134, %v1628
    %v1638 = vadd.f32 %v137, %v1630
    %v1639 = vsel %vm250, %v1635, 0.0
    %1640 = vadd.xlane.f32.xlu0 %v1639
    %v1641 = vpop.xlane.xlu0 %1640
    %v1642 = vsel %vm250, %v1636, 0.0
    %1643 = vadd.xlane.f32.xlu0 %v1642
    %v1644 = vpop.xlane.xlu0 %1643
    %v1645 = vsel %vm250, %v1637, 0.0
    %1646 = vadd.xlane.f32.xlu0 %v1645
    %v1647 = vpop.xlane.xlu0 %1646
    %v1648 = vsel %vm250, %v1638, 0.0
    %1649 = vadd.xlane.f32.xlu0 %v1648
    %v1650 = vpop.xlane.xlu0 %1649
    %v1651 = vmul.f32 %v1641, %v479
    %v1652 = vmul.f32 %v1644, %v479
    %v1653 = vmul.f32 %v1647, %v479
    %v1654 = vmul.f32 %v1650, %v479
    %v1655 = vsub.f32 %v1635, %v1651
    %v1656 = vsub.f32 %v1636, %v1652
    %v1657 = vsub.f32 %v1637, %v1653
    %v1658 = vsub.f32 %v1638, %v1654
    %v1659 = vmul.f32 %v1655, %v1655
    %v1660 = vmul.f32 %v1656, %v1656
    %v1661 = vmul.f32 %v1657, %v1657
    %v1662 = vmul.f32 %v1658, %v1658
    %v1663 = vsel %vm250, %v1659, 0.0
    %1664 = vadd.xlane.f32.xlu0 %v1663
    %v1665 = vpop.xlane.xlu0 %1664
    %v1666 = vsel %vm250, %v1660, 0.0
    %1667 = vadd.xlane.f32.xlu0 %v1666
    %v1668 = vpop.xlane.xlu0 %1667
    %v1669 = vsel %vm250, %v1661, 0.0
    %1670 = vadd.xlane.f32.xlu0 %v1669
    %v1671 = vpop.xlane.xlu0 %1670
    %v1672 = vsel %vm250, %v1662, 0.0
    %1673 = vadd.xlane.f32.xlu0 %v1672
    %v1674 = vpop.xlane.xlu0 %1673
    %v1675 = vmul.f32 %v1665, %v479
    %v1676 = vmul.f32 %v1668, %v479
    %v1677 = vmul.f32 %v1671, %v479
    %v1678 = vmul.f32 %v1674, %v479
    %v1679 = vadd.f32 %v1675, 1e-06
    %v1680 = vadd.f32 %v1676, 1e-06
    %v1681 = vadd.f32 %v1677, 1e-06
    %v1682 = vadd.f32 %v1678, 1e-06
    %v1683 = vrsqrt.pop %v1679
    %v1684 = vmul.f32 %v1683, %v1679
    %v1685 = vmul.f32 %v1684, %v1683
    %v1686 = vmul.f32 0.5, %v1685
    %v1687 = vsub.f32 1.5, %v1686
    %v1688 = vmul.f32 %v1683, %v1687
    %vm1689 = vweird.f32 %v1679
    %vm1690 = vweird.f32 %v1683
    %vm1691 = vmor %vm1689, %vm1690
    %v1692 = vsel %vm1691, %v1683, %v1688
    %v1693 = vrsqrt.pop %v1680
    %v1694 = vmul.f32 %v1693, %v1680
    %v1695 = vmul.f32 %v1694, %v1693
    %v1696 = vmul.f32 0.5, %v1695
    %v1697 = vsub.f32 1.5, %v1696
    %v1698 = vmul.f32 %v1693, %v1697
    %vm1699 = vweird.f32 %v1680
    %vm1700 = vweird.f32 %v1693
    %vm1701 = vmor %vm1699, %vm1700
    %v1702 = vsel %vm1701, %v1693, %v1698
    %v1703 = vrsqrt.pop %v1681
    %v1704 = vmul.f32 %v1703, %v1681
    %v1705 = vmul.f32 %v1704, %v1703
    %v1706 = vmul.f32 0.5, %v1705
    %v1707 = vsub.f32 1.5, %v1706
    %v1708 = vmul.f32 %v1703, %v1707
    %vm1709 = vweird.f32 %v1681
    %vm1710 = vweird.f32 %v1703
    %vm1711 = vmor %vm1709, %vm1710
    %v1712 = vsel %vm1711, %v1703, %v1708
    %v1713 = vrsqrt.pop %v1682
    %v1714 = vmul.f32 %v1713, %v1682
    %v1715 = vmul.f32 %v1714, %v1713
    %v1716 = vmul.f32 0.5, %v1715
    %v1717 = vsub.f32 1.5, %v1716
    %v1718 = vmul.f32 %v1713, %v1717
    %vm1719 = vweird.f32 %v1682
    %vm1720 = vweird.f32 %v1713
    %vm1721 = vmor %vm1719, %vm1720
    %v1722 = vsel %vm1721, %v1713, %v1718
    %v1723 = vmul.f32 %v1655, %v1692
    %v1724 = vmul.f32 %v1656, %v1702
    %v1725 = vmul.f32 %v1657, %v1712
    %v1726 = vmul.f32 %v1658, %v1722
    %v1727 = vadd.f32 %v450, 1.0
    %v1728 = vadd.f32 %v453, 1.0
    %v1729 = vadd.f32 %v456, 1.0
    %v1730 = vadd.f32 %v459, 1.0
    %v1731 = vmul.f32 %v1723, %v1727
    %v1732 = vmul.f32 %v1724, %v1728
    %v1733 = vmul.f32 %v1725, %v1729
    %v1734 = vmul.f32 %v1726, %v1730
    %1739 = vrot.lane.b32.xlu0 %v421, 32
    %v1740 = vpop.permute.xlu0 %1739
    %1741 = vrot.lane.b32.xlu0 %v424, 32
    %v1742 = vpop.permute.xlu0 %1741
    %1743 = vrot.lane.b32.xlu0 %v427, 32
    %v1744 = vpop.permute.xlu0 %1743
    %1745 = vrot.lane.b32.xlu0 %v430, 32
    %v1746 = vpop.permute.xlu0 %1745
    %v1751 = vadd.f32 %v1731, %v1740
    %v1752 = vadd.f32 %v1732, %v1742
    %v1753 = vadd.f32 %v1733, %v1744
    %v1754 = vadd.f32 %v1734, %v1746
    %v1755 = vld [vmem:[%s18] sm:$0xff]
    %v1756 = vld [vmem:[%s18 + $0x8] sm:$0xff]
    %v1757 = vld [vmem:[%s18 + $0x10] sm:$0xff]
    %v1758 = vld [vmem:[%s18 + $0x18] sm:$0xff]
    %v1759 = vld [vmem:[%s19] sm:$0x1]
    %v1761 = vperm.slane %v1759, 0
    %v1764 = vsel %vm250, %v1751, 0
    %v1767 = vsel %vm250, %v1752, 0
    %v1770 = vsel %vm250, %v1753, 0
    %v1773 = vsel %vm250, %v1754, 0
    %1775 = vmatpush.msra.mxu0 0.0
    %1776 = vmatpush.msra.mxu0 0.0
    %1777 = vmatpush.msra.mxu0 0.0
    %1778 = vmatpush.msra.mxu0 0.0
    %1779 = vmatpush.msra.mxu0 0.0
    %1780 = vmatpush.msra.mxu0 0.0
    %1781 = vmatpush.msra.mxu0 0.0
    %1782 = vmatpush.msra.mxu0 0.0
    %1783 = vmatpush.msra.mxu0 0.0
    %1784 = vmatpush.msra.mxu0 0.0
    %1785 = vmatpush.msra.mxu0 0.0
    %1786 = vmatpush.msra.mxu0 0.0
    %1787 = vmatpush.msra.mxu0 %v1758
    %1788 = vmatpush.msra.mxu0 %v1757
    %1789 = vmatpush.msra.mxu0 %v1756
    %1790 = vmatpush.msra.mxu0 %v1755
    %1791 = vmatmul.f32.gmra.mxu0 %v1764
    %v1792 = vpop.f32.mrf.mxu0
    %v1793 = vadd.f32 %v1761, %v1792
    %1794 = vmatmul.f32.gmra.mxu0 %v1767
    %v1795 = vpop.f32.mrf.mxu0
    %v1796 = vadd.f32 %v1761, %v1795
    %1797 = vmatmul.f32.gmra.mxu0 %v1770
    %v1798 = vpop.f32.mrf.mxu0
    %v1799 = vadd.f32 %v1761, %v1798
    %1800 = vmatmul.f32.gmra.mxu0 %v1773
    %v1801 = vpop.f32.mrf.mxu0
    %v1802 = vadd.f32 %v1761, %v1801
    %1803 = vdwg.mxu0
    %v1804 = vmul.f32 %v1793, 0.5
    %v1805 = vmul.f32 %v1796, 0.5
    %v1806 = vmul.f32 %v1799, 0.5
    %v1807 = vmul.f32 %v1802, 0.5
    %v1808 = vmul.f32 %v1793, 0.044715
    %v1809 = vmul.f32 %v1796, 0.044715
    %v1810 = vmul.f32 %v1799, 0.044715
    %v1811 = vmul.f32 %v1802, 0.044715
    %v1812 = vmul.f32 %v1808, %v1793
    %v1813 = vmul.f32 %v1809, %v1796
    %v1814 = vmul.f32 %v1810, %v1799
    %v1815 = vmul.f32 %v1811, %v1802
    %v1816 = vmul.f32 %v1812, %v1793
    %v1817 = vmul.f32 %v1813, %v1796
    %v1818 = vmul.f32 %v1814, %v1799
    %v1819 = vmul.f32 %v1815, %v1802
    %v1820 = vadd.f32 %v1793, %v1816
    %v1821 = vadd.f32 %v1796, %v1817
    %v1822 = vadd.f32 %v1799, %v1818
    %v1823 = vadd.f32 %v1802, %v1819
    %v1824 = vmul.f32 %v1820, 0.7978846
    %v1825 = vmul.f32 %v1821, 0.7978846
    %v1826 = vmul.f32 %v1822, 0.7978846
    %v1827 = vmul.f32 %v1823, 0.7978846
    %v1828 = vtanh.pop %v1824
    %v1829 = vtanh.pop %v1825
    %v1830 = vtanh.pop %v1826
    %v1831 = vtanh.pop %v1827
    %v1832 = vadd.f32 %v1828, 1.0
    %v1833 = vadd.f32 %v1829, 1.0
    %v1834 = vadd.f32 %v1830, 1.0
    %v1835 = vadd.f32 %v1831, 1.0
    %v1836 = vmul.f32 %v1804, %v1832
    %v1837 = vmul.f32 %v1805, %v1833
    %v1838 = vmul.f32 %v1806, %v1834
    %v1839 = vmul.f32 %v1807, %v1835
    %v1840 = vld [vmem:[%s20] sm:$0xff]
    %v1841 = vld [vmem:[%s20 + $0x8] sm:$0xff]
    %v1842 = vld [vmem:[%s20 + $0x10] sm:$0xff]
    %v1843 = vld [vmem:[%s20 + $0x18] sm:$0xff]
    %v1844 = vld [vmem:[%s20 + $0x20] sm:$0xff]
    %v1845 = vld [vmem:[%s20 + $0x28] sm:$0xff]
    %v1846 = vld [vmem:[%s20 + $0x30] sm:$0xff]
    %v1847 = vld [vmem:[%s20 + $0x38] sm:$0xff]
    %v1848 = vld [vmem:[%s20 + $0x40] sm:$0xff]
    %v1849 = vld [vmem:[%s20 + $0x48] sm:$0xff]
    %v1850 = vld [vmem:[%s20 + $0x50] sm:$0xff]
    %v1851 = vld [vmem:[%s20 + $0x58] sm:$0xff]
    %v1852 = vld [vmem:[%s20 + $0x60] sm:$0xff]
    %v1853 = vld [vmem:[%s20 + $0x68] sm:$0xff]
    %v1854 = vld [vmem:[%s20 + $0x70] sm:$0xff]
    %v1855 = vld [vmem:[%s20 + $0x78] sm:$0xff]
    %v1856 = vld [vmem:[%s21] sm:$0x1]
    %v1858 = vperm.slane %v1856, 0
    %1860 = vmatpush.msra.mxu0 %v1855
    %1861 = vmatpush.msra.mxu0 %v1854
    %1862 = vmatpush.msra.mxu0 %v1853
    %1863 = vmatpush.msra.mxu0 %v1852
    %1864 = vmatpush.msra.mxu0 %v1851
    %1865 = vmatpush.msra.mxu0 %v1850
    %1866 = vmatpush.msra.mxu0 %v1849
    %1867 = vmatpush.msra.mxu0 %v1848
    %1868 = vmatpush.msra.mxu0 %v1847
    %1869 = vmatpush.msra.mxu0 %v1846
    %1870 = vmatpush.msra.mxu0 %v1845
    %1871 = vmatpush.msra.mxu0 %v1844
    %1872 = vmatpush.msra.mxu0 %v1843
    %1873 = vmatpush.msra.mxu0 %v1842
    %1874 = vmatpush.msra.mxu0 %v1841
    %1875 = vmatpush.msra.mxu0 %v1840
    %1876 = vmatmul.f32.gmra.mxu0 %v1836
    %v1877 = vpop.f32.mrf.mxu0
    %v1878 = vadd.f32 %v1858, %v1877
    %1879 = vmatmul.f32.gmra.mxu0 %v1837
    %v1880 = vpop.f32.mrf.mxu0
    %v1881 = vadd.f32 %v1858, %v1880
    %1882 = vmatmul.f32.gmra.mxu0 %v1838
    %v1883 = vpop.f32.mrf.mxu0
    %v1884 = vadd.f32 %v1858, %v1883
    %1885 = vmatmul.f32.gmra.mxu0 %v1839
    %v1886 = vpop.f32.mrf.mxu0
    %v1887 = vadd.f32 %v1858, %v1886
    %1888 = vdwg.mxu0
    %1893 = vrot.lane.b32.xlu0 %v1878, 32
    %v1894 = vpop.permute.xlu0 %1893
    %1895 = vrot.lane.b32.xlu0 %v1881, 32
    %v1896 = vpop.permute.xlu0 %1895
    %1897 = vrot.lane.b32.xlu0 %v1884, 32
    %v1898 = vpop.permute.xlu0 %1897
    %1899 = vrot.lane.b32.xlu0 %v1887, 32
    %v1900 = vpop.permute.xlu0 %1899
    %v1905 = vmul.f32 %v450, %v1894
    %v1906 = vmul.f32 %v453, %v1896
    %v1907 = vmul.f32 %v456, %v1898
    %v1908 = vmul.f32 %v459, %v1900
    %1913 = vrot.lane.b32.xlu0 %v1905, 96
    %v1914 = vpop.permute.xlu0 %1913
    %1915 = vrot.lane.b32.xlu0 %v1906, 96
    %v1916 = vpop.permute.xlu0 %1915
    %1917 = vrot.lane.b32.xlu0 %v1907, 96
    %v1918 = vpop.permute.xlu0 %1917
    %1919 = vrot.lane.b32.xlu0 %v1908, 96
    %v1920 = vpop.permute.xlu0 %1919
    %v1925 = vadd.f32 %v1635, %v1914
    %v1926 = vadd.f32 %v1636, %v1916
    %v1927 = vadd.f32 %v1637, %v1918
    %v1928 = vadd.f32 %v1638, %v1920
    %s1929 = scalar_lea.vmem %s12, 64
    %v1930 = vld [vmem:[%s1929] sm:$0xff]
    %v1931 = vld [vmem:[%s1929 + $0x8] sm:$0xff]
    %v1932 = vld [vmem:[%s1929 + $0x10] sm:$0xff]
    %v1933 = vld [vmem:[%s1929 + $0x18] sm:$0xff]
    %v1934 = vld [vmem:[%s1929 + $0x20] sm:$0xff]
    %v1935 = vld [vmem:[%s1929 + $0x28] sm:$0xff]
    %v1936 = vld [vmem:[%s1929 + $0x30] sm:$0xff]
    %v1937 = vld [vmem:[%s1929 + $0x38] sm:$0xff]
    %s1938 = scalar_lea.vmem %s13, 2
    %v1939 = vld [vmem:[%s1938] sm:$0x3]
    %v1941 = vperm.slane %v1939, 0
    %v1942 = vperm.slane %v1939, 1
    %1945 = vmatpush.msra.mxu0 0.0
    %1946 = vmatpush.msra.mxu0 0.0
    %1947 = vmatpush.msra.mxu0 0.0
    %1948 = vmatpush.msra.mxu0 0.0
    %1949 = vmatpush.msra.mxu0 0.0
    %1950 = vmatpush.msra.mxu0 0.0
    %1951 = vmatpush.msra.mxu0 0.0
    %1952 = vmatpush.msra.mxu0 0.0
    %1953 = vmatpush.msra.mxu0 0.0
    %1954 = vmatpush.msra.mxu0 0.0
    %1955 = vmatpush.msra.mxu0 0.0
    %1956 = vmatpush.msra.mxu0 0.0
    %1957 = vmatpush.msra.mxu0 %v1936
    %1958 = vmatpush.msra.mxu0 %v1934
    %1959 = vmatpush.msra.mxu0 %v1932
    %1960 = vmatpush.msra.mxu0 %v1930
    %1961 = vmatmul.f32.gmra.mxu0 %v392
    %v1962 = vpop.f32.mrf.mxu0
    %v1963 = vadd.f32 %v1941, %v1962
    %1964 = vmatmul.f32.gmra.mxu0 %v395
    %v1965 = vpop.f32.mrf.mxu0
    %v1966 = vadd.f32 %v1941, %v1965
    %1967 = vmatmul.f32.gmra.mxu0 %v398
    %v1968 = vpop.f32.mrf.mxu0
    %v1969 = vadd.f32 %v1941, %v1968
    %1970 = vmatmul.f32.gmra.mxu0 %v401
    %v1971 = vpop.f32.mrf.mxu0
    %v1972 = vadd.f32 %v1941, %v1971
    %1973 = vdwg.mxu0
    %1974 = vmatpush.msra.mxu0 0.0
    %1975 = vmatpush.msra.mxu0 0.0
    %1976 = vmatpush.msra.mxu0 0.0
    %1977 = vmatpush.msra.mxu0 0.0
    %1978 = vmatpush.msra.mxu0 0.0
    %1979 = vmatpush.msra.mxu0 0.0
    %1980 = vmatpush.msra.mxu0 0.0
    %1981 = vmatpush.msra.mxu0 0.0
    %1982 = vmatpush.msra.mxu0 0.0
    %1983 = vmatpush.msra.mxu0 0.0
    %1984 = vmatpush.msra.mxu0 0.0
    %1985 = vmatpush.msra.mxu0 0.0
    %1986 = vmatpush.msra.mxu0 %v1937
    %1987 = vmatpush.msra.mxu0 %v1935
    %1988 = vmatpush.msra.mxu0 %v1933
    %1989 = vmatpush.msra.mxu0 %v1931
    %1990 = vmatmul.f32.gmra.mxu0 %v392
    %v1991 = vpop.f32.mrf.mxu0
    %v1992 = vadd.f32 %v1942, %v1991
    %1993 = vmatmul.f32.gmra.mxu0 %v395
    %v1994 = vpop.f32.mrf.mxu0
    %v1995 = vadd.f32 %v1942, %v1994
    %1996 = vmatmul.f32.gmra.mxu0 %v398
    %v1997 = vpop.f32.mrf.mxu0
    %v1998 = vadd.f32 %v1942, %v1997
    %1999 = vmatmul.f32.gmra.mxu0 %v401
    %v2000 = vpop.f32.mrf.mxu0
    %v2001 = vadd.f32 %v1942, %v2000
    %2002 = vdwg.mxu0
    %v2003 = vsel %vm250, %v1925, 0.0
    %2004 = vadd.xlane.f32.xlu0 %v2003
    %v2005 = vpop.xlane.xlu0 %2004
    %v2006 = vsel %vm250, %v1926, 0.0
    %2007 = vadd.xlane.f32.xlu0 %v2006
    %v2008 = vpop.xlane.xlu0 %2007
    %v2009 = vsel %vm250, %v1927, 0.0
    %2010 = vadd.xlane.f32.xlu0 %v2009
    %v2011 = vpop.xlane.xlu0 %2010
    %v2012 = vsel %vm250, %v1928, 0.0
    %2013 = vadd.xlane.f32.xlu0 %v2012
    %v2014 = vpop.xlane.xlu0 %2013
    %v2015 = vmul.f32 %v2005, %v479
    %v2016 = vmul.f32 %v2008, %v479
    %v2017 = vmul.f32 %v2011, %v479
    %v2018 = vmul.f32 %v2014, %v479
    %v2019 = vsub.f32 %v1925, %v2015
    %v2020 = vsub.f32 %v1926, %v2016
    %v2021 = vsub.f32 %v1927, %v2017
    %v2022 = vsub.f32 %v1928, %v2018
    %v2023 = vmul.f32 %v2019, %v2019
    %v2024 = vmul.f32 %v2020, %v2020
    %v2025 = vmul.f32 %v2021, %v2021
    %v2026 = vmul.f32 %v2022, %v2022
    %v2027 = vsel %vm250, %v2023, 0.0
    %2028 = vadd.xlane.f32.xlu0 %v2027
    %v2029 = vpop.xlane.xlu0 %2028
    %v2030 = vsel %vm250, %v2024, 0.0
    %2031 = vadd.xlane.f32.xlu0 %v2030
    %v2032 = vpop.xlane.xlu0 %2031
    %v2033 = vsel %vm250, %v2025, 0.0
    %2034 = vadd.xlane.f32.xlu0 %v2033
    %v2035 = vpop.xlane.xlu0 %2034
    %v2036 = vsel %vm250, %v2026, 0.0
    %2037 = vadd.xlane.f32.xlu0 %v2036
    %v2038 = vpop.xlane.xlu0 %2037
    %v2039 = vmul.f32 %v2029, %v479
    %v2040 = vmul.f32 %v2032, %v479
    %v2041 = vmul.f32 %v2035, %v479
    %v2042 = vmul.f32 %v2038, %v479
    %v2043 = vadd.f32 %v2039, 1e-06
    %v2044 = vadd.f32 %v2040, 1e-06
    %v2045 = vadd.f32 %v2041, 1e-06
    %v2046 = vadd.f32 %v2042, 1e-06
    %v2047 = vrsqrt.pop %v2043
    %v2048 = vmul.f32 %v2047, %v2043
    %v2049 = vmul.f32 %v2048, %v2047
    %v2050 = vmul.f32 0.5, %v2049
    %v2051 = vsub.f32 1.5, %v2050
    %v2052 = vmul.f32 %v2047, %v2051
    %vm2053 = vweird.f32 %v2043
    %vm2054 = vweird.f32 %v2047
    %vm2055 = vmor %vm2053, %vm2054
    %v2056 = vsel %vm2055, %v2047, %v2052
    %v2057 = vrsqrt.pop %v2044
    %v2058 = vmul.f32 %v2057, %v2044
    %v2059 = vmul.f32 %v2058, %v2057
    %v2060 = vmul.f32 0.5, %v2059
    %v2061 = vsub.f32 1.5, %v2060
    %v2062 = vmul.f32 %v2057, %v2061
    %vm2063 = vweird.f32 %v2044
    %vm2064 = vweird.f32 %v2057
    %vm2065 = vmor %vm2063, %vm2064
    %v2066 = vsel %vm2065, %v2057, %v2062
    %v2067 = vrsqrt.pop %v2045
    %v2068 = vmul.f32 %v2067, %v2045
    %v2069 = vmul.f32 %v2068, %v2067
    %v2070 = vmul.f32 0.5, %v2069
    %v2071 = vsub.f32 1.5, %v2070
    %v2072 = vmul.f32 %v2067, %v2071
    %vm2073 = vweird.f32 %v2045
    %vm2074 = vweird.f32 %v2067
    %vm2075 = vmor %vm2073, %vm2074
    %v2076 = vsel %vm2075, %v2067, %v2072
    %v2077 = vrsqrt.pop %v2046
    %v2078 = vmul.f32 %v2077, %v2046
    %v2079 = vmul.f32 %v2078, %v2077
    %v2080 = vmul.f32 0.5, %v2079
    %v2081 = vsub.f32 1.5, %v2080
    %v2082 = vmul.f32 %v2077, %v2081
    %vm2083 = vweird.f32 %v2046
    %vm2084 = vweird.f32 %v2077
    %vm2085 = vmor %vm2083, %vm2084
    %v2086 = vsel %vm2085, %v2077, %v2082
    %v2087 = vmul.f32 %v2019, %v2056
    %v2088 = vmul.f32 %v2020, %v2066
    %v2089 = vmul.f32 %v2021, %v2076
    %v2090 = vmul.f32 %v2022, %v2086
    %v2091 = vadd.f32 %v1963, 1.0
    %v2092 = vadd.f32 %v1966, 1.0
    %v2093 = vadd.f32 %v1969, 1.0
    %v2094 = vadd.f32 %v1972, 1.0
    %2099 = vrot.lane.b32.xlu0 %v2091, 96
    %v2100 = vpop.permute.xlu0 %2099
    %2101 = vrot.lane.b32.xlu0 %v2092, 96
    %v2102 = vpop.permute.xlu0 %2101
    %2103 = vrot.lane.b32.xlu0 %v2093, 96
    %v2104 = vpop.permute.xlu0 %2103
    %2105 = vrot.lane.b32.xlu0 %v2094, 96
    %v2106 = vpop.permute.xlu0 %2105
    %v2111 = vmul.f32 %v2087, %v2100
    %v2112 = vmul.f32 %v2088, %v2102
    %v2113 = vmul.f32 %v2089, %v2104
    %v2114 = vmul.f32 %v2090, %v2106
    %v2115 = vadd.f32 %v2111, %v1963
    %v2116 = vadd.f32 %v2112, %v1966
    %v2117 = vadd.f32 %v2113, %v1969
    %v2118 = vadd.f32 %v2114, %v1972
    %s2119 = scalar_lea.vmem %s14, 32
    %v2120 = vld [vmem:[%s2119] sm:$0xff]
    %v2121 = vld [vmem:[%s2119 + $0x8] sm:$0xff]
    %v2122 = vld [vmem:[%s2119 + $0x10] sm:$0xff]
    %v2123 = vld [vmem:[%s2119 + $0x18] sm:$0xff]
    %s2124 = scalar_lea.vmem %s15, 1
    %v2125 = vld [vmem:[%s2124] sm:$0x1]
    %v2127 = vperm.slane %v2125, 0
    %v2130 = vsel %vm250, %v2115, 0
    %v2133 = vsel %vm250, %v2116, 0
    %v2136 = vsel %vm250, %v2117, 0
    %v2139 = vsel %vm250, %v2118, 0
    %2141 = vmatpush.msra.mxu0 0.0
    %2142 = vmatpush.msra.mxu0 0.0
    %2143 = vmatpush.msra.mxu0 0.0
    %2144 = vmatpush.msra.mxu0 0.0
    %2145 = vmatpush.msra.mxu0 0.0
    %2146 = vmatpush.msra.mxu0 0.0
    %2147 = vmatpush.msra.mxu0 0.0
    %2148 = vmatpush.msra.mxu0 0.0
    %2149 = vmatpush.msra.mxu0 0.0
    %2150 = vmatpush.msra.mxu0 0.0
    %2151 = vmatpush.msra.mxu0 0.0
    %2152 = vmatpush.msra.mxu0 0.0
    %2153 = vmatpush.msra.mxu0 %v2123
    %2154 = vmatpush.msra.mxu0 %v2122
    %2155 = vmatpush.msra.mxu0 %v2121
    %2156 = vmatpush.msra.mxu0 %v2120
    %2157 = vmatmul.f32.gmra.mxu0 %v2130
    %v2158 = vpop.f32.mrf.mxu0
    %v2159 = vadd.f32 %v2127, %v2158
    %2160 = vmatmul.f32.gmra.mxu0 %v2133
    %v2161 = vpop.f32.mrf.mxu0
    %v2162 = vadd.f32 %v2127, %v2161
    %2163 = vmatmul.f32.gmra.mxu0 %v2136
    %v2164 = vpop.f32.mrf.mxu0
    %v2165 = vadd.f32 %v2127, %v2164
    %2166 = vmatmul.f32.gmra.mxu0 %v2139
    %v2167 = vpop.f32.mrf.mxu0
    %v2168 = vadd.f32 %v2127, %v2167
    %2169 = vdwg.mxu0
    %s2170 = scalar_lea.vmem %s16, 32
    %v2171 = vld [vmem:[%s2170] sm:$0xff]
    %v2172 = vld [vmem:[%s2170 + $0x8] sm:$0xff]
    %v2173 = vld [vmem:[%s2170 + $0x10] sm:$0xff]
    %v2174 = vld [vmem:[%s2170 + $0x18] sm:$0xff]
    %2177 = vrot.lane.b32.xlu0 %v2159, 96
    %v2178 = vpop.permute.xlu0 %2177
    %2179 = vrot.lane.b32.xlu0 %v2162, 96
    %v2180 = vpop.permute.xlu0 %2179
    %v2181 = vsel %vm643, %v2159, 0
    %v2183 = vsel %vm643, %v2162, 0
    %v2185 = vsel %vm643, %v2178, 0
    %v2187 = vsel %vm643, %v2180, 0
    %2189 = vmatpush.xpose.msra.mxu0 0.0
    %2190 = vmatpush.xpose.msra.mxu0 0.0
    %2191 = vmatpush.xpose.msra.mxu0 0.0
    %2192 = vmatpush.xpose.msra.mxu0 0.0
    %2193 = vmatpush.xpose.msra.mxu0 0.0
    %2194 = vmatpush.xpose.msra.mxu0 0.0
    %2195 = vmatpush.xpose.msra.mxu0 0.0
    %2196 = vmatpush.xpose.msra.mxu0 0.0
    %2197 = vmatpush.xpose.msra.mxu0 0.0
    %2198 = vmatpush.xpose.msra.mxu0 0.0
    %2199 = vmatpush.xpose.msra.mxu0 0.0
    %2200 = vmatpush.xpose.msra.mxu0 0.0
    %2201 = vmatpush.xpose.msra.mxu0 0.0
    %2202 = vmatpush.xpose.msra.mxu0 0.0
    %2203 = vmatpush.xpose.msra.mxu0 %v2187
    %2204 = vmatpush.xpose.msra.mxu0 %v2185
    %2205 = vmatmul.f32.gmra.mxu0 %v2181
    %v2206 = vpop.f32.mrf.mxu0
    %v2207 = vadd.f32 0.0, %v2206
    %2208 = vmatmul.f32.gmra.mxu0 %v2183
    %v2209 = vpop.f32.mrf.mxu0
    %v2210 = vadd.f32 0.0, %v2209
    %2211 = vdwg.mxu0
    %2214 = vrot.lane.b32.xlu0 %v2165, 96
    %v2215 = vpop.permute.xlu0 %2214
    %2216 = vrot.lane.b32.xlu0 %v2168, 96
    %v2217 = vpop.permute.xlu0 %2216
    %v2218 = vsel %vm643, %v2165, 0
    %v2220 = vsel %vm643, %v2168, 0
    %v2222 = vsel %vm643, %v2215, 0
    %v2224 = vsel %vm643, %v2217, 0
    %2226 = vmatpush.xpose.msra.mxu0 0.0
    %2227 = vmatpush.xpose.msra.mxu0 0.0
    %2228 = vmatpush.xpose.msra.mxu0 0.0
    %2229 = vmatpush.xpose.msra.mxu0 0.0
    %2230 = vmatpush.xpose.msra.mxu0 0.0
    %2231 = vmatpush.xpose.msra.mxu0 0.0
    %2232 = vmatpush.xpose.msra.mxu0 0.0
    %2233 = vmatpush.xpose.msra.mxu0 0.0
    %2234 = vmatpush.xpose.msra.mxu0 0.0
    %2235 = vmatpush.xpose.msra.mxu0 0.0
    %2236 = vmatpush.xpose.msra.mxu0 0.0
    %2237 = vmatpush.xpose.msra.mxu0 0.0
    %2238 = vmatpush.xpose.msra.mxu0 0.0
    %2239 = vmatpush.xpose.msra.mxu0 0.0
    %2240 = vmatpush.xpose.msra.mxu0 %v2224
    %2241 = vmatpush.xpose.msra.mxu0 %v2222
    %2242 = vmatmul.f32.gmra.mxu0 %v2218
    %v2243 = vpop.f32.mrf.mxu0
    %v2244 = vadd.f32 0.0, %v2243
    %2245 = vmatmul.f32.gmra.mxu0 %v2220
    %v2246 = vpop.f32.mrf.mxu0
    %v2247 = vadd.f32 0.0, %v2246
    %2248 = vdwg.mxu0
    %v2249 = vmul.f32 %v2207, 0.35355338
    %v2250 = vmul.f32 %v2210, 0.35355338
    %v2251 = vmul.f32 %v2244, 0.35355338
    %v2252 = vmul.f32 %v2247, 0.35355338
    %v2253 = vsel %vm716, %v2249, -inf
    %2254 = vmax.xlane.f32.xlu0 %v2253
    %v2255 = vpop.xlane.xlu0 %2254
    %v2256 = vsel %vm716, %v2250, -inf
    %2257 = vmax.xlane.f32.xlu0 %v2256
    %v2258 = vpop.xlane.xlu0 %2257
    %v2259 = vsel %vm716, %v2251, -inf
    %2260 = vmax.xlane.f32.xlu0 %v2259
    %v2261 = vpop.xlane.xlu0 %2260
    %v2262 = vsel %vm716, %v2252, -inf
    %2263 = vmax.xlane.f32.xlu0 %v2262
    %v2264 = vpop.xlane.xlu0 %2263
    %v2265 = vsub.f32 %v2249, %v2255
    %v2266 = vsub.f32 %v2250, %v2258
    %v2267 = vsub.f32 %v2251, %v2261
    %v2268 = vsub.f32 %v2252, %v2264
    %v2269 = vmul.f32 %v2265, 1.442695
    %v2270 = vpow.pop %v2269
    %v2271 = vmul.f32 %v2266, 1.442695
    %v2272 = vpow.pop %v2271
    %v2273 = vmul.f32 %v2267, 1.442695
    %v2274 = vpow.pop %v2273
    %v2275 = vmul.f32 %v2268, 1.442695
    %v2276 = vpow.pop %v2275
    %v2277 = vsel %vm716, %v2270, 0.0
    %2278 = vadd.xlane.f32.xlu0 %v2277
    %v2279 = vpop.xlane.xlu0 %2278
    %v2280 = vsel %vm716, %v2272, 0.0
    %2281 = vadd.xlane.f32.xlu0 %v2280
    %v2282 = vpop.xlane.xlu0 %2281
    %v2283 = vsel %vm716, %v2274, 0.0
    %2284 = vadd.xlane.f32.xlu0 %v2283
    %v2285 = vpop.xlane.xlu0 %2284
    %v2286 = vsel %vm716, %v2276, 0.0
    %2287 = vadd.xlane.f32.xlu0 %v2286
    %v2288 = vpop.xlane.xlu0 %2287
    %v2289 = vrcp.pop %v2279
    %v2290 = vrcp.pop %v2282
    %v2291 = vrcp.pop %v2285
    %v2292 = vrcp.pop %v2288
    %v2293 = vmul.f32 %v2270, %v2289
    %v2294 = vmul.f32 %v2272, %v2290
    %v2295 = vmul.f32 %v2274, %v2291
    %v2296 = vmul.f32 %v2276, %v2292
    %2297 = vrot.lane.b32.xlu0 %v2159, 64
    %v2298 = vpop.permute.xlu0 %2297
    %2299 = vrot.lane.b32.xlu0 %v2162, 64
    %v2300 = vpop.permute.xlu0 %2299
    %v2304 = vsel %vm716, %v2293, 0
    %v2307 = vsel %vm716, %v2294, 0
    %2309 = vmatpush.msra.mxu0 0.0
    %2310 = vmatpush.msra.mxu0 0.0
    %2311 = vmatpush.msra.mxu0 0.0
    %2312 = vmatpush.msra.mxu0 0.0
    %2313 = vmatpush.msra.mxu0 0.0
    %2314 = vmatpush.msra.mxu0 0.0
    %2315 = vmatpush.msra.mxu0 0.0
    %2316 = vmatpush.msra.mxu0 0.0
    %2317 = vmatpush.msra.mxu0 0.0
    %2318 = vmatpush.msra.mxu0 0.0
    %2319 = vmatpush.msra.mxu0 0.0
    %2320 = vmatpush.msra.mxu0 0.0
    %2321 = vmatpush.msra.mxu0 0.0
    %2322 = vmatpush.msra.mxu0 0.0
    %2323 = vmatpush.msra.mxu0 %v2300
    %2324 = vmatpush.msra.mxu0 %v2298
    %2325 = vmatmul.f32.gmra.mxu0 %v2304
    %v2326 = vpop.f32.mrf.mxu0
    %v2327 = vadd.f32 0.0, %v2326
    %2328 = vmatmul.f32.gmra.mxu0 %v2307
    %v2329 = vpop.f32.mrf.mxu0
    %v2330 = vadd.f32 0.0, %v2329
    %2331 = vdwg.mxu0
    %2332 = vrot.lane.b32.xlu0 %v2165, 64
    %v2333 = vpop.permute.xlu0 %2332
    %2334 = vrot.lane.b32.xlu0 %v2168, 64
    %v2335 = vpop.permute.xlu0 %2334
    %v2339 = vsel %vm716, %v2295, 0
    %v2342 = vsel %vm716, %v2296, 0
    %2344 = vmatpush.msra.mxu0 0.0
    %2345 = vmatpush.msra.mxu0 0.0
    %2346 = vmatpush.msra.mxu0 0.0
    %2347 = vmatpush.msra.mxu0 0.0
    %2348 = vmatpush.msra.mxu0 0.0
    %2349 = vmatpush.msra.mxu0 0.0
    %2350 = vmatpush.msra.mxu0 0.0
    %2351 = vmatpush.msra.mxu0 0.0
    %2352 = vmatpush.msra.mxu0 0.0
    %2353 = vmatpush.msra.mxu0 0.0
    %2354 = vmatpush.msra.mxu0 0.0
    %2355 = vmatpush.msra.mxu0 0.0
    %2356 = vmatpush.msra.mxu0 0.0
    %2357 = vmatpush.msra.mxu0 0.0
    %2358 = vmatpush.msra.mxu0 %v2335
    %2359 = vmatpush.msra.mxu0 %v2333
    %2360 = vmatmul.f32.gmra.mxu0 %v2339
    %v2361 = vpop.f32.mrf.mxu0
    %v2362 = vadd.f32 0.0, %v2361
    %2363 = vmatmul.f32.gmra.mxu0 %v2342
    %v2364 = vpop.f32.mrf.mxu0
    %v2365 = vadd.f32 0.0, %v2364
    %2366 = vdwg.mxu0
    %2367 = vrot.lane.b32.xlu0 %v2159, 120
    %v2368 = vpop.permute.xlu0 %2367
    %2369 = vrot.lane.b32.xlu0 %v2162, 120
    %v2370 = vpop.permute.xlu0 %2369
    %2371 = vrot.lane.b32.xlu0 %v2159, 88
    %v2372 = vpop.permute.xlu0 %2371
    %2373 = vrot.lane.b32.xlu0 %v2162, 88
    %v2374 = vpop.permute.xlu0 %2373
    %v2375 = vsel %vm643, %v2368, 0
    %v2377 = vsel %vm643, %v2370, 0
    %v2379 = vsel %vm643, %v2372, 0
    %v2381 = vsel %vm643, %v2374, 0
    %2383 = vmatpush.xpose.msra.mxu0 0.0
    %2384 = vmatpush.xpose.msra.mxu0 0.0
    %2385 = vmatpush.xpose.msra.mxu0 0.0
    %2386 = vmatpush.xpose.msra.mxu0 0.0
    %2387 = vmatpush.xpose.msra.mxu0 0.0
    %2388 = vmatpush.xpose.msra.mxu0 0.0
    %2389 = vmatpush.xpose.msra.mxu0 0.0
    %2390 = vmatpush.xpose.msra.mxu0 0.0
    %2391 = vmatpush.xpose.msra.mxu0 0.0
    %2392 = vmatpush.xpose.msra.mxu0 0.0
    %2393 = vmatpush.xpose.msra.mxu0 0.0
    %2394 = vmatpush.xpose.msra.mxu0 0.0
    %2395 = vmatpush.xpose.msra.mxu0 0.0
    %2396 = vmatpush.xpose.msra.mxu0 0.0
    %2397 = vmatpush.xpose.msra.mxu0 %v2381
    %2398 = vmatpush.xpose.msra.mxu0 %v2379
    %2399 = vmatmul.f32.gmra.mxu0 %v2375
    %v2400 = vpop.f32.mrf.mxu0
    %v2401 = vadd.f32 0.0, %v2400
    %2402 = vmatmul.f32.gmra.mxu0 %v2377
    %v2403 = vpop.f32.mrf.mxu0
    %v2404 = vadd.f32 0.0, %v2403
    %2405 = vdwg.mxu0
    %2406 = vrot.lane.b32.xlu0 %v2165, 120
    %v2407 = vpop.permute.xlu0 %2406
    %2408 = vrot.lane.b32.xlu0 %v2168, 120
    %v2409 = vpop.permute.xlu0 %2408
    %2410 = vrot.lane.b32.xlu0 %v2165, 88
    %v2411 = vpop.permute.xlu0 %2410
    %2412 = vrot.lane.b32.xlu0 %v2168, 88
    %v2413 = vpop.permute.xlu0 %2412
    %v2414 = vsel %vm643, %v2407, 0
    %v2416 = vsel %vm643, %v2409, 0
    %v2418 = vsel %vm643, %v2411, 0
    %v2420 = vsel %vm643, %v2413, 0
    %2422 = vmatpush.xpose.msra.mxu0 0.0
    %2423 = vmatpush.xpose.msra.mxu0 0.0
    %2424 = vmatpush.xpose.msra.mxu0 0.0
    %2425 = vmatpush.xpose.msra.mxu0 0.0
    %2426 = vmatpush.xpose.msra.mxu0 0.0
    %2427 = vmatpush.xpose.msra.mxu0 0.0
    %2428 = vmatpush.xpose.msra.mxu0 0.0
    %2429 = vmatpush.xpose.msra.mxu0 0.0
    %2430 = vmatpush.xpose.msra.mxu0 0.0
    %2431 = vmatpush.xpose.msra.mxu0 0.0
    %2432 = vmatpush.xpose.msra.mxu0 0.0
    %2433 = vmatpush.xpose.msra.mxu0 0.0
    %2434 = vmatpush.xpose.msra.mxu0 0.0
    %2435 = vmatpush.xpose.msra.mxu0 0.0
    %2436 = vmatpush.xpose.msra.mxu0 %v2420
    %2437 = vmatpush.xpose.msra.mxu0 %v2418
    %2438 = vmatmul.f32.gmra.mxu0 %v2414
    %v2439 = vpop.f32.mrf.mxu0
    %v2440 = vadd.f32 0.0, %v2439
    %2441 = vmatmul.f32.gmra.mxu0 %v2416
    %v2442 = vpop.f32.mrf.mxu0
    %v2443 = vadd.f32 0.0, %v2442
    %2444 = vdwg.mxu0
    %v2445 = vmul.f32 %v2401, 0.35355338
    %v2446 = vmul.f32 %v2404, 0.35355338
    %v2447 = vmul.f32 %v2440, 0.35355338
    %v2448 = vmul.f32 %v2443, 0.35355338
    %v2449 = vsel %vm716, %v2445, -inf
    %2450 = vmax.xlane.f32.xlu0 %v2449
    %v2451 = vpop.xlane.xlu0 %2450
    %v2452 = vsel %vm716, %v2446, -inf
    %2453 = vmax.xlane.f32.xlu0 %v2452
    %v2454 = vpop.xlane.xlu0 %2453
    %v2455 = vsel %vm716, %v2447, -inf
    %2456 = vmax.xlane.f32.xlu0 %v2455
    %v2457 = vpop.xlane.xlu0 %2456
    %v2458 = vsel %vm716, %v2448, -inf
    %2459 = vmax.xlane.f32.xlu0 %v2458
    %v2460 = vpop.xlane.xlu0 %2459
    %v2461 = vsub.f32 %v2445, %v2451
    %v2462 = vsub.f32 %v2446, %v2454
    %v2463 = vsub.f32 %v2447, %v2457
    %v2464 = vsub.f32 %v2448, %v2460
    %v2465 = vmul.f32 %v2461, 1.442695
    %v2466 = vpow.pop %v2465
    %v2467 = vmul.f32 %v2462, 1.442695
    %v2468 = vpow.pop %v2467
    %v2469 = vmul.f32 %v2463, 1.442695
    %v2470 = vpow.pop %v2469
    %v2471 = vmul.f32 %v2464, 1.442695
    %v2472 = vpow.pop %v2471
    %v2473 = vsel %vm716, %v2466, 0.0
    %2474 = vadd.xlane.f32.xlu0 %v2473
    %v2475 = vpop.xlane.xlu0 %2474
    %v2476 = vsel %vm716, %v2468, 0.0
    %2477 = vadd.xlane.f32.xlu0 %v2476
    %v2478 = vpop.xlane.xlu0 %2477
    %v2479 = vsel %vm716, %v2470, 0.0
    %2480 = vadd.xlane.f32.xlu0 %v2479
    %v2481 = vpop.xlane.xlu0 %2480
    %v2482 = vsel %vm716, %v2472, 0.0
    %2483 = vadd.xlane.f32.xlu0 %v2482
    %v2484 = vpop.xlane.xlu0 %2483
    %v2485 = vrcp.pop %v2475
    %v2486 = vrcp.pop %v2478
    %v2487 = vrcp.pop %v2481
    %v2488 = vrcp.pop %v2484
    %v2489 = vmul.f32 %v2466, %v2485
    %v2490 = vmul.f32 %v2468, %v2486
    %v2491 = vmul.f32 %v2470, %v2487
    %v2492 = vmul.f32 %v2472, %v2488
    %2493 = vrot.lane.b32.xlu0 %v2159, 56
    %v2494 = vpop.permute.xlu0 %2493
    %2495 = vrot.lane.b32.xlu0 %v2162, 56
    %v2496 = vpop.permute.xlu0 %2495
    %v2500 = vsel %vm716, %v2489, 0
    %v2503 = vsel %vm716, %v2490, 0
    %2505 = vmatpush.msra.mxu0 0.0
    %2506 = vmatpush.msra.mxu0 0.0
    %2507 = vmatpush.msra.mxu0 0.0
    %2508 = vmatpush.msra.mxu0 0.0
    %2509 = vmatpush.msra.mxu0 0.0
    %2510 = vmatpush.msra.mxu0 0.0
    %2511 = vmatpush.msra.mxu0 0.0
    %2512 = vmatpush.msra.mxu0 0.0
    %2513 = vmatpush.msra.mxu0 0.0
    %2514 = vmatpush.msra.mxu0 0.0
    %2515 = vmatpush.msra.mxu0 0.0
    %2516 = vmatpush.msra.mxu0 0.0
    %2517 = vmatpush.msra.mxu0 0.0
    %2518 = vmatpush.msra.mxu0 0.0
    %2519 = vmatpush.msra.mxu0 %v2496
    %2520 = vmatpush.msra.mxu0 %v2494
    %2521 = vmatmul.f32.gmra.mxu0 %v2500
    %v2522 = vpop.f32.mrf.mxu0
    %v2523 = vadd.f32 0.0, %v2522
    %2524 = vmatmul.f32.gmra.mxu0 %v2503
    %v2525 = vpop.f32.mrf.mxu0
    %v2526 = vadd.f32 0.0, %v2525
    %2527 = vdwg.mxu0
    %2528 = vrot.lane.b32.xlu0 %v2165, 56
    %v2529 = vpop.permute.xlu0 %2528
    %2530 = vrot.lane.b32.xlu0 %v2168, 56
    %v2531 = vpop.permute.xlu0 %2530
    %v2535 = vsel %vm716, %v2491, 0
    %v2538 = vsel %vm716, %v2492, 0
    %2540 = vmatpush.msra.mxu0 0.0
    %2541 = vmatpush.msra.mxu0 0.0
    %2542 = vmatpush.msra.mxu0 0.0
    %2543 = vmatpush.msra.mxu0 0.0
    %2544 = vmatpush.msra.mxu0 0.0
    %2545 = vmatpush.msra.mxu0 0.0
    %2546 = vmatpush.msra.mxu0 0.0
    %2547 = vmatpush.msra.mxu0 0.0
    %2548 = vmatpush.msra.mxu0 0.0
    %2549 = vmatpush.msra.mxu0 0.0
    %2550 = vmatpush.msra.mxu0 0.0
    %2551 = vmatpush.msra.mxu0 0.0
    %2552 = vmatpush.msra.mxu0 0.0
    %2553 = vmatpush.msra.mxu0 0.0
    %2554 = vmatpush.msra.mxu0 %v2531
    %2555 = vmatpush.msra.mxu0 %v2529
    %2556 = vmatmul.f32.gmra.mxu0 %v2535
    %v2557 = vpop.f32.mrf.mxu0
    %v2558 = vadd.f32 0.0, %v2557
    %2559 = vmatmul.f32.gmra.mxu0 %v2538
    %v2560 = vpop.f32.mrf.mxu0
    %v2561 = vadd.f32 0.0, %v2560
    %2562 = vdwg.mxu0
    %v2564 = vsel %vm643, %v2523, 0
    %v2567 = vsel %vm643, %v2526, 0
    %v2570 = vsel %vm643, %v2558, 0
    %v2573 = vsel %vm643, %v2561, 0
    %2575 = vmatpush.msra.mxu0 0.0
    %2576 = vmatpush.msra.mxu0 0.0
    %2577 = vmatpush.msra.mxu0 0.0
    %2578 = vmatpush.msra.mxu0 0.0
    %2579 = vmatpush.msra.mxu0 0.0
    %2580 = vmatpush.msra.mxu0 0.0
    %2581 = vmatpush.msra.mxu0 0.0
    %2582 = vmatpush.msra.mxu0 0.0
    %2583 = vmatpush.msra.mxu0 0.0
    %2584 = vmatpush.msra.mxu0 0.0
    %2585 = vmatpush.msra.mxu0 0.0
    %2586 = vmatpush.msra.mxu0 0.0
    %2587 = vmatpush.msra.mxu0 0.0
    %2588 = vmatpush.msra.mxu0 0.0
    %2589 = vmatpush.msra.mxu0 0.0
    %2590 = vmatpush.msra.mxu0 %v2172
    %2591 = vmatmul.f32.gmra.mxu0 %v2564
    %v2592 = vpop.f32.mrf.mxu0
    %v2593 = vadd.f32 0.0, %v2592
    %2594 = vmatmul.f32.gmra.mxu0 %v2567
    %v2595 = vpop.f32.mrf.mxu0
    %v2596 = vadd.f32 0.0, %v2595
    %2597 = vmatmul.f32.gmra.mxu0 %v2570
    %v2598 = vpop.f32.mrf.mxu0
    %v2599 = vadd.f32 0.0, %v2598
    %2600 = vmatmul.f32.gmra.mxu0 %v2573
    %v2601 = vpop.f32.mrf.mxu0
    %v2602 = vadd.f32 0.0, %v2601
    %2603 = vdwg.mxu0
    %v2605 = vsel %vm643, %v2327, 0
    %v2608 = vsel %vm643, %v2330, 0
    %v2611 = vsel %vm643, %v2362, 0
    %v2614 = vsel %vm643, %v2365, 0
    %2616 = vmatpush.msra.mxu0 0.0
    %2617 = vmatpush.msra.mxu0 0.0
    %2618 = vmatpush.msra.mxu0 0.0
    %2619 = vmatpush.msra.mxu0 0.0
    %2620 = vmatpush.msra.mxu0 0.0
    %2621 = vmatpush.msra.mxu0 0.0
    %2622 = vmatpush.msra.mxu0 0.0
    %2623 = vmatpush.msra.mxu0 0.0
    %2624 = vmatpush.msra.mxu0 0.0
    %2625 = vmatpush.msra.mxu0 0.0
    %2626 = vmatpush.msra.mxu0 0.0
    %2627 = vmatpush.msra.mxu0 0.0
    %2628 = vmatpush.msra.mxu0 0.0
    %2629 = vmatpush.msra.mxu0 0.0
    %2630 = vmatpush.msra.mxu0 0.0
    %2631 = vmatpush.msra.mxu0 %v2171
    %2632 = vmatmul.f32.gmra.mxu0 %v2605
    %v2633 = vpop.f32.mrf.mxu0
    %v2634 = vadd.f32 %v2593, %v2633
    %2635 = vmatmul.f32.gmra.mxu0 %v2608
    %v2636 = vpop.f32.mrf.mxu0
    %v2637 = vadd.f32 %v2596, %v2636
    %2638 = vmatmul.f32.gmra.mxu0 %v2611
    %v2639 = vpop.f32.mrf.mxu0
    %v2640 = vadd.f32 %v2599, %v2639
    %2641 = vmatmul.f32.gmra.mxu0 %v2614
    %v2642 = vpop.f32.mrf.mxu0
    %v2643 = vadd.f32 %v2602, %v2642
    %2644 = vdwg.mxu0
    %2645 = vrot.lane.b32.xlu0 %v2159, 112
    %v2646 = vpop.permute.xlu0 %2645
    %2647 = vrot.lane.b32.xlu0 %v2162, 112
    %v2648 = vpop.permute.xlu0 %2647
    %2649 = vrot.lane.b32.xlu0 %v2159, 80
    %v2650 = vpop.permute.xlu0 %2649
    %2651 = vrot.lane.b32.xlu0 %v2162, 80
    %v2652 = vpop.permute.xlu0 %2651
    %v2653 = vsel %vm643, %v2646, 0
    %v2655 = vsel %vm643, %v2648, 0
    %v2657 = vsel %vm643, %v2650, 0
    %v2659 = vsel %vm643, %v2652, 0
    %2661 = vmatpush.xpose.msra.mxu0 0.0
    %2662 = vmatpush.xpose.msra.mxu0 0.0
    %2663 = vmatpush.xpose.msra.mxu0 0.0
    %2664 = vmatpush.xpose.msra.mxu0 0.0
    %2665 = vmatpush.xpose.msra.mxu0 0.0
    %2666 = vmatpush.xpose.msra.mxu0 0.0
    %2667 = vmatpush.xpose.msra.mxu0 0.0
    %2668 = vmatpush.xpose.msra.mxu0 0.0
    %2669 = vmatpush.xpose.msra.mxu0 0.0
    %2670 = vmatpush.xpose.msra.mxu0 0.0
    %2671 = vmatpush.xpose.msra.mxu0 0.0
    %2672 = vmatpush.xpose.msra.mxu0 0.0
    %2673 = vmatpush.xpose.msra.mxu0 0.0
    %2674 = vmatpush.xpose.msra.mxu0 0.0
    %2675 = vmatpush.xpose.msra.mxu0 %v2659
    %2676 = vmatpush.xpose.msra.mxu0 %v2657
    %2677 = vmatmul.f32.gmra.mxu0 %v2653
    %v2678 = vpop.f32.mrf.mxu0
    %v2679 = vadd.f32 0.0, %v2678
    %2680 = vmatmul.f32.gmra.mxu0 %v2655
    %v2681 = vpop.f32.mrf.mxu0
    %v2682 = vadd.f32 0.0, %v2681
    %2683 = vdwg.mxu0
    %2684 = vrot.lane.b32.xlu0 %v2165, 112
    %v2685 = vpop.permute.xlu0 %2684
    %2686 = vrot.lane.b32.xlu0 %v2168, 112
    %v2687 = vpop.permute.xlu0 %2686
    %2688 = vrot.lane.b32.xlu0 %v2165, 80
    %v2689 = vpop.permute.xlu0 %2688
    %2690 = vrot.lane.b32.xlu0 %v2168, 80
    %v2691 = vpop.permute.xlu0 %2690
    %v2692 = vsel %vm643, %v2685, 0
    %v2694 = vsel %vm643, %v2687, 0
    %v2696 = vsel %vm643, %v2689, 0
    %v2698 = vsel %vm643, %v2691, 0
    %2700 = vmatpush.xpose.msra.mxu0 0.0
    %2701 = vmatpush.xpose.msra.mxu0 0.0
    %2702 = vmatpush.xpose.msra.mxu0 0.0
    %2703 = vmatpush.xpose.msra.mxu0 0.0
    %2704 = vmatpush.xpose.msra.mxu0 0.0
    %2705 = vmatpush.xpose.msra.mxu0 0.0
    %2706 = vmatpush.xpose.msra.mxu0 0.0
    %2707 = vmatpush.xpose.msra.mxu0 0.0
    %2708 = vmatpush.xpose.msra.mxu0 0.0
    %2709 = vmatpush.xpose.msra.mxu0 0.0
    %2710 = vmatpush.xpose.msra.mxu0 0.0
    %2711 = vmatpush.xpose.msra.mxu0 0.0
    %2712 = vmatpush.xpose.msra.mxu0 0.0
    %2713 = vmatpush.xpose.msra.mxu0 0.0
    %2714 = vmatpush.xpose.msra.mxu0 %v2698
    %2715 = vmatpush.xpose.msra.mxu0 %v2696
    %2716 = vmatmul.f32.gmra.mxu0 %v2692
    %v2717 = vpop.f32.mrf.mxu0
    %v2718 = vadd.f32 0.0, %v2717
    %2719 = vmatmul.f32.gmra.mxu0 %v2694
    %v2720 = vpop.f32.mrf.mxu0
    %v2721 = vadd.f32 0.0, %v2720
    %2722 = vdwg.mxu0
    %v2723 = vmul.f32 %v2679, 0.35355338
    %v2724 = vmul.f32 %v2682, 0.35355338
    %v2725 = vmul.f32 %v2718, 0.35355338
    %v2726 = vmul.f32 %v2721, 0.35355338
    %v2727 = vsel %vm716, %v2723, -inf
    %2728 = vmax.xlane.f32.xlu0 %v2727
    %v2729 = vpop.xlane.xlu0 %2728
    %v2730 = vsel %vm716, %v2724, -inf
    %2731 = vmax.xlane.f32.xlu0 %v2730
    %v2732 = vpop.xlane.xlu0 %2731
    %v2733 = vsel %vm716, %v2725, -inf
    %2734 = vmax.xlane.f32.xlu0 %v2733
    %v2735 = vpop.xlane.xlu0 %2734
    %v2736 = vsel %vm716, %v2726, -inf
    %2737 = vmax.xlane.f32.xlu0 %v2736
    %v2738 = vpop.xlane.xlu0 %2737
    %v2739 = vsub.f32 %v2723, %v2729
    %v2740 = vsub.f32 %v2724, %v2732
    %v2741 = vsub.f32 %v2725, %v2735
    %v2742 = vsub.f32 %v2726, %v2738
    %v2743 = vmul.f32 %v2739, 1.442695
    %v2744 = vpow.pop %v2743
    %v2745 = vmul.f32 %v2740, 1.442695
    %v2746 = vpow.pop %v2745
    %v2747 = vmul.f32 %v2741, 1.442695
    %v2748 = vpow.pop %v2747
    %v2749 = vmul.f32 %v2742, 1.442695
    %v2750 = vpow.pop %v2749
    %v2751 = vsel %vm716, %v2744, 0.0
    %2752 = vadd.xlane.f32.xlu0 %v2751
    %v2753 = vpop.xlane.xlu0 %2752
    %v2754 = vsel %vm716, %v2746, 0.0
    %2755 = vadd.xlane.f32.xlu0 %v2754
    %v2756 = vpop.xlane.xlu0 %2755
    %v2757 = vsel %vm716, %v2748, 0.0
    %2758 = vadd.xlane.f32.xlu0 %v2757
    %v2759 = vpop.xlane.xlu0 %2758
    %v2760 = vsel %vm716, %v2750, 0.0
    %2761 = vadd.xlane.f32.xlu0 %v2760
    %v2762 = vpop.xlane.xlu0 %2761
    %v2763 = vrcp.pop %v2753
    %v2764 = vrcp.pop %v2756
    %v2765 = vrcp.pop %v2759
    %v2766 = vrcp.pop %v2762
    %v2767 = vmul.f32 %v2744, %v2763
    %v2768 = vmul.f32 %v2746, %v2764
    %v2769 = vmul.f32 %v2748, %v2765
    %v2770 = vmul.f32 %v2750, %v2766
    %2771 = vrot.lane.b32.xlu0 %v2159, 48
    %v2772 = vpop.permute.xlu0 %2771
    %2773 = vrot.lane.b32.xlu0 %v2162, 48
    %v2774 = vpop.permute.xlu0 %2773
    %v2778 = vsel %vm716, %v2767, 0
    %v2781 = vsel %vm716, %v2768, 0
    %2783 = vmatpush.msra.mxu0 0.0
    %2784 = vmatpush.msra.mxu0 0.0
    %2785 = vmatpush.msra.mxu0 0.0
    %2786 = vmatpush.msra.mxu0 0.0
    %2787 = vmatpush.msra.mxu0 0.0
    %2788 = vmatpush.msra.mxu0 0.0
    %2789 = vmatpush.msra.mxu0 0.0
    %2790 = vmatpush.msra.mxu0 0.0
    %2791 = vmatpush.msra.mxu0 0.0
    %2792 = vmatpush.msra.mxu0 0.0
    %2793 = vmatpush.msra.mxu0 0.0
    %2794 = vmatpush.msra.mxu0 0.0
    %2795 = vmatpush.msra.mxu0 0.0
    %2796 = vmatpush.msra.mxu0 0.0
    %2797 = vmatpush.msra.mxu0 %v2774
    %2798 = vmatpush.msra.mxu0 %v2772
    %2799 = vmatmul.f32.gmra.mxu0 %v2778
    %v2800 = vpop.f32.mrf.mxu0
    %v2801 = vadd.f32 0.0, %v2800
    %2802 = vmatmul.f32.gmra.mxu0 %v2781
    %v2803 = vpop.f32.mrf.mxu0
    %v2804 = vadd.f32 0.0, %v2803
    %2805 = vdwg.mxu0
    %2806 = vrot.lane.b32.xlu0 %v2165, 48
    %v2807 = vpop.permute.xlu0 %2806
    %2808 = vrot.lane.b32.xlu0 %v2168, 48
    %v2809 = vpop.permute.xlu0 %2808
    %v2813 = vsel %vm716, %v2769, 0
    %v2816 = vsel %vm716, %v2770, 0
    %2818 = vmatpush.msra.mxu0 0.0
    %2819 = vmatpush.msra.mxu0 0.0
    %2820 = vmatpush.msra.mxu0 0.0
    %2821 = vmatpush.msra.mxu0 0.0
    %2822 = vmatpush.msra.mxu0 0.0
    %2823 = vmatpush.msra.mxu0 0.0
    %2824 = vmatpush.msra.mxu0 0.0
    %2825 = vmatpush.msra.mxu0 0.0
    %2826 = vmatpush.msra.mxu0 0.0
    %2827 = vmatpush.msra.mxu0 0.0
    %2828 = vmatpush.msra.mxu0 0.0
    %2829 = vmatpush.msra.mxu0 0.0
    %2830 = vmatpush.msra.mxu0 0.0
    %2831 = vmatpush.msra.mxu0 0.0
    %2832 = vmatpush.msra.mxu0 %v2809
    %2833 = vmatpush.msra.mxu0 %v2807
    %2834 = vmatmul.f32.gmra.mxu0 %v2813
    %v2835 = vpop.f32.mrf.mxu0
    %v2836 = vadd.f32 0.0, %v2835
    %2837 = vmatmul.f32.gmra.mxu0 %v2816
    %v2838 = vpop.f32.mrf.mxu0
    %v2839 = vadd.f32 0.0, %v2838
    %2840 = vdwg.mxu0
    %v2842 = vsel %vm643, %v2801, 0
    %v2845 = vsel %vm643, %v2804, 0
    %v2848 = vsel %vm643, %v2836, 0
    %v2851 = vsel %vm643, %v2839, 0
    %2853 = vmatpush.msra.mxu0 0.0
    %2854 = vmatpush.msra.mxu0 0.0
    %2855 = vmatpush.msra.mxu0 0.0
    %2856 = vmatpush.msra.mxu0 0.0
    %2857 = vmatpush.msra.mxu0 0.0
    %2858 = vmatpush.msra.mxu0 0.0
    %2859 = vmatpush.msra.mxu0 0.0
    %2860 = vmatpush.msra.mxu0 0.0
    %2861 = vmatpush.msra.mxu0 0.0
    %2862 = vmatpush.msra.mxu0 0.0
    %2863 = vmatpush.msra.mxu0 0.0
    %2864 = vmatpush.msra.mxu0 0.0
    %2865 = vmatpush.msra.mxu0 0.0
    %2866 = vmatpush.msra.mxu0 0.0
    %2867 = vmatpush.msra.mxu0 0.0
    %2868 = vmatpush.msra.mxu0 %v2173
    %2869 = vmatmul.f32.gmra.mxu0 %v2842
    %v2870 = vpop.f32.mrf.mxu0
    %v2871 = vadd.f32 0.0, %v2870
    %2872 = vmatmul.f32.gmra.mxu0 %v2845
    %v2873 = vpop.f32.mrf.mxu0
    %v2874 = vadd.f32 0.0, %v2873
    %2875 = vmatmul.f32.gmra.mxu0 %v2848
    %v2876 = vpop.f32.mrf.mxu0
    %v2877 = vadd.f32 0.0, %v2876
    %2878 = vmatmul.f32.gmra.mxu0 %v2851
    %v2879 = vpop.f32.mrf.mxu0
    %v2880 = vadd.f32 0.0, %v2879
    %2881 = vdwg.mxu0
    %v2882 = vadd.f32 %v2634, %v2871
    %v2883 = vadd.f32 %v2637, %v2874
    %v2884 = vadd.f32 %v2640, %v2877
    %v2885 = vadd.f32 %v2643, %v2880
    %2886 = vrot.lane.b32.xlu0 %v2159, 104
    %v2887 = vpop.permute.xlu0 %2886
    %2888 = vrot.lane.b32.xlu0 %v2162, 104
    %v2889 = vpop.permute.xlu0 %2888
    %2890 = vrot.lane.b32.xlu0 %v2159, 72
    %v2891 = vpop.permute.xlu0 %2890
    %2892 = vrot.lane.b32.xlu0 %v2162, 72
    %v2893 = vpop.permute.xlu0 %2892
    %v2894 = vsel %vm643, %v2887, 0
    %v2896 = vsel %vm643, %v2889, 0
    %v2898 = vsel %vm643, %v2891, 0
    %v2900 = vsel %vm643, %v2893, 0
    %2902 = vmatpush.xpose.msra.mxu0 0.0
    %2903 = vmatpush.xpose.msra.mxu0 0.0
    %2904 = vmatpush.xpose.msra.mxu0 0.0
    %2905 = vmatpush.xpose.msra.mxu0 0.0
    %2906 = vmatpush.xpose.msra.mxu0 0.0
    %2907 = vmatpush.xpose.msra.mxu0 0.0
    %2908 = vmatpush.xpose.msra.mxu0 0.0
    %2909 = vmatpush.xpose.msra.mxu0 0.0
    %2910 = vmatpush.xpose.msra.mxu0 0.0
    %2911 = vmatpush.xpose.msra.mxu0 0.0
    %2912 = vmatpush.xpose.msra.mxu0 0.0
    %2913 = vmatpush.xpose.msra.mxu0 0.0
    %2914 = vmatpush.xpose.msra.mxu0 0.0
    %2915 = vmatpush.xpose.msra.mxu0 0.0
    %2916 = vmatpush.xpose.msra.mxu0 %v2900
    %2917 = vmatpush.xpose.msra.mxu0 %v2898
    %2918 = vmatmul.f32.gmra.mxu0 %v2894
    %v2919 = vpop.f32.mrf.mxu0
    %v2920 = vadd.f32 0.0, %v2919
    %2921 = vmatmul.f32.gmra.mxu0 %v2896
    %v2922 = vpop.f32.mrf.mxu0
    %v2923 = vadd.f32 0.0, %v2922
    %2924 = vdwg.mxu0
    %2925 = vrot.lane.b32.xlu0 %v2165, 104
    %v2926 = vpop.permute.xlu0 %2925
    %2927 = vrot.lane.b32.xlu0 %v2168, 104
    %v2928 = vpop.permute.xlu0 %2927
    %2929 = vrot.lane.b32.xlu0 %v2165, 72
    %v2930 = vpop.permute.xlu0 %2929
    %2931 = vrot.lane.b32.xlu0 %v2168, 72
    %v2932 = vpop.permute.xlu0 %2931
    %v2933 = vsel %vm643, %v2926, 0
    %v2935 = vsel %vm643, %v2928, 0
    %v2937 = vsel %vm643, %v2930, 0
    %v2939 = vsel %vm643, %v2932, 0
    %2941 = vmatpush.xpose.msra.mxu0 0.0
    %2942 = vmatpush.xpose.msra.mxu0 0.0
    %2943 = vmatpush.xpose.msra.mxu0 0.0
    %2944 = vmatpush.xpose.msra.mxu0 0.0
    %2945 = vmatpush.xpose.msra.mxu0 0.0
    %2946 = vmatpush.xpose.msra.mxu0 0.0
    %2947 = vmatpush.xpose.msra.mxu0 0.0
    %2948 = vmatpush.xpose.msra.mxu0 0.0
    %2949 = vmatpush.xpose.msra.mxu0 0.0
    %2950 = vmatpush.xpose.msra.mxu0 0.0
    %2951 = vmatpush.xpose.msra.mxu0 0.0
    %2952 = vmatpush.xpose.msra.mxu0 0.0
    %2953 = vmatpush.xpose.msra.mxu0 0.0
    %2954 = vmatpush.xpose.msra.mxu0 0.0
    %2955 = vmatpush.xpose.msra.mxu0 %v2939
    %2956 = vmatpush.xpose.msra.mxu0 %v2937
    %2957 = vmatmul.f32.gmra.mxu0 %v2933
    %v2958 = vpop.f32.mrf.mxu0
    %v2959 = vadd.f32 0.0, %v2958
    %2960 = vmatmul.f32.gmra.mxu0 %v2935
    %v2961 = vpop.f32.mrf.mxu0
    %v2962 = vadd.f32 0.0, %v2961
    %2963 = vdwg.mxu0
    %v2964 = vmul.f32 %v2920, 0.35355338
    %v2965 = vmul.f32 %v2923, 0.35355338
    %v2966 = vmul.f32 %v2959, 0.35355338
    %v2967 = vmul.f32 %v2962, 0.35355338
    %v2968 = vsel %vm716, %v2964, -inf
    %2969 = vmax.xlane.f32.xlu0 %v2968
    %v2970 = vpop.xlane.xlu0 %2969
    %v2971 = vsel %vm716, %v2965, -inf
    %2972 = vmax.xlane.f32.xlu0 %v2971
    %v2973 = vpop.xlane.xlu0 %2972
    %v2974 = vsel %vm716, %v2966, -inf
    %2975 = vmax.xlane.f32.xlu0 %v2974
    %v2976 = vpop.xlane.xlu0 %2975
    %v2977 = vsel %vm716, %v2967, -inf
    %2978 = vmax.xlane.f32.xlu0 %v2977
    %v2979 = vpop.xlane.xlu0 %2978
    %v2980 = vsub.f32 %v2964, %v2970
    %v2981 = vsub.f32 %v2965, %v2973
    %v2982 = vsub.f32 %v2966, %v2976
    %v2983 = vsub.f32 %v2967, %v2979
    %v2984 = vmul.f32 %v2980, 1.442695
    %v2985 = vpow.pop %v2984
    %v2986 = vmul.f32 %v2981, 1.442695
    %v2987 = vpow.pop %v2986
    %v2988 = vmul.f32 %v2982, 1.442695
    %v2989 = vpow.pop %v2988
    %v2990 = vmul.f32 %v2983, 1.442695
    %v2991 = vpow.pop %v2990
    %v2992 = vsel %vm716, %v2985, 0.0
    %2993 = vadd.xlane.f32.xlu0 %v2992
    %v2994 = vpop.xlane.xlu0 %2993
    %v2995 = vsel %vm716, %v2987, 0.0
    %2996 = vadd.xlane.f32.xlu0 %v2995
    %v2997 = vpop.xlane.xlu0 %2996
    %v2998 = vsel %vm716, %v2989, 0.0
    %2999 = vadd.xlane.f32.xlu0 %v2998
    %v3000 = vpop.xlane.xlu0 %2999
    %v3001 = vsel %vm716, %v2991, 0.0
    %3002 = vadd.xlane.f32.xlu0 %v3001
    %v3003 = vpop.xlane.xlu0 %3002
    %v3004 = vrcp.pop %v2994
    %v3005 = vrcp.pop %v2997
    %v3006 = vrcp.pop %v3000
    %v3007 = vrcp.pop %v3003
    %v3008 = vmul.f32 %v2985, %v3004
    %v3009 = vmul.f32 %v2987, %v3005
    %v3010 = vmul.f32 %v2989, %v3006
    %v3011 = vmul.f32 %v2991, %v3007
    %3012 = vrot.lane.b32.xlu0 %v2159, 40
    %v3013 = vpop.permute.xlu0 %3012
    %3014 = vrot.lane.b32.xlu0 %v2162, 40
    %v3015 = vpop.permute.xlu0 %3014
    %v3019 = vsel %vm716, %v3008, 0
    %v3022 = vsel %vm716, %v3009, 0
    %3024 = vmatpush.msra.mxu0 0.0
    %3025 = vmatpush.msra.mxu0 0.0
    %3026 = vmatpush.msra.mxu0 0.0
    %3027 = vmatpush.msra.mxu0 0.0
    %3028 = vmatpush.msra.mxu0 0.0
    %3029 = vmatpush.msra.mxu0 0.0
    %3030 = vmatpush.msra.mxu0 0.0
    %3031 = vmatpush.msra.mxu0 0.0
    %3032 = vmatpush.msra.mxu0 0.0
    %3033 = vmatpush.msra.mxu0 0.0
    %3034 = vmatpush.msra.mxu0 0.0
    %3035 = vmatpush.msra.mxu0 0.0
    %3036 = vmatpush.msra.mxu0 0.0
    %3037 = vmatpush.msra.mxu0 0.0
    %3038 = vmatpush.msra.mxu0 %v3015
    %3039 = vmatpush.msra.mxu0 %v3013
    %3040 = vmatmul.f32.gmra.mxu0 %v3019
    %v3041 = vpop.f32.mrf.mxu0
    %v3042 = vadd.f32 0.0, %v3041
    %3043 = vmatmul.f32.gmra.mxu0 %v3022
    %v3044 = vpop.f32.mrf.mxu0
    %v3045 = vadd.f32 0.0, %v3044
    %3046 = vdwg.mxu0
    %3047 = vrot.lane.b32.xlu0 %v2165, 40
    %v3048 = vpop.permute.xlu0 %3047
    %3049 = vrot.lane.b32.xlu0 %v2168, 40
    %v3050 = vpop.permute.xlu0 %3049
    %v3054 = vsel %vm716, %v3010, 0
    %v3057 = vsel %vm716, %v3011, 0
    %3059 = vmatpush.msra.mxu0 0.0
    %3060 = vmatpush.msra.mxu0 0.0
    %3061 = vmatpush.msra.mxu0 0.0
    %3062 = vmatpush.msra.mxu0 0.0
    %3063 = vmatpush.msra.mxu0 0.0
    %3064 = vmatpush.msra.mxu0 0.0
    %3065 = vmatpush.msra.mxu0 0.0
    %3066 = vmatpush.msra.mxu0 0.0
    %3067 = vmatpush.msra.mxu0 0.0
    %3068 = vmatpush.msra.mxu0 0.0
    %3069 = vmatpush.msra.mxu0 0.0
    %3070 = vmatpush.msra.mxu0 0.0
    %3071 = vmatpush.msra.mxu0 0.0
    %3072 = vmatpush.msra.mxu0 0.0
    %3073 = vmatpush.msra.mxu0 %v3050
    %3074 = vmatpush.msra.mxu0 %v3048
    %3075 = vmatmul.f32.gmra.mxu0 %v3054
    %v3076 = vpop.f32.mrf.mxu0
    %v3077 = vadd.f32 0.0, %v3076
    %3078 = vmatmul.f32.gmra.mxu0 %v3057
    %v3079 = vpop.f32.mrf.mxu0
    %v3080 = vadd.f32 0.0, %v3079
    %3081 = vdwg.mxu0
    %v3083 = vsel %vm643, %v3042, 0
    %v3086 = vsel %vm643, %v3045, 0
    %v3089 = vsel %vm643, %v3077, 0
    %v3092 = vsel %vm643, %v3080, 0
    %3094 = vmatpush.msra.mxu0 0.0
    %3095 = vmatpush.msra.mxu0 0.0
    %3096 = vmatpush.msra.mxu0 0.0
    %3097 = vmatpush.msra.mxu0 0.0
    %3098 = vmatpush.msra.mxu0 0.0
    %3099 = vmatpush.msra.mxu0 0.0
    %3100 = vmatpush.msra.mxu0 0.0
    %3101 = vmatpush.msra.mxu0 0.0
    %3102 = vmatpush.msra.mxu0 0.0
    %3103 = vmatpush.msra.mxu0 0.0
    %3104 = vmatpush.msra.mxu0 0.0
    %3105 = vmatpush.msra.mxu0 0.0
    %3106 = vmatpush.msra.mxu0 0.0
    %3107 = vmatpush.msra.mxu0 0.0
    %3108 = vmatpush.msra.mxu0 0.0
    %3109 = vmatpush.msra.mxu0 %v2174
    %3110 = vmatmul.f32.gmra.mxu0 %v3083
    %v3111 = vpop.f32.mrf.mxu0
    %v3112 = vadd.f32 0.0, %v3111
    %3113 = vmatmul.f32.gmra.mxu0 %v3086
    %v3114 = vpop.f32.mrf.mxu0
    %v3115 = vadd.f32 0.0, %v3114
    %3116 = vmatmul.f32.gmra.mxu0 %v3089
    %v3117 = vpop.f32.mrf.mxu0
    %v3118 = vadd.f32 0.0, %v3117
    %3119 = vmatmul.f32.gmra.mxu0 %v3092
    %v3120 = vpop.f32.mrf.mxu0
    %v3121 = vadd.f32 0.0, %v3120
    %3122 = vdwg.mxu0
    %v3123 = vadd.f32 %v2882, %v3112
    %v3124 = vadd.f32 %v2883, %v3115
    %v3125 = vadd.f32 %v2884, %v3118
    %v3126 = vadd.f32 %v2885, %v3121
    %s3127 = scalar_lea.vmem %s17, 1
    %v3128 = vld [vmem:[%s3127] sm:$0x1]
    %v3130 = vperm.slane %v3128, 0
    %v3132 = vadd.f32 %v3123, %v3130
    %v3133 = vadd.f32 %v3124, %v3130
    %v3134 = vadd.f32 %v3125, %v3130
    %v3135 = vadd.f32 %v3126, %v3130
    %3140 = vrot.lane.b32.xlu0 %v3132, 64
    %v3141 = vpop.permute.xlu0 %3140
    %3142 = vrot.lane.b32.xlu0 %v3133, 64
    %v3143 = vpop.permute.xlu0 %3142
    %3144 = vrot.lane.b32.xlu0 %v3134, 64
    %v3145 = vpop.permute.xlu0 %3144
    %3146 = vrot.lane.b32.xlu0 %v3135, 64
    %v3147 = vpop.permute.xlu0 %3146
    %v3152 = vmul.f32 %v1963, %v3141
    %v3153 = vmul.f32 %v1966, %v3143
    %v3154 = vmul.f32 %v1969, %v3145
    %v3155 = vmul.f32 %v1972, %v3147
    %3160 = vrot.lane.b32.xlu0 %v3152, 64
    %v3161 = vpop.permute.xlu0 %3160
    %3162 = vrot.lane.b32.xlu0 %v3153, 64
    %v3163 = vpop.permute.xlu0 %3162
    %3164 = vrot.lane.b32.xlu0 %v3154, 64
    %v3165 = vpop.permute.xlu0 %3164
    %3166 = vrot.lane.b32.xlu0 %v3155, 64
    %v3167 = vpop.permute.xlu0 %3166
    %v3172 = vadd.f32 %v1925, %v3161
    %v3173 = vadd.f32 %v1926, %v3163
    %v3174 = vadd.f32 %v1927, %v3165
    %v3175 = vadd.f32 %v1928, %v3167
    %v3176 = vsel %vm250, %v3172, 0.0
    %3177 = vadd.xlane.f32.xlu0 %v3176
    %v3178 = vpop.xlane.xlu0 %3177
    %v3179 = vsel %vm250, %v3173, 0.0
    %3180 = vadd.xlane.f32.xlu0 %v3179
    %v3181 = vpop.xlane.xlu0 %3180
    %v3182 = vsel %vm250, %v3174, 0.0
    %3183 = vadd.xlane.f32.xlu0 %v3182
    %v3184 = vpop.xlane.xlu0 %3183
    %v3185 = vsel %vm250, %v3175, 0.0
    %3186 = vadd.xlane.f32.xlu0 %v3185
    %v3187 = vpop.xlane.xlu0 %3186
    %v3188 = vmul.f32 %v3178, %v479
    %v3189 = vmul.f32 %v3181, %v479
    %v3190 = vmul.f32 %v3184, %v479
    %v3191 = vmul.f32 %v3187, %v479
    %v3192 = vsub.f32 %v3172, %v3188
    %v3193 = vsub.f32 %v3173, %v3189
    %v3194 = vsub.f32 %v3174, %v3190
    %v3195 = vsub.f32 %v3175, %v3191
    %v3196 = vmul.f32 %v3192, %v3192
    %v3197 = vmul.f32 %v3193, %v3193
    %v3198 = vmul.f32 %v3194, %v3194
    %v3199 = vmul.f32 %v3195, %v3195
    %v3200 = vsel %vm250, %v3196, 0.0
    %3201 = vadd.xlane.f32.xlu0 %v3200
    %v3202 = vpop.xlane.xlu0 %3201
    %v3203 = vsel %vm250, %v3197, 0.0
    %3204 = vadd.xlane.f32.xlu0 %v3203
    %v3205 = vpop.xlane.xlu0 %3204
    %v3206 = vsel %vm250, %v3198, 0.0
    %3207 = vadd.xlane.f32.xlu0 %v3206
    %v3208 = vpop.xlane.xlu0 %3207
    %v3209 = vsel %vm250, %v3199, 0.0
    %3210 = vadd.xlane.f32.xlu0 %v3209
    %v3211 = vpop.xlane.xlu0 %3210
    %v3212 = vmul.f32 %v3202, %v479
    %v3213 = vmul.f32 %v3205, %v479
    %v3214 = vmul.f32 %v3208, %v479
    %v3215 = vmul.f32 %v3211, %v479
    %v3216 = vadd.f32 %v3212, 1e-06
    %v3217 = vadd.f32 %v3213, 1e-06
    %v3218 = vadd.f32 %v3214, 1e-06
    %v3219 = vadd.f32 %v3215, 1e-06
    %v3220 = vrsqrt.pop %v3216
    %v3221 = vmul.f32 %v3220, %v3216
    %v3222 = vmul.f32 %v3221, %v3220
    %v3223 = vmul.f32 0.5, %v3222
    %v3224 = vsub.f32 1.5, %v3223
    %v3225 = vmul.f32 %v3220, %v3224
    %vm3226 = vweird.f32 %v3216
    %vm3227 = vweird.f32 %v3220
    %vm3228 = vmor %vm3226, %vm3227
    %v3229 = vsel %vm3228, %v3220, %v3225
    %v3230 = vrsqrt.pop %v3217
    %v3231 = vmul.f32 %v3230, %v3217
    %v3232 = vmul.f32 %v3231, %v3230
    %v3233 = vmul.f32 0.5, %v3232
    %v3234 = vsub.f32 1.5, %v3233
    %v3235 = vmul.f32 %v3230, %v3234
    %vm3236 = vweird.f32 %v3217
    %vm3237 = vweird.f32 %v3230
    %vm3238 = vmor %vm3236, %vm3237
    %v3239 = vsel %vm3238, %v3230, %v3235
    %v3240 = vrsqrt.pop %v3218
    %v3241 = vmul.f32 %v3240, %v3218
    %v3242 = vmul.f32 %v3241, %v3240
    %v3243 = vmul.f32 0.5, %v3242
    %v3244 = vsub.f32 1.5, %v3243
    %v3245 = vmul.f32 %v3240, %v3244
    %vm3246 = vweird.f32 %v3218
    %vm3247 = vweird.f32 %v3240
    %vm3248 = vmor %vm3246, %vm3247
    %v3249 = vsel %vm3248, %v3240, %v3245
    %v3250 = vrsqrt.pop %v3219
    %v3251 = vmul.f32 %v3250, %v3219
    %v3252 = vmul.f32 %v3251, %v3250
    %v3253 = vmul.f32 0.5, %v3252
    %v3254 = vsub.f32 1.5, %v3253
    %v3255 = vmul.f32 %v3250, %v3254
    %vm3256 = vweird.f32 %v3219
    %vm3257 = vweird.f32 %v3250
    %vm3258 = vmor %vm3256, %vm3257
    %v3259 = vsel %vm3258, %v3250, %v3255
    %v3260 = vmul.f32 %v3192, %v3229
    %v3261 = vmul.f32 %v3193, %v3239
    %v3262 = vmul.f32 %v3194, %v3249
    %v3263 = vmul.f32 %v3195, %v3259
    %v3264 = vadd.f32 %v1992, 1.0
    %v3265 = vadd.f32 %v1995, 1.0
    %v3266 = vadd.f32 %v1998, 1.0
    %v3267 = vadd.f32 %v2001, 1.0
    %v3268 = vmul.f32 %v3260, %v3264
    %v3269 = vmul.f32 %v3261, %v3265
    %v3270 = vmul.f32 %v3262, %v3266
    %v3271 = vmul.f32 %v3263, %v3267
    %3276 = vrot.lane.b32.xlu0 %v1963, 32
    %v3277 = vpop.permute.xlu0 %3276
    %3278 = vrot.lane.b32.xlu0 %v1966, 32
    %v3279 = vpop.permute.xlu0 %3278
    %3280 = vrot.lane.b32.xlu0 %v1969, 32
    %v3281 = vpop.permute.xlu0 %3280
    %3282 = vrot.lane.b32.xlu0 %v1972, 32
    %v3283 = vpop.permute.xlu0 %3282
    %v3288 = vadd.f32 %v3268, %v3277
    %v3289 = vadd.f32 %v3269, %v3279
    %v3290 = vadd.f32 %v3270, %v3281
    %v3291 = vadd.f32 %v3271, %v3283
    %s3292 = scalar_lea.vmem %s18, 32
    %v3293 = vld [vmem:[%s3292] sm:$0xff]
    %v3294 = vld [vmem:[%s3292 + $0x8] sm:$0xff]
    %v3295 = vld [vmem:[%s3292 + $0x10] sm:$0xff]
    %v3296 = vld [vmem:[%s3292 + $0x18] sm:$0xff]
    %s3297 = scalar_lea.vmem %s19, 1
    %v3298 = vld [vmem:[%s3297] sm:$0x1]
    %v3300 = vperm.slane %v3298, 0
    %v3303 = vsel %vm250, %v3288, 0
    %v3306 = vsel %vm250, %v3289, 0
    %v3309 = vsel %vm250, %v3290, 0
    %v3312 = vsel %vm250, %v3291, 0
    %3314 = vmatpush.msra.mxu0 0.0
    %3315 = vmatpush.msra.mxu0 0.0
    %3316 = vmatpush.msra.mxu0 0.0
    %3317 = vmatpush.msra.mxu0 0.0
    %3318 = vmatpush.msra.mxu0 0.0
    %3319 = vmatpush.msra.mxu0 0.0
    %3320 = vmatpush.msra.mxu0 0.0
    %3321 = vmatpush.msra.mxu0 0.0
    %3322 = vmatpush.msra.mxu0 0.0
    %3323 = vmatpush.msra.mxu0 0.0
    %3324 = vmatpush.msra.mxu0 0.0
    %3325 = vmatpush.msra.mxu0 0.0
    %3326 = vmatpush.msra.mxu0 %v3296
    %3327 = vmatpush.msra.mxu0 %v3295
    %3328 = vmatpush.msra.mxu0 %v3294
    %3329 = vmatpush.msra.mxu0 %v3293
    %3330 = vmatmul.f32.gmra.mxu0 %v3303
    %v3331 = vpop.f32.mrf.mxu0
    %v3332 = vadd.f32 %v3300, %v3331
    %3333 = vmatmul.f32.gmra.mxu0 %v3306
    %v3334 = vpop.f32.mrf.mxu0
    %v3335 = vadd.f32 %v3300, %v3334
    %3336 = vmatmul.f32.gmra.mxu0 %v3309
    %v3337 = vpop.f32.mrf.mxu0
    %v3338 = vadd.f32 %v3300, %v3337
    %3339 = vmatmul.f32.gmra.mxu0 %v3312
    %v3340 = vpop.f32.mrf.mxu0
    %v3341 = vadd.f32 %v3300, %v3340
    %3342 = vdwg.mxu0
    %v3343 = vmul.f32 %v3332, 0.5
    %v3344 = vmul.f32 %v3335, 0.5
    %v3345 = vmul.f32 %v3338, 0.5
    %v3346 = vmul.f32 %v3341, 0.5
    %v3347 = vmul.f32 %v3332, 0.044715
    %v3348 = vmul.f32 %v3335, 0.044715
    %v3349 = vmul.f32 %v3338, 0.044715
    %v3350 = vmul.f32 %v3341, 0.044715
    %v3351 = vmul.f32 %v3347, %v3332
    %v3352 = vmul.f32 %v3348, %v3335
    %v3353 = vmul.f32 %v3349, %v3338
    %v3354 = vmul.f32 %v3350, %v3341
    %v3355 = vmul.f32 %v3351, %v3332
    %v3356 = vmul.f32 %v3352, %v3335
    %v3357 = vmul.f32 %v3353, %v3338
    %v3358 = vmul.f32 %v3354, %v3341
    %v3359 = vadd.f32 %v3332, %v3355
    %v3360 = vadd.f32 %v3335, %v3356
    %v3361 = vadd.f32 %v3338, %v3357
    %v3362 = vadd.f32 %v3341, %v3358
    %v3363 = vmul.f32 %v3359, 0.7978846
    %v3364 = vmul.f32 %v3360, 0.7978846
    %v3365 = vmul.f32 %v3361, 0.7978846
    %v3366 = vmul.f32 %v3362, 0.7978846
    %v3367 = vtanh.pop %v3363
    %v3368 = vtanh.pop %v3364
    %v3369 = vtanh.pop %v3365
    %v3370 = vtanh.pop %v3366
    %v3371 = vadd.f32 %v3367, 1.0
    %v3372 = vadd.f32 %v3368, 1.0
    %v3373 = vadd.f32 %v3369, 1.0
    %v3374 = vadd.f32 %v3370, 1.0
    %v3375 = vmul.f32 %v3343, %v3371
    %v3376 = vmul.f32 %v3344, %v3372
    %v3377 = vmul.f32 %v3345, %v3373
    %v3378 = vmul.f32 %v3346, %v3374
    %s3379 = scalar_lea.vmem %s20, 128
    %v3380 = vld [vmem:[%s3379] sm:$0xff]
    %v3381 = vld [vmem:[%s3379 + $0x8] sm:$0xff]
    %v3382 = vld [vmem:[%s3379 + $0x10] sm:$0xff]
    %v3383 = vld [vmem:[%s3379 + $0x18] sm:$0xff]
    %v3384 = vld [vmem:[%s3379 + $0x20] sm:$0xff]
    %v3385 = vld [vmem:[%s3379 + $0x28] sm:$0xff]
    %v3386 = vld [vmem:[%s3379 + $0x30] sm:$0xff]
    %v3387 = vld [vmem:[%s3379 + $0x38] sm:$0xff]
    %v3388 = vld [vmem:[%s3379 + $0x40] sm:$0xff]
    %v3389 = vld [vmem:[%s3379 + $0x48] sm:$0xff]
    %v3390 = vld [vmem:[%s3379 + $0x50] sm:$0xff]
    %v3391 = vld [vmem:[%s3379 + $0x58] sm:$0xff]
    %v3392 = vld [vmem:[%s3379 + $0x60] sm:$0xff]
    %v3393 = vld [vmem:[%s3379 + $0x68] sm:$0xff]
    %v3394 = vld [vmem:[%s3379 + $0x70] sm:$0xff]
    %v3395 = vld [vmem:[%s3379 + $0x78] sm:$0xff]
    %s3396 = scalar_lea.vmem %s21, 1
    %v3397 = vld [vmem:[%s3396] sm:$0x1]
    %v3399 = vperm.slane %v3397, 0
    %3401 = vmatpush.msra.mxu0 %v3395
    %3402 = vmatpush.msra.mxu0 %v3394
    %3403 = vmatpush.msra.mxu0 %v3393
    %3404 = vmatpush.msra.mxu0 %v3392
    %3405 = vmatpush.msra.mxu0 %v3391
    %3406 = vmatpush.msra.mxu0 %v3390
    %3407 = vmatpush.msra.mxu0 %v3389
    %3408 = vmatpush.msra.mxu0 %v3388
    %3409 = vmatpush.msra.mxu0 %v3387
    %3410 = vmatpush.msra.mxu0 %v3386
    %3411 = vmatpush.msra.mxu0 %v3385
    %3412 = vmatpush.msra.mxu0 %v3384
    %3413 = vmatpush.msra.mxu0 %v3383
    %3414 = vmatpush.msra.mxu0 %v3382
    %3415 = vmatpush.msra.mxu0 %v3381
    %3416 = vmatpush.msra.mxu0 %v3380
    %3417 = vmatmul.f32.gmra.mxu0 %v3375
    %v3418 = vpop.f32.mrf.mxu0
    %v3419 = vadd.f32 %v3399, %v3418
    %3420 = vmatmul.f32.gmra.mxu0 %v3376
    %v3421 = vpop.f32.mrf.mxu0
    %v3422 = vadd.f32 %v3399, %v3421
    %3423 = vmatmul.f32.gmra.mxu0 %v3377
    %v3424 = vpop.f32.mrf.mxu0
    %v3425 = vadd.f32 %v3399, %v3424
    %3426 = vmatmul.f32.gmra.mxu0 %v3378
    %v3427 = vpop.f32.mrf.mxu0
    %v3428 = vadd.f32 %v3399, %v3427
    %3429 = vdwg.mxu0
    %3434 = vrot.lane.b32.xlu0 %v3419, 32
    %v3435 = vpop.permute.xlu0 %3434
    %3436 = vrot.lane.b32.xlu0 %v3422, 32
    %v3437 = vpop.permute.xlu0 %3436
    %3438 = vrot.lane.b32.xlu0 %v3425, 32
    %v3439 = vpop.permute.xlu0 %3438
    %3440 = vrot.lane.b32.xlu0 %v3428, 32
    %v3441 = vpop.permute.xlu0 %3440
    %v3446 = vmul.f32 %v1992, %v3435
    %v3447 = vmul.f32 %v1995, %v3437
    %v3448 = vmul.f32 %v1998, %v3439
    %v3449 = vmul.f32 %v2001, %v3441
    %3454 = vrot.lane.b32.xlu0 %v3446, 96
    %v3455 = vpop.permute.xlu0 %3454
    %3456 = vrot.lane.b32.xlu0 %v3447, 96
    %v3457 = vpop.permute.xlu0 %3456
    %3458 = vrot.lane.b32.xlu0 %v3448, 96
    %v3459 = vpop.permute.xlu0 %3458
    %3460 = vrot.lane.b32.xlu0 %v3449, 96
    %v3461 = vpop.permute.xlu0 %3460
    %v3466 = vadd.f32 %v3172, %v3455
    %v3467 = vadd.f32 %v3173, %v3457
    %v3468 = vadd.f32 %v3174, %v3459
    %v3469 = vadd.f32 %v3175, %v3461
    %v3470 = vsel %vm250, %v3466, 0.0
    %3471 = vadd.xlane.f32.xlu0 %v3470
    %v3472 = vpop.xlane.xlu0 %3471
    %v3473 = vsel %vm250, %v3467, 0.0
    %3474 = vadd.xlane.f32.xlu0 %v3473
    %v3475 = vpop.xlane.xlu0 %3474
    %v3476 = vsel %vm250, %v3468, 0.0
    %3477 = vadd.xlane.f32.xlu0 %v3476
    %v3478 = vpop.xlane.xlu0 %3477
    %v3479 = vsel %vm250, %v3469, 0.0
    %3480 = vadd.xlane.f32.xlu0 %v3479
    %v3481 = vpop.xlane.xlu0 %3480
    %v3482 = vmul.f32 %v3472, %v479
    %v3483 = vmul.f32 %v3475, %v479
    %v3484 = vmul.f32 %v3478, %v479
    %v3485 = vmul.f32 %v3481, %v479
    %v3486 = vsub.f32 %v3466, %v3482
    %v3487 = vsub.f32 %v3467, %v3483
    %v3488 = vsub.f32 %v3468, %v3484
    %v3489 = vsub.f32 %v3469, %v3485
    %v3490 = vmul.f32 %v3486, %v3486
    %v3491 = vmul.f32 %v3487, %v3487
    %v3492 = vmul.f32 %v3488, %v3488
    %v3493 = vmul.f32 %v3489, %v3489
    %v3494 = vsel %vm250, %v3490, 0.0
    %3495 = vadd.xlane.f32.xlu0 %v3494
    %v3496 = vpop.xlane.xlu0 %3495
    %v3497 = vsel %vm250, %v3491, 0.0
    %3498 = vadd.xlane.f32.xlu0 %v3497
    %v3499 = vpop.xlane.xlu0 %3498
    %v3500 = vsel %vm250, %v3492, 0.0
    %3501 = vadd.xlane.f32.xlu0 %v3500
    %v3502 = vpop.xlane.xlu0 %3501
    %v3503 = vsel %vm250, %v3493, 0.0
    %3504 = vadd.xlane.f32.xlu0 %v3503
    %v3505 = vpop.xlane.xlu0 %3504
    %v3506 = vmul.f32 %v3496, %v479
    %v3507 = vmul.f32 %v3499, %v479
    %v3508 = vmul.f32 %v3502, %v479
    %v3509 = vmul.f32 %v3505, %v479
    %v3510 = vadd.f32 %v3506, 1e-05
    %v3511 = vadd.f32 %v3507, 1e-05
    %v3512 = vadd.f32 %v3508, 1e-05
    %v3513 = vadd.f32 %v3509, 1e-05
    %v3514 = vrsqrt.pop %v3510
    %v3515 = vmul.f32 %v3514, %v3510
    %v3516 = vmul.f32 %v3515, %v3514
    %v3517 = vmul.f32 0.5, %v3516
    %v3518 = vsub.f32 1.5, %v3517
    %v3519 = vmul.f32 %v3514, %v3518
    %vm3520 = vweird.f32 %v3510
    %vm3521 = vweird.f32 %v3514
    %vm3522 = vmor %vm3520, %vm3521
    %v3523 = vsel %vm3522, %v3514, %v3519
    %v3524 = vrsqrt.pop %v3511
    %v3525 = vmul.f32 %v3524, %v3511
    %v3526 = vmul.f32 %v3525, %v3524
    %v3527 = vmul.f32 0.5, %v3526
    %v3528 = vsub.f32 1.5, %v3527
    %v3529 = vmul.f32 %v3524, %v3528
    %vm3530 = vweird.f32 %v3511
    %vm3531 = vweird.f32 %v3524
    %vm3532 = vmor %vm3530, %vm3531
    %v3533 = vsel %vm3532, %v3524, %v3529
    %v3534 = vrsqrt.pop %v3512
    %v3535 = vmul.f32 %v3534, %v3512
    %v3536 = vmul.f32 %v3535, %v3534
    %v3537 = vmul.f32 0.5, %v3536
    %v3538 = vsub.f32 1.5, %v3537
    %v3539 = vmul.f32 %v3534, %v3538
    %vm3540 = vweird.f32 %v3512
    %vm3541 = vweird.f32 %v3534
    %vm3542 = vmor %vm3540, %vm3541
    %v3543 = vsel %vm3542, %v3534, %v3539
    %v3544 = vrsqrt.pop %v3513
    %v3545 = vmul.f32 %v3544, %v3513
    %v3546 = vmul.f32 %v3545, %v3544
    %v3547 = vmul.f32 0.5, %v3546
    %v3548 = vsub.f32 1.5, %v3547
    %v3549 = vmul.f32 %v3544, %v3548
    %vm3550 = vweird.f32 %v3513
    %vm3551 = vweird.f32 %v3544
    %vm3552 = vmor %vm3550, %vm3551
    %v3553 = vsel %vm3552, %v3544, %v3549
    %v3554 = vmul.f32 %v3486, %v3523
    %v3555 = vmul.f32 %v3487, %v3533
    %v3556 = vmul.f32 %v3488, %v3543
    %v3557 = vmul.f32 %v3489, %v3553
    %v3558 = vld [vmem:[%s22] sm:$0x1]
    %v3560 = vperm.slane %v3558, 0
    %v3562 = vmul.f32 %v3554, %v3560
    %v3563 = vmul.f32 %v3555, %v3560
    %v3564 = vmul.f32 %v3556, %v3560
    %v3565 = vmul.f32 %v3557, %v3560
    %v3566 = vld [vmem:[%s23] sm:$0x1]
    %v3568 = vperm.slane %v3566, 0
    %v3570 = vadd.f32 %v3562, %v3568
    %v3571 = vadd.f32 %v3563, %v3568
    %v3572 = vadd.f32 %v3564, %v3568
    %v3573 = vadd.f32 %v3565, %v3568
    %v3574 = vld [vmem:[%s24] sm:$0xf]
    %v3575 = vld [vmem:[%s25] sm:$0xf]
    %3577 = vset.pattern.permute.xlu0 0
    %3578 = vperm.xlu0 %3577, %v3575
    %v3579 = vpop.permute.xlu0 %3578
    %v3582 = vsel %vm250, %v3574, 0
    %v3585 = vsel %vm250, %v3570, 0
    %v3588 = vsel %vm250, %v3571, 0
    %3590 = vmatpush.xpose.msra.mxu0 0.0
    %3591 = vmatpush.xpose.msra.mxu0 0.0
    %3592 = vmatpush.xpose.msra.mxu0 0.0
    %3593 = vmatpush.xpose.msra.mxu0 0.0
    %3594 = vmatpush.xpose.msra.mxu0 0.0
    %3595 = vmatpush.xpose.msra.mxu0 0.0
    %3596 = vmatpush.xpose.msra.mxu0 0.0
    %3597 = vmatpush.xpose.msra.mxu0 0.0
    %3598 = vmatpush.xpose.msra.mxu0 0.0
    %3599 = vmatpush.xpose.msra.mxu0 0.0
    %3600 = vmatpush.xpose.msra.mxu0 0.0
    %3601 = vmatpush.xpose.msra.mxu0 0.0
    %3602 = vmatpush.xpose.msra.mxu0 0.0
    %3603 = vmatpush.xpose.msra.mxu0 0.0
    %3604 = vmatpush.xpose.msra.mxu0 %v3588
    %3605 = vmatpush.xpose.msra.mxu0 %v3585
    %3606 = vmatmul.f32.gmra.mxu0 %v3582
    %v3607 = vpop.f32.mrf.mxu0
    %v3608 = vadd.f32 %v3579, %v3607
    %3609 = vdwg.mxu0
    %vm3610 = vcmask 125952
    %3611 = vst.msk [vmem:[#allocation2] sm:$0xf] %vm3610, %v3608
    %v3613 = vsel %vm250, %v3572, 0
    %v3616 = vsel %vm250, %v3573, 0
    %3618 = vmatpush.xpose.msra.mxu0 0.0
    %3619 = vmatpush.xpose.msra.mxu0 0.0
    %3620 = vmatpush.xpose.msra.mxu0 0.0
    %3621 = vmatpush.xpose.msra.mxu0 0.0
    %3622 = vmatpush.xpose.msra.mxu0 0.0
    %3623 = vmatpush.xpose.msra.mxu0 0.0
    %3624 = vmatpush.xpose.msra.mxu0 0.0
    %3625 = vmatpush.xpose.msra.mxu0 0.0
    %3626 = vmatpush.xpose.msra.mxu0 0.0
    %3627 = vmatpush.xpose.msra.mxu0 0.0
    %3628 = vmatpush.xpose.msra.mxu0 0.0
    %3629 = vmatpush.xpose.msra.mxu0 0.0
    %3630 = vmatpush.xpose.msra.mxu0 0.0
    %3631 = vmatpush.xpose.msra.mxu0 0.0
    %3632 = vmatpush.xpose.msra.mxu0 %v3616
    %3633 = vmatpush.xpose.msra.mxu0 %v3613
    %3634 = vmatmul.f32.gmra.mxu0 %v3582
    %v3635 = vpop.f32.mrf.mxu0
    %v3636 = vadd.f32 %v3579, %v3635
    %3637 = vdwg.mxu0
    %s3638 = scalar_lea.vmem [#allocation2], 4
    %3639 = vst.msk [vmem:[%s3638] sm:$0xf] %vm3610, %v3636
    // Predicated region
    $region106: #{tpu_custom_call.1} parent=1 // pred_check
      _
    $region107: #{tpu_custom_call.1} parent=1 // pred_check_branch
      %3641 = sbr.rel (0) target = $region109
    $region108: #{tpu_custom_call.1} parent=1 // pred_region
      %3643 = vsyncadd [#allocation3], 0
      %s3644 = sshll.u32 [#allocation2], 4
      %s3645 = int_to_ptr.vmem [resolvable:$true] %s3644
      %s3646 = sshll.u32 %s26, 4
      %s3647 = int_to_ptr.hbm [resolvable:$true] %s3646
      %3652 = dma.vmem_to_hbm [thread:$0]  %s3645, 128, %s3647, [#allocation3], 64, 64, 4
    $region109: #{tpu_custom_call.1} parent=1 // pred_fallthru
      _
    // Predicated region
    $region110: #{tpu_custom_call.1} parent=1 // pred_check
      _
    $region111: #{tpu_custom_call.1} parent=1 // pred_check_branch
      %3654 = sbr.rel (0) target = $region113
    $region112: #{tpu_custom_call.1} parent=1 // pred_region
      %3656 = dma.done [#allocation3], 128
    $region113: #{tpu_custom_call.1} parent=1 // pred_fallthru
      _
    %3657 = vsyncpa [#allocation3], 1

</llo_original>
